<compile_context>
chip_gen: v6e
topology: v6e:2x2x1
jax: 0.10.0
libtpu: 0.0.40
codegen_flags: <defaults>
</compile_context>

<pallas_src>
import functools
import math

import jax
import jax.numpy as jnp
from jax import lax
from jax.experimental import pallas as pl
from jax.experimental.pallas import tpu as pltpu

LANE = 128
BN_EPS = 1e-5


def _round_up(x, m):
    return (x + m - 1) // m * m


def _pad_last(a, target):
    pad = target - a.shape[-1]
    if pad == 0:
        return a
    return jnp.pad(a, [(0, 0)] * (a.ndim - 1) + [(0, pad)])


# ----------------------------------------------------------------------------
# Kernel
# ----------------------------------------------------------------------------
def _bottleneck_kernel(x_ref, s1_ref, t1_ref, w1_ref, b1_ref,
                       s2_ref, t2_ref, w2_ref, b2_ref,
                       s3_ref, t3_ref, w3_ref, b3_ref,
                       o_ref, pad_ref, *, H, W, HALO):
    HW = H * W

    x = x_ref[0]                                  # [HW, Cin_pad] f32

    # ---- relu(bn1(x)) -> conv1 (1x1) ---------------------------------------
    h = jnp.maximum(x * s1_ref[...] + t1_ref[...], 0.0)
    h = jnp.dot(h.astype(jnp.bfloat16), w1_ref[...],
                preferred_element_type=jnp.float32) + b1_ref[...]

    # ---- relu(bn2) -> conv2 (3x3, stride=1, pad=1) --------------------------
    h = jnp.maximum(h * s2_ref[...] + t2_ref[...], 0.0)
    h_bf16 = h.astype(jnp.bfloat16)
    P = h.shape[-1]

    # Zero only the border rows (interior is fully overwritten every step);
    # vertically out-of-range taps therefore read zeros automatically.
    zeros_border = jnp.zeros((HALO, P), jnp.bfloat16)
    pad_ref[pl.ds(0, HALO), :] = zeros_border
    pad_ref[pl.ds(HALO + HW, HALO), :] = zeros_border
    pad_ref[pl.ds(HALO, HW), :] = h_bf16

    # Column validity masks, (HW, 1) only (vertical OOB handled by zero halo).
    col = lax.broadcasted_iota(jnp.int32, (HW, 1), 0) % W
    mask_l = col > 0            # valid positions for dx = -1
    mask_r = col < (W - 1)      # valid positions for dx = +1

    def tap(off):
        return pad_ref[pl.ds(off, HW), :]

    # kx = 0 (dx = -1): fused K = 3*P matmul over (dy = -1, 0, +1)
    slab = jnp.concatenate(
        [tap(HALO - W - 1), tap(HALO - 1), tap(HALO + W - 1)], axis=-1)
    slab = jnp.where(mask_l, slab, 0.0)
    acc = jnp.dot(slab, w2_ref[0], preferred_element_type=jnp.float32)

    # kx = 1 (dx = 0): no mask; centre tap reuses h_bf16 (no scratch re-load)
    slab = jnp.concatenate(
        [tap(HALO - W), h_bf16, tap(HALO + W)], axis=-1)
    acc = acc + jnp.dot(slab, w2_ref[1], preferred_element_type=jnp.float32)

    # kx = 2 (dx = +1)
    slab = jnp.concatenate(
        [tap(HALO - W + 1), tap(HALO + 1), tap(HALO + W + 1)], axis=-1)
    slab = jnp.where(mask_r, slab, 0.0)
    acc = acc + jnp.dot(slab, w2_ref[2], preferred_element_type=jnp.float32)

    h = acc + b2_ref[...]                         # conv2 bias once, after taps

    # ---- relu(bn3) -> conv3 (1x1) -------------------------------------------
    h = jnp.maximum(h * s3_ref[...] + t3_ref[...], 0.0)
    out = jnp.dot(h.astype(jnp.bfloat16), w3_ref[...],
                  preferred_element_type=jnp.float32) + b3_ref[...]

    # ---- residual add (downsample=None => inplanes == 4*planes, stride==1) --
    o_ref[0] = (out + x).astype(o_ref.dtype)


# ----------------------------------------------------------------------------
# Host-side parameter preparation
# ----------------------------------------------------------------------------
def _fold_bn(p):
    gamma, beta, mean, var = p
    s = gamma / jnp.sqrt(var + BN_EPS)
    return s, beta - mean * s


def _prep_vec(v, cpad):
    # [C] -> (1, cpad) f32, zero-padded (padded channels stay exactly 0).
    return _pad_last(v.reshape(1, -1).astype(jnp.float32), cpad)


def _prep_w1x1(w, cin_pad, cout_pad):
    # torch [out, in, 1, 1] -> [cin_pad, cout_pad] bf16
    w2d = _pad_last(jnp.transpose(w[:, :, 0, 0], (1, 0)), cout_pad)
    w2d = jnp.pad(w2d, ((0, cin_pad - w2d.shape[0]), (0, 0)))
    return w2d.astype(jnp.bfloat16)


def _prep_w3x3_fused(w, cpad):
    # torch [out, in, 3, 3] -> [3, 3*cpad, cpad] bf16, grouped by kx;
    # within a group, row-blocks ordered ky = 0, 1, 2 (i.e. dy = -1, 0, +1).
    groups = []
    for kx in range(3):
        blocks = []
        for ky in range(3):
            t2d = _pad_last(jnp.transpose(w[:, :, ky, kx], (1, 0)), cpad)
            t2d = jnp.pad(t2d, ((0, cpad - t2d.shape[0]), (0, 0)))
            blocks.append(t2d)
        groups.append(jnp.concatenate(blocks, axis=0))      # [3*cpad, cpad]
    return jnp.stack(groups, axis=0).astype(jnp.bfloat16)   # [3, 3*cpad, cpad]


def prepare_params(params):
    """Fold BN and lay out conv weights for the kernel. Returns (args, dims)."""
    w1, b1 = params["conv1"]
    w2, b2 = params["conv2"]
    w3, b3 = params["conv3"]
    C, planes, cout = w1.shape[1], w1.shape[0], w3.shape[0]
    assert cout == C, "downsample=None requires inplanes == 4*planes"

    cin_pad = _round_up(C, LANE)
    p_pad = _round_up(planes, LANE)
    cout_pad = _round_up(cout, LANE)   # == cin_pad given the assert above

    s1, t1 = _fold_bn(params["bn1"])
    s2, t2 = _fold_bn(params["bn2"])
    s3, t3 = _fold_bn(params["bn3"])

    args = (
        _prep_vec(s1, cin_pad), _prep_vec(t1, cin_pad),
        _prep_w1x1(w1, cin_pad, p_pad), _prep_vec(b1, p_pad),
        _prep_vec(s2, p_pad), _prep_vec(t2, p_pad),
        _prep_w3x3_fused(w2, p_pad), _prep_vec(b2, p_pad),
        _prep_vec(s3, p_pad), _prep_vec(t3, p_pad),
        _prep_w1x1(w3, p_pad, cout_pad), _prep_vec(b3, cout_pad),
    )
    return args, (C, cout, cin_pad, p_pad, cout_pad)


# ----------------------------------------------------------------------------
# Forward wrappers
# ----------------------------------------------------------------------------
def bottleneck_forward_rows(x_rows, args, *, H, W, p_pad, cout_pad):
    """x_rows: [B, H*W, cin_pad] f32 (padded NHWC rows). Returns same layout.

    A full network should stay in this layout between blocks; NCHW conversion
    happens once at network entry/exit.
    """
    B, hw, cin_pad = x_rows.shape
    HALO = _round_up(W + 1, 16)        # sublane-aligned halo (bf16 tile = 16)

    def resident(shape):
        return pl.BlockSpec(shape, lambda b, _n=len(shape): (0,) * _n)

    in_specs = [pl.BlockSpec((1, hw, cin_pad), lambda b: (b, 0, 0))]
    in_specs += [resident(a.shape) for a in args]
    out_spec = pl.BlockSpec((1, hw, cout_pad), lambda b: (b, 0, 0))

    kernel = functools.partial(_bottleneck_kernel, H=H, W=W, HALO=HALO)
    return pl.pallas_call(
        kernel,
        out_shape=jax.ShapeDtypeStruct((B, hw, cout_pad), jnp.float32),
        grid=(B,),
        in_specs=in_specs,
        out_specs=out_spec,
        scratch_shapes=[pltpu.VMEM((hw + 2 * HALO, p_pad), jnp.bfloat16)],
        compiler_params=pltpu.CompilerParams(
            dimension_semantics=("parallel",)),
    )(x_rows, *args)


def bottleneck_forward(x_nchw, params):
    """x_nchw: [B, C, H, W] float32. params: torch-layout weights / BN stats."""
    B, C, H, W = x_nchw.shape
    args, (_, cout, cin_pad, p_pad, cout_pad) = prepare_params(params)

    # NCHW -> [B, H*W, cin_pad] (channels last = lane dim, lane-dense)
    hw = H * W
    x_rows = jnp.transpose(x_nchw, (0, 2, 3, 1)).reshape(B, hw, C)
    x_rows = _pad_last(x_rows.astype(jnp.float32), cin_pad)

    out_rows = bottleneck_forward_rows(x_rows, args, H=H, W=W,
                                       p_pad=p_pad, cout_pad=cout_pad)

    out = out_rows[:, :, :cout].reshape(B, H, W, cout)
    return jnp.transpose(out, (0, 3, 1, 2))   # back to NCHW


# ----------------------------------------------------------------------------
# Parameter init (PyTorch-like defaults) and pure-JAX reference
# ----------------------------------------------------------------------------
def init_params(key, inplanes, planes):
    ks = list(jax.random.split(key, 9))

    def conv(kw, kb, cout, cin, kh, kwid):
        fan_in = cin * kh * kwid
        w = math.sqrt(2.0 / fan_in) * jax.random.normal(
            kw, (cout, cin, kh, kwid), jnp.float32)
        bound = 1.0 / math.sqrt(fan_in)
        b = jax.random.uniform(kb, (cout,), jnp.float32, -bound, bound)
        return w, b

    def bn(k, c):
        k1, k2, k3, k4 = jax.random.split(k, 4)
        gamma = jax.random.uniform(k1, (c,), jnp.float32, 0.5, 1.5)
        beta = 0.1 * jax.random.normal(k2, (c,), jnp.float32)
        mean = 0.1 * jax.random.normal(k3, (c,), jnp.float32)
        var = jax.random.uniform(k4, (c,), jnp.float32, 0.5, 1.5)
        return gamma, beta, mean, var

    return {
        "bn1": bn(ks[0], inplanes),
        "conv1": conv(ks[1], ks[2], planes, inplanes, 1, 1),
        "bn2": bn(ks[3], planes),
        "conv2": conv(ks[4], ks[5], planes, planes, 3, 3),
        "bn3": bn(ks[6], planes),
        "conv3": conv(ks[7], ks[8], planes * 4, planes, 1, 1),
    }


def reference_forward(x_nchw, params):
    def bn(x, p):
        g, b, m, v = p
        s = g / jnp.sqrt(v + BN_EPS)
        t = b - m * s
        return x * s[None, :, None, None] + t[None, :, None, None]

    def conv(x, wb, pad):
        w, b = wb
        y = lax.conv_general_dilated(
            x, w, window_strides=(1, 1), padding=pad,
            dimension_numbers=("NCHW", "OIHW", "NCHW"),
            precision=lax.Precision.HIGHEST)
        return y + b[None, :, None, None]

    h = conv(jax.nn.relu(bn(x_nchw, params["bn1"])), params["conv1"], "VALID")
    h = conv(jax.nn.relu(bn(h, params["bn2"])), params["conv2"],
             ((1, 1), (1, 1)))
    h = conv(jax.nn.relu(bn(h, params["bn3"])), params["conv3"], "VALID")
    return h + x_nchw


if __name__ == "__main__":
    key = jax.random.PRNGKey(0)
    kx, kp = jax.random.split(key)

    # Shapes consistent with the module: planes=4, inplanes=4*planes=16,
    # stride=1, downsample=None, 16x16 spatial, batch 2.
    B, planes, H, W = 2, 4, 16, 16
    inplanes = planes * 4

    x = jax.random.normal(kx, (B, inplanes, H, W), jnp.float32)
    params = init_params(kp, inplanes, planes)

    out = jax.block_until_ready(jax.jit(bottleneck_forward)(x, params))
    ref = reference_forward(x, params)

    assert out.shape == (B, inplanes, H, W)
    assert jnp.allclose(out, ref, atol=5e-2, rtol=5e-2), float(
        jnp.max(jnp.abs(out - ref)))

    print("KERNEL_OK")
</pallas_src>

<mosaic_0001>
module attributes {stable_mosaic.version = 11 : i64} {
  func.func @_bottleneck_kernel(%arg0: i32, %arg1: memref<1x256x128xf32, #tpu.memory_space<vmem>>, %arg2: memref<1x128xf32, #tpu.memory_space<vmem>>, %arg3: memref<1x128xf32, #tpu.memory_space<vmem>>, %arg4: memref<128x128xbf16, #tpu.memory_space<vmem>>, %arg5: memref<1x128xf32, #tpu.memory_space<vmem>>, %arg6: memref<1x128xf32, #tpu.memory_space<vmem>>, %arg7: memref<1x128xf32, #tpu.memory_space<vmem>>, %arg8: memref<3x384x128xbf16, #tpu.memory_space<vmem>>, %arg9: memref<1x128xf32, #tpu.memory_space<vmem>>, %arg10: memref<1x128xf32, #tpu.memory_space<vmem>>, %arg11: memref<1x128xf32, #tpu.memory_space<vmem>>, %arg12: memref<128x128xbf16, #tpu.memory_space<vmem>>, %arg13: memref<1x128xf32, #tpu.memory_space<vmem>>, %arg14: memref<1x256x128xf32, #tpu.memory_space<vmem>>, %arg15: memref<320x128xbf16, #tpu.memory_space<vmem>>) attributes {dimension_semantics = [#tpu.dimension_semantics<parallel>], iteration_bounds = array<i64: 2>, scalar_prefetch = 0 : i64, scratch_operands = 1 : i64, tpu.core_type = #tpu.core_type<tc>, window_params = [{transform_indices = @transform_0, window_bounds = array<i64: 1, 256, 128>}, {pipeline_mode = #tpu.pipeline_mode<synchronous>, transform_indices = @transform_1, window_bounds = array<i64: 1, 128>}, {pipeline_mode = #tpu.pipeline_mode<synchronous>, transform_indices = @transform_2, window_bounds = array<i64: 1, 128>}, {pipeline_mode = #tpu.pipeline_mode<synchronous>, transform_indices = @transform_3, window_bounds = array<i64: 128, 128>}, {pipeline_mode = #tpu.pipeline_mode<synchronous>, transform_indices = @transform_4, window_bounds = array<i64: 1, 128>}, {pipeline_mode = #tpu.pipeline_mode<synchronous>, transform_indices = @transform_5, window_bounds = array<i64: 1, 128>}, {pipeline_mode = #tpu.pipeline_mode<synchronous>, transform_indices = @transform_6, window_bounds = array<i64: 1, 128>}, {pipeline_mode = #tpu.pipeline_mode<synchronous>, transform_indices = @transform_7, window_bounds = array<i64: 3, 384, 128>}, {pipeline_mode = #tpu.pipeline_mode<synchronous>, transform_indices = @transform_8, window_bounds = array<i64: 1, 128>}, {pipeline_mode = #tpu.pipeline_mode<synchronous>, transform_indices = @transform_9, window_bounds = array<i64: 1, 128>}, {pipeline_mode = #tpu.pipeline_mode<synchronous>, transform_indices = @transform_10, window_bounds = array<i64: 1, 128>}, {pipeline_mode = #tpu.pipeline_mode<synchronous>, transform_indices = @transform_11, window_bounds = array<i64: 128, 128>}, {pipeline_mode = #tpu.pipeline_mode<synchronous>, transform_indices = @transform_12, window_bounds = array<i64: 1, 128>}, {transform_indices = @transform_13, window_bounds = array<i64: 1, 256, 128>}]} {
    %c0 = arith.constant 0 : index
    %c0_0 = arith.constant 0 : index
    %c0_1 = arith.constant 0 : index
    %0 = vector.load %arg1[%c0, %c0_0, %c0_1] : memref<1x256x128xf32, #tpu.memory_space<vmem>>, vector<1x256x128xf32>
    %1 = vector.shape_cast %0 : vector<1x256x128xf32> to vector<256x128xf32>
    %c0_2 = arith.constant 0 : index
    %c0_3 = arith.constant 0 : index
    %2 = vector.load %arg2[%c0_2, %c0_3] : memref<1x128xf32, #tpu.memory_space<vmem>>, vector<1x128xf32>
    %3 = vector.broadcast %2 : vector<1x128xf32> to vector<256x128xf32>
    %4 = arith.mulf %1, %3 : vector<256x128xf32>
    %c0_4 = arith.constant 0 : index
    %c0_5 = arith.constant 0 : index
    %5 = vector.load %arg3[%c0_4, %c0_5] : memref<1x128xf32, #tpu.memory_space<vmem>>, vector<1x128xf32>
    %6 = vector.broadcast %5 : vector<1x128xf32> to vector<256x128xf32>
    %7 = arith.addf %4, %6 : vector<256x128xf32>
    %cst = arith.constant 0.000000e+00 : f32
    %8 = vector.broadcast %cst : f32 to vector<256x128xf32>
    %9 = arith.maximumf %7, %8 : vector<256x128xf32>
    %10 = arith.truncf %9 : vector<256x128xf32> to vector<256x128xbf16>
    %c0_6 = arith.constant 0 : index
    %c0_7 = arith.constant 0 : index
    %11 = vector.load %arg4[%c0_6, %c0_7] : memref<128x128xbf16, #tpu.memory_space<vmem>>, vector<128x128xbf16>
    %cst_8 = arith.constant dense<0.000000e+00> : vector<256x128xf32>
    %12 = tpu.matmul %10, %11, %cst_8 {dimension_numbers = #tpu.dot_dimension_numbers<[1], [0], [0], [1], [0, 0, 1, 1], [], []>} : vector<256x128xbf16>, vector<128x128xbf16>, vector<256x128xf32> -> vector<256x128xf32>
    %c0_9 = arith.constant 0 : index
    %c0_10 = arith.constant 0 : index
    %13 = vector.load %arg5[%c0_9, %c0_10] : memref<1x128xf32, #tpu.memory_space<vmem>>, vector<1x128xf32>
    %14 = vector.broadcast %13 : vector<1x128xf32> to vector<256x128xf32>
    %15 = arith.addf %12, %14 : vector<256x128xf32>
    %c0_11 = arith.constant 0 : index
    %c0_12 = arith.constant 0 : index
    %16 = vector.load %arg6[%c0_11, %c0_12] : memref<1x128xf32, #tpu.memory_space<vmem>>, vector<1x128xf32>
    %17 = vector.broadcast %16 : vector<1x128xf32> to vector<256x128xf32>
    %18 = arith.mulf %15, %17 : vector<256x128xf32>
    %c0_13 = arith.constant 0 : index
    %c0_14 = arith.constant 0 : index
    %19 = vector.load %arg7[%c0_13, %c0_14] : memref<1x128xf32, #tpu.memory_space<vmem>>, vector<1x128xf32>
    %20 = vector.broadcast %19 : vector<1x128xf32> to vector<256x128xf32>
    %21 = arith.addf %18, %20 : vector<256x128xf32>
    %cst_15 = arith.constant 0.000000e+00 : f32
    %22 = vector.broadcast %cst_15 : f32 to vector<256x128xf32>
    %23 = arith.maximumf %21, %22 : vector<256x128xf32>
    %24 = arith.truncf %23 : vector<256x128xf32> to vector<256x128xbf16>
    %cst_16 = arith.constant 0.000000e+00 : bf16
    %25 = vector.broadcast %cst_16 : bf16 to vector<32x128xbf16>
    %c0_17 = arith.constant 0 : index
    %c0_18 = arith.constant 0 : index
    %26 = vector.load %arg15[%c0_17, %c0_18] : memref<320x128xbf16, #tpu.memory_space<vmem>>, vector<32x128xbf16>
    tpu.vector_store %arg15[%c0_17, %c0_18], %25 {strides = array<i32>} : memref<320x128xbf16, #tpu.memory_space<vmem>>, vector<32x128xbf16>,
    %c288 = arith.constant 288 : index
    %c0_19 = arith.constant 0 : index
    %27 = vector.load %arg15[%c288, %c0_19] : memref<320x128xbf16, #tpu.memory_space<vmem>>, vector<32x128xbf16>
    tpu.vector_store %arg15[%c288, %c0_19], %25 {strides = array<i32>} : memref<320x128xbf16, #tpu.memory_space<vmem>>, vector<32x128xbf16>,
    %c32 = arith.constant 32 : index
    %c0_20 = arith.constant 0 : index
    %28 = vector.load %arg15[%c32, %c0_20] : memref<320x128xbf16, #tpu.memory_space<vmem>>, vector<256x128xbf16>
    tpu.vector_store %arg15[%c32, %c0_20], %24 {strides = array<i32>} : memref<320x128xbf16, #tpu.memory_space<vmem>>, vector<256x128xbf16>,
    %29 = tpu.iota {dimensions = array<i32: 0>} : vector<256x1xi32>
    %c16_i32 = arith.constant 16 : i32
    %c0_i32 = arith.constant 0 : i32
    %30 = arith.cmpi eq, %c16_i32, %c0_i32 : i32
    %c1_i32 = arith.constant 1 : i32
    %31 = arith.select %30, %c1_i32, %c16_i32 : i32
    %32 = vector.broadcast %31 : i32 to vector<256x1xi32>
    %33 = arith.remsi %29, %32 : vector<256x1xi32>
    %c0_i32_21 = arith.constant 0 : i32
    %34 = vector.broadcast %c0_i32_21 : i32 to vector<256x1xi32>
    %35 = arith.cmpi ne, %33, %34 : vector<256x1xi32>
    %c0_i32_22 = arith.constant 0 : i32
    %36 = vector.broadcast %c0_i32_22 : i32 to vector<256x1xi32>
    %37 = arith.cmpi slt, %33, %36 : vector<256x1xi32>
    %c0_i32_23 = arith.constant 0 : i32
    %38 = arith.cmpi slt, %31, %c0_i32_23 : i32
    %39 = vector.broadcast %38 : i1 to vector<256x1xi1>
    %40 = vector.broadcast %39 : vector<256x1xi1> to vector<256x1xi1>
    %41 = arith.xori %37, %40 : vector<256x1xi1>
    %42 = arith.andi %41, %35 : vector<256x1xi1>
    %43 = vector.broadcast %31 : i32 to vector<256x1xi32>
    %44 = arith.addi %33, %43 : vector<256x1xi32>
    %45 = arith.select %42, %44, %33 : vector<256x1xi1>, vector<256x1xi32>
    %c0_i32_24 = arith.constant 0 : i32
    %46 = vector.broadcast %c0_i32_24 : i32 to vector<256x1xi32>
    %47 = arith.cmpi sgt, %45, %46 : vector<256x1xi32>
    %c15_i32 = arith.constant 15 : i32
    %48 = vector.broadcast %c15_i32 : i32 to vector<256x1xi32>
    %49 = arith.cmpi slt, %45, %48 : vector<256x1xi32>
    %c15 = arith.constant 15 : index
    %c0_25 = arith.constant 0 : index
    %50 = vector.load %arg15[%c15, %c0_25] : memref<320x128xbf16, #tpu.memory_space<vmem>>, vector<256x128xbf16>
    %c31 = arith.constant 31 : index
    %c0_26 = arith.constant 0 : index
    %51 = vector.load %arg15[%c31, %c0_26] : memref<320x128xbf16, #tpu.memory_space<vmem>>, vector<256x128xbf16>
    %c47 = arith.constant 47 : index
    %c0_27 = arith.constant 0 : index
    %52 = vector.load %arg15[%c47, %c0_27] : memref<320x128xbf16, #tpu.memory_space<vmem>>, vector<256x128xbf16>
    %53 = tpu.concatenate %50, %51, %52 in 1 : vector<256x128xbf16>, vector<256x128xbf16>, vector<256x128xbf16> -> vector<256x384xbf16>
    %cst_28 = arith.constant 0.000000e+00 : f32
    %54 = arith.truncf %cst_28 : f32 to bf16
    %55 = vector.shape_cast %47 : vector<256x1xi1> to vector<256x1xi1>
    %56 = vector.broadcast %55 : vector<256x1xi1> to vector<256x384xi1>
    %57 = vector.broadcast %54 : bf16 to vector<256x384xbf16>
    %58 = arith.select %56, %53, %57 : vector<256x384xi1>, vector<256x384xbf16>
    %c0_29 = arith.constant 0 : index
    %c0_30 = arith.constant 0 : index
    %c0_31 = arith.constant 0 : index
    %59 = vector.load %arg8[%c0_29, %c0_30, %c0_31] : memref<3x384x128xbf16, #tpu.memory_space<vmem>>, vector<1x384x128xbf16>
    %60 = vector.shape_cast %59 : vector<1x384x128xbf16> to vector<384x128xbf16>
    %cst_32 = arith.constant dense<0.000000e+00> : vector<256x128xf32>
    %61 = tpu.matmul %58, %60, %cst_32 {dimension_numbers = #tpu.dot_dimension_numbers<[1], [0], [0], [1], [0, 0, 1, 1], [], []>} : vector<256x384xbf16>, vector<384x128xbf16>, vector<256x128xf32> -> vector<256x128xf32>
    %c16 = arith.constant 16 : index
    %c0_33 = arith.constant 0 : index
    %62 = vector.load %arg15[%c16, %c0_33] : memref<320x128xbf16, #tpu.memory_space<vmem>>, vector<256x128xbf16>
    %c48 = arith.constant 48 : index
    %c0_34 = arith.constant 0 : index
    %63 = vector.load %arg15[%c48, %c0_34] : memref<320x128xbf16, #tpu.memory_space<vmem>>, vector<256x128xbf16>
    %64 = tpu.concatenate %62, %24, %63 in 1 : vector<256x128xbf16>, vector<256x128xbf16>, vector<256x128xbf16> -> vector<256x384xbf16>
    %c1 = arith.constant 1 : index
    %c0_35 = arith.constant 0 : index
    %c0_36 = arith.constant 0 : index
    %65 = vector.load %arg8[%c1, %c0_35, %c0_36] : memref<3x384x128xbf16, #tpu.memory_space<vmem>>, vector<1x384x128xbf16>
    %66 = vector.shape_cast %65 : vector<1x384x128xbf16> to vector<384x128xbf16>
    %cst_37 = arith.constant dense<0.000000e+00> : vector<256x128xf32>
    %67 = tpu.matmul %64, %66, %cst_37 {dimension_numbers = #tpu.dot_dimension_numbers<[1], [0], [0], [1], [0, 0, 1, 1], [], []>} : vector<256x384xbf16>, vector<384x128xbf16>, vector<256x128xf32> -> vector<256x128xf32>
    %68 = arith.addf %61, %67 : vector<256x128xf32>
    %c17 = arith.constant 17 : index
    %c0_38 = arith.constant 0 : index
    %69 = vector.load %arg15[%c17, %c0_38] : memref<320x128xbf16, #tpu.memory_space<vmem>>, vector<256x128xbf16>
    %c33 = arith.constant 33 : index
    %c0_39 = arith.constant 0 : index
    %70 = vector.load %arg15[%c33, %c0_39] : memref<320x128xbf16, #tpu.memory_space<vmem>>, vector<256x128xbf16>
    %c49 = arith.constant 49 : index
    %c0_40 = arith.constant 0 : index
    %71 = vector.load %arg15[%c49, %c0_40] : memref<320x128xbf16, #tpu.memory_space<vmem>>, vector<256x128xbf16>
    %72 = tpu.concatenate %69, %70, %71 in 1 : vector<256x128xbf16>, vector<256x128xbf16>, vector<256x128xbf16> -> vector<256x384xbf16>
    %cst_41 = arith.constant 0.000000e+00 : f32
    %73 = arith.truncf %cst_41 : f32 to bf16
    %74 = vector.shape_cast %49 : vector<256x1xi1> to vector<256x1xi1>
    %75 = vector.broadcast %74 : vector<256x1xi1> to vector<256x384xi1>
    %76 = vector.broadcast %73 : bf16 to vector<256x384xbf16>
    %77 = arith.select %75, %72, %76 : vector<256x384xi1>, vector<256x384xbf16>
    %c2 = arith.constant 2 : index
    %c0_42 = arith.constant 0 : index
    %c0_43 = arith.constant 0 : index
    %78 = vector.load %arg8[%c2, %c0_42, %c0_43] : memref<3x384x128xbf16, #tpu.memory_space<vmem>>, vector<1x384x128xbf16>
    %79 = vector.shape_cast %78 : vector<1x384x128xbf16> to vector<384x128xbf16>
    %cst_44 = arith.constant dense<0.000000e+00> : vector<256x128xf32>
    %80 = tpu.matmul %77, %79, %cst_44 {dimension_numbers = #tpu.dot_dimension_numbers<[1], [0], [0], [1], [0, 0, 1, 1], [], []>} : vector<256x384xbf16>, vector<384x128xbf16>, vector<256x128xf32> -> vector<256x128xf32>
    %81 = arith.addf %68, %80 : vector<256x128xf32>
    %c0_45 = arith.constant 0 : index
    %c0_46 = arith.constant 0 : index
    %82 = vector.load %arg9[%c0_45, %c0_46] : memref<1x128xf32, #tpu.memory_space<vmem>>, vector<1x128xf32>
    %83 = vector.broadcast %82 : vector<1x128xf32> to vector<256x128xf32>
    %84 = arith.addf %81, %83 : vector<256x128xf32>
    %c0_47 = arith.constant 0 : index
    %c0_48 = arith.constant 0 : index
    %85 = vector.load %arg10[%c0_47, %c0_48] : memref<1x128xf32, #tpu.memory_space<vmem>>, vector<1x128xf32>
    %86 = vector.broadcast %85 : vector<1x128xf32> to vector<256x128xf32>
    %87 = arith.mulf %84, %86 : vector<256x128xf32>
    %c0_49 = arith.constant 0 : index
    %c0_50 = arith.constant 0 : index
    %88 = vector.load %arg11[%c0_49, %c0_50] : memref<1x128xf32, #tpu.memory_space<vmem>>, vector<1x128xf32>
    %89 = vector.broadcast %88 : vector<1x128xf32> to vector<256x128xf32>
    %90 = arith.addf %87, %89 : vector<256x128xf32>
    %cst_51 = arith.constant 0.000000e+00 : f32
    %91 = vector.broadcast %cst_51 : f32 to vector<256x128xf32>
    %92 = arith.maximumf %90, %91 : vector<256x128xf32>
    %93 = arith.truncf %92 : vector<256x128xf32> to vector<256x128xbf16>
    %c0_52 = arith.constant 0 : index
    %c0_53 = arith.constant 0 : index
    %94 = vector.load %arg12[%c0_52, %c0_53] : memref<128x128xbf16, #tpu.memory_space<vmem>>, vector<128x128xbf16>
    %cst_54 = arith.constant dense<0.000000e+00> : vector<256x128xf32>
    %95 = tpu.matmul %93, %94, %cst_54 {dimension_numbers = #tpu.dot_dimension_numbers<[1], [0], [0], [1], [0, 0, 1, 1], [], []>} : vector<256x128xbf16>, vector<128x128xbf16>, vector<256x128xf32> -> vector<256x128xf32>
    %c0_55 = arith.constant 0 : index
    %c0_56 = arith.constant 0 : index
    %96 = vector.load %arg13[%c0_55, %c0_56] : memref<1x128xf32, #tpu.memory_space<vmem>>, vector<1x128xf32>
    %97 = vector.broadcast %96 : vector<1x128xf32> to vector<256x128xf32>
    %98 = arith.addf %95, %97 : vector<256x128xf32>
    %99 = arith.addf %98, %1 : vector<256x128xf32>
    %c0_57 = arith.constant 0 : index
    %c0_58 = arith.constant 0 : index
    %c0_59 = arith.constant 0 : index
    %100 = vector.load %arg14[%c0_57, %c0_58, %c0_59] : memref<1x256x128xf32, #tpu.memory_space<vmem>>, vector<1x256x128xf32>
    %101 = vector.shape_cast %100 : vector<1x256x128xf32> to vector<256x128xf32>
    %102 = vector.shape_cast %99 : vector<256x128xf32> to vector<1x256x128xf32>
    tpu.vector_store %arg14[%c0_57, %c0_58, %c0_59], %102 {strides = array<i32>} : memref<1x256x128xf32, #tpu.memory_space<vmem>>, vector<1x256x128xf32>,
    return
  }
  func.func @transform_0(%arg0: i32) -> (i32, i32, i32) {
    %c0_i32 = arith.constant 0 : i32
    %c0_i32_0 = arith.constant 0 : i32
    %c0_i32_1 = arith.constant 0 : i32
    return %arg0, %c0_i32, %c0_i32_0 : i32, i32, i32
  }
  func.func @transform_1(%arg0: i32) -> (i32, i32) {
    %c0_i32 = arith.constant 0 : i32
    %c0_i32_0 = arith.constant 0 : i32
    %c0_i32_1 = arith.constant 0 : i32
    return %c0_i32, %c0_i32_0 : i32, i32
  }
  func.func @transform_2(%arg0: i32) -> (i32, i32) {
    %c0_i32 = arith.constant 0 : i32
    %c0_i32_0 = arith.constant 0 : i32
    %c0_i32_1 = arith.constant 0 : i32
    return %c0_i32, %c0_i32_0 : i32, i32
  }
  func.func @transform_3(%arg0: i32) -> (i32, i32) {
    %c0_i32 = arith.constant 0 : i32
    %c0_i32_0 = arith.constant 0 : i32
    %c0_i32_1 = arith.constant 0 : i32
    return %c0_i32, %c0_i32_0 : i32, i32
  }
  func.func @transform_4(%arg0: i32) -> (i32, i32) {
    %c0_i32 = arith.constant 0 : i32
    %c0_i32_0 = arith.constant 0 : i32
    %c0_i32_1 = arith.constant 0 : i32
    return %c0_i32, %c0_i32_0 : i32, i32
  }
  func.func @transform_5(%arg0: i32) -> (i32, i32) {
    %c0_i32 = arith.constant 0 : i32
    %c0_i32_0 = arith.constant 0 : i32
    %c0_i32_1 = arith.constant 0 : i32
    return %c0_i32, %c0_i32_0 : i32, i32
  }
  func.func @transform_6(%arg0: i32) -> (i32, i32) {
    %c0_i32 = arith.constant 0 : i32
    %c0_i32_0 = arith.constant 0 : i32
    %c0_i32_1 = arith.constant 0 : i32
    return %c0_i32, %c0_i32_0 : i32, i32
  }
  func.func @transform_7(%arg0: i32) -> (i32, i32, i32) {
    %c0_i32 = arith.constant 0 : i32
    %c0_i32_0 = arith.constant 0 : i32
    %c0_i32_1 = arith.constant 0 : i32
    %c0_i32_2 = arith.constant 0 : i32
    return %c0_i32, %c0_i32_0, %c0_i32_1 : i32, i32, i32
  }
  func.func @transform_8(%arg0: i32) -> (i32, i32) {
    %c0_i32 = arith.constant 0 : i32
    %c0_i32_0 = arith.constant 0 : i32
    %c0_i32_1 = arith.constant 0 : i32
    return %c0_i32, %c0_i32_0 : i32, i32
  }
  func.func @transform_9(%arg0: i32) -> (i32, i32) {
    %c0_i32 = arith.constant 0 : i32
    %c0_i32_0 = arith.constant 0 : i32
    %c0_i32_1 = arith.constant 0 : i32
    return %c0_i32, %c0_i32_0 : i32, i32
  }
  func.func @transform_10(%arg0: i32) -> (i32, i32) {
    %c0_i32 = arith.constant 0 : i32
    %c0_i32_0 = arith.constant 0 : i32
    %c0_i32_1 = arith.constant 0 : i32
    return %c0_i32, %c0_i32_0 : i32, i32
  }
  func.func @transform_11(%arg0: i32) -> (i32, i32) {
    %c0_i32 = arith.constant 0 : i32
    %c0_i32_0 = arith.constant 0 : i32
    %c0_i32_1 = arith.constant 0 : i32
    return %c0_i32, %c0_i32_0 : i32, i32
  }
  func.func @transform_12(%arg0: i32) -> (i32, i32) {
    %c0_i32 = arith.constant 0 : i32
    %c0_i32_0 = arith.constant 0 : i32
    %c0_i32_1 = arith.constant 0 : i32
    return %c0_i32, %c0_i32_0 : i32, i32
  }
  func.func @transform_13(%arg0: i32) -> (i32, i32, i32) {
    %c0_i32 = arith.constant 0 : i32
    %c0_i32_0 = arith.constant 0 : i32
    %c0_i32_1 = arith.constant 0 : i32
    return %arg0, %c0_i32, %c0_i32_0 : i32, i32, i32
  }
}

</mosaic_0001>

<llo_original>
// kernel: bottleneck_forward.1
$region0: #{bottleneck_forward.1}
  #allocation0 [shape = 'u32[]', space=smem, size = 0x4, offset = 0x4, fixed_abs, tag = 'smem constant byte address 0x4 - core index']
  #allocation1 [shape = 'u32[144,128]{1,0:T(1,128)}', space=vmem, size = 0x12000, scoped, tag = 'internal scratch']
  #allocation2 [shape = 'bf16[320,128]{1,0:T(8,128)(2,1)}', space=vmem, size = 0x14000, scoped, tag = 'scratch operand']
  %s0 = inlined_call_operand.vmem [shape: f32[2,256,128], index: 0, kind: input, shape index: {}]
  %s1 = inlined_call_operand.vmem [shape: f32[1,128], index: 1, kind: input, shape index: {}]
  %s2 = inlined_call_operand.vmem [shape: f32[1,128], index: 2, kind: input, shape index: {}]
  %s3 = inlined_call_operand.vmem [shape: bf16[128,128], index: 3, kind: input, shape index: {}]
  %s4 = inlined_call_operand.vmem [shape: f32[1,128], index: 4, kind: input, shape index: {}]
  %s5 = inlined_call_operand.vmem [shape: f32[1,128], index: 5, kind: input, shape index: {}]
  %s6 = inlined_call_operand.vmem [shape: f32[1,128], index: 6, kind: input, shape index: {}]
  %s7 = inlined_call_operand.vmem [shape: bf16[3,384,128], index: 7, kind: input, shape index: {}]
  %s8 = inlined_call_operand.vmem [shape: f32[1,128], index: 8, kind: input, shape index: {}]
  %s9 = inlined_call_operand.vmem [shape: f32[1,128], index: 9, kind: input, shape index: {}]
  %s10 = inlined_call_operand.vmem [shape: f32[1,128], index: 10, kind: input, shape index: {}]
  %s11 = inlined_call_operand.vmem [shape: bf16[128,128], index: 11, kind: input, shape index: {}]
  %s12 = inlined_call_operand.vmem [shape: f32[1,128], index: 12, kind: input, shape index: {}]
  %s13 = inlined_call_operand.vmem [shape: f32[2,256,128], index: 13, kind: output, shape index: {}]
  %s14 = sld [smem:[#allocation0]]
  $region85: #{bottleneck_forward.1} parent=0
    _
  %s16 = ssub.s32 1, %s14
  %s17 = scalar_select 0, %s16, %s14
  loop: start=0, step=1, limit=4
  $region2: #{bottleneck_forward.1} parent=0 // loop_pre_header
    _
  $region3: #{bottleneck_forward.1} parent=0 // loop_header
    %s19 = sphi 0, %s23
    %p20 = scmp.ge.s32.totalorder %s19, 4
    %s29 = sphi 0, %s31
    %s32 = sphi 0, %s29
    %s33 = sphi 0, %s32
    %s49 = sphi 0, %s33
    %s53 = sphi 0, %s53
    %s55 = sphi 0, %s53
    %s56 = sphi 0, %s55
    %s70 = sphi 0, %s56
    %s74 = sphi 0, %s74
    %s76 = sphi 0, %s74
    %s77 = sphi 0, %s76
    %s91 = sphi 0, %s77
    %s95 = sphi 0, %s95
    %s97 = sphi 0, %s95
    %s98 = sphi 0, %s97
    %s112 = sphi 0, %s98
    %s116 = sphi 0, %s116
    %s118 = sphi 0, %s116
    %s119 = sphi 0, %s118
    %s133 = sphi 0, %s119
    %s137 = sphi 0, %s137
    %s139 = sphi 0, %s137
    %s140 = sphi 0, %s139
    %s154 = sphi 0, %s140
    %s158 = sphi 0, %s158
    %s160 = sphi 0, %s158
    %s161 = sphi 0, %s160
    %s175 = sphi 0, %s161
    %s179 = sphi 0, %s179
    %s181 = sphi 0, %s179
    %s182 = sphi 0, %s181
    %s196 = sphi 0, %s182
    %s200 = sphi 0, %s200
    %s202 = sphi 0, %s200
    %s203 = sphi 0, %s202
    %s217 = sphi 0, %s203
    %s221 = sphi 0, %s221
    %s223 = sphi 0, %s221
    %s224 = sphi 0, %s223
    %s238 = sphi 0, %s224
    %s242 = sphi 0, %s242
    %s244 = sphi 0, %s242
    %s245 = sphi 0, %s244
    %s259 = sphi 0, %s245
    %s263 = sphi 0, %s263
    %s265 = sphi 0, %s263
    %s266 = sphi 0, %s265
    %s280 = sphi 0, %s266
    %s284 = sphi 0, %s284
    %s286 = sphi 0, %s284
    %s287 = sphi 0, %s286
    %s301 = sphi 0, %s287
    %s307 = sphi 0, %s309
    %s310 = sphi 0, %s307
    %s311 = sphi 0, %s310
    %s327 = sphi 0, %s311
  $region4: #{bottleneck_forward.1} parent=0 // loop_header_branch
    %22 = sbr.rel (%p20) target = $region8
  $region5: #{bottleneck_forward.1} parent=0 // loop_body
    %s24 = ssub.s32 %s19, 1
    %s25 = ssub.s32 %s19, 2
    %s26 = sadd.s32 %s19, 1
    %s27 = ssub.s32 %s19, %s26
    %p28 = scmp.eq.s32.totalorder %s27, 0
    %s30 = sadd.s32 %s29, 1
    %s31 = scalar_select %p28, %s29, %s30
    %p34 = pneg %p28
    %p35 = scmp.eq.s32.totalorder %s19, 1
    %p36 = por %p34, %p35
    %p37 = scmp.ne.s32.totalorder %s29, %s32
    %p38 = scmp.eq.s32.totalorder %s19, 0
    %p39 = por %p37, %p38
    %p40 = scmp.ne.s32.totalorder %s29, %s32
    %p41 = scmp.eq.s32.totalorder %s24, 1
    %p42 = por %p40, %p41
    %p43 = scmp.ne.s32.totalorder %s32, %s33
    %p44 = scmp.eq.s32.totalorder %s24, 0
    %p45 = por %p43, %p44
    %p46 = scmp.ne.s32.totalorder %s32, %s33
    %p47 = scmp.eq.s32.totalorder %s25, 1
    %p48 = por %p46, %p47
    %p50 = scmp.ne.s32.totalorder %s33, %s49
    %p51 = scmp.eq.s32.totalorder %s25, 0
    %p52 = por %p50, %p51
    %s54 = sadd.s32 %s53, 1
    %p57 = scmp.eq.s32.totalorder %s19, 1
    %p58 = scmp.ne.s32.totalorder %s53, %s55
    %p59 = scmp.eq.s32.totalorder %s19, 0
    %p60 = por %p58, %p59
    %p61 = scmp.ne.s32.totalorder %s53, %s55
    %p62 = scmp.eq.s32.totalorder %s24, 1
    %p63 = por %p61, %p62
    %p64 = scmp.ne.s32.totalorder %s55, %s56
    %p65 = scmp.eq.s32.totalorder %s24, 0
    %p66 = por %p64, %p65
    %p67 = scmp.ne.s32.totalorder %s55, %s56
    %p68 = scmp.eq.s32.totalorder %s25, 1
    %p69 = por %p67, %p68
    %p71 = scmp.ne.s32.totalorder %s56, %s70
    %p72 = scmp.eq.s32.totalorder %s25, 0
    %p73 = por %p71, %p72
    %s75 = sadd.s32 %s74, 1
    %p78 = scmp.eq.s32.totalorder %s19, 1
    %p79 = scmp.ne.s32.totalorder %s74, %s76
    %p80 = scmp.eq.s32.totalorder %s19, 0
    %p81 = por %p79, %p80
    %p82 = scmp.ne.s32.totalorder %s74, %s76
    %p83 = scmp.eq.s32.totalorder %s24, 1
    %p84 = por %p82, %p83
    %p85 = scmp.ne.s32.totalorder %s76, %s77
    %p86 = scmp.eq.s32.totalorder %s24, 0
    %p87 = por %p85, %p86
    %p88 = scmp.ne.s32.totalorder %s76, %s77
    %p89 = scmp.eq.s32.totalorder %s25, 1
    %p90 = por %p88, %p89
    %p92 = scmp.ne.s32.totalorder %s77, %s91
    %p93 = scmp.eq.s32.totalorder %s25, 0
    %p94 = por %p92, %p93
    %s96 = sadd.s32 %s95, 1
    %p99 = scmp.eq.s32.totalorder %s19, 1
    %p100 = scmp.ne.s32.totalorder %s95, %s97
    %p101 = scmp.eq.s32.totalorder %s19, 0
    %p102 = por %p100, %p101
    %p103 = scmp.ne.s32.totalorder %s95, %s97
    %p104 = scmp.eq.s32.totalorder %s24, 1
    %p105 = por %p103, %p104
    %p106 = scmp.ne.s32.totalorder %s97, %s98
    %p107 = scmp.eq.s32.totalorder %s24, 0
    %p108 = por %p106, %p107
    %p109 = scmp.ne.s32.totalorder %s97, %s98
    %p110 = scmp.eq.s32.totalorder %s25, 1
    %p111 = por %p109, %p110
    %p113 = scmp.ne.s32.totalorder %s98, %s112
    %p114 = scmp.eq.s32.totalorder %s25, 0
    %p115 = por %p113, %p114
    %s117 = sadd.s32 %s116, 1
    %p120 = scmp.eq.s32.totalorder %s19, 1
    %p121 = scmp.ne.s32.totalorder %s116, %s118
    %p122 = scmp.eq.s32.totalorder %s19, 0
    %p123 = por %p121, %p122
    %p124 = scmp.ne.s32.totalorder %s116, %s118
    %p125 = scmp.eq.s32.totalorder %s24, 1
    %p126 = por %p124, %p125
    %p127 = scmp.ne.s32.totalorder %s118, %s119
    %p128 = scmp.eq.s32.totalorder %s24, 0
    %p129 = por %p127, %p128
    %p130 = scmp.ne.s32.totalorder %s118, %s119
    %p131 = scmp.eq.s32.totalorder %s25, 1
    %p132 = por %p130, %p131
    %p134 = scmp.ne.s32.totalorder %s119, %s133
    %p135 = scmp.eq.s32.totalorder %s25, 0
    %p136 = por %p134, %p135
    %s138 = sadd.s32 %s137, 1
    %p141 = scmp.eq.s32.totalorder %s19, 1
    %p142 = scmp.ne.s32.totalorder %s137, %s139
    %p143 = scmp.eq.s32.totalorder %s19, 0
    %p144 = por %p142, %p143
    %p145 = scmp.ne.s32.totalorder %s137, %s139
    %p146 = scmp.eq.s32.totalorder %s24, 1
    %p147 = por %p145, %p146
    %p148 = scmp.ne.s32.totalorder %s139, %s140
    %p149 = scmp.eq.s32.totalorder %s24, 0
    %p150 = por %p148, %p149
    %p151 = scmp.ne.s32.totalorder %s139, %s140
    %p152 = scmp.eq.s32.totalorder %s25, 1
    %p153 = por %p151, %p152
    %p155 = scmp.ne.s32.totalorder %s140, %s154
    %p156 = scmp.eq.s32.totalorder %s25, 0
    %p157 = por %p155, %p156
    %s159 = sadd.s32 %s158, 1
    %p162 = scmp.eq.s32.totalorder %s19, 1
    %p163 = scmp.ne.s32.totalorder %s158, %s160
    %p164 = scmp.eq.s32.totalorder %s19, 0
    %p165 = por %p163, %p164
    %p166 = scmp.ne.s32.totalorder %s158, %s160
    %p167 = scmp.eq.s32.totalorder %s24, 1
    %p168 = por %p166, %p167
    %p169 = scmp.ne.s32.totalorder %s160, %s161
    %p170 = scmp.eq.s32.totalorder %s24, 0
    %p171 = por %p169, %p170
    %p172 = scmp.ne.s32.totalorder %s160, %s161
    %p173 = scmp.eq.s32.totalorder %s25, 1
    %p174 = por %p172, %p173
    %p176 = scmp.ne.s32.totalorder %s161, %s175
    %p177 = scmp.eq.s32.totalorder %s25, 0
    %p178 = por %p176, %p177
    %s180 = sadd.s32 %s179, 1
    %p183 = scmp.eq.s32.totalorder %s19, 1
    %p184 = scmp.ne.s32.totalorder %s179, %s181
    %p185 = scmp.eq.s32.totalorder %s19, 0
    %p186 = por %p184, %p185
    %p187 = scmp.ne.s32.totalorder %s179, %s181
    %p188 = scmp.eq.s32.totalorder %s24, 1
    %p189 = por %p187, %p188
    %p190 = scmp.ne.s32.totalorder %s181, %s182
    %p191 = scmp.eq.s32.totalorder %s24, 0
    %p192 = por %p190, %p191
    %p193 = scmp.ne.s32.totalorder %s181, %s182
    %p194 = scmp.eq.s32.totalorder %s25, 1
    %p195 = por %p193, %p194
    %p197 = scmp.ne.s32.totalorder %s182, %s196
    %p198 = scmp.eq.s32.totalorder %s25, 0
    %p199 = por %p197, %p198
    %s201 = sadd.s32 %s200, 1
    %p204 = scmp.eq.s32.totalorder %s19, 1
    %p205 = scmp.ne.s32.totalorder %s200, %s202
    %p206 = scmp.eq.s32.totalorder %s19, 0
    %p207 = por %p205, %p206
    %p208 = scmp.ne.s32.totalorder %s200, %s202
    %p209 = scmp.eq.s32.totalorder %s24, 1
    %p210 = por %p208, %p209
    %p211 = scmp.ne.s32.totalorder %s202, %s203
    %p212 = scmp.eq.s32.totalorder %s24, 0
    %p213 = por %p211, %p212
    %p214 = scmp.ne.s32.totalorder %s202, %s203
    %p215 = scmp.eq.s32.totalorder %s25, 1
    %p216 = por %p214, %p215
    %p218 = scmp.ne.s32.totalorder %s203, %s217
    %p219 = scmp.eq.s32.totalorder %s25, 0
    %p220 = por %p218, %p219
    %s222 = sadd.s32 %s221, 1
    %p225 = scmp.eq.s32.totalorder %s19, 1
    %p226 = scmp.ne.s32.totalorder %s221, %s223
    %p227 = scmp.eq.s32.totalorder %s19, 0
    %p228 = por %p226, %p227
    %p229 = scmp.ne.s32.totalorder %s221, %s223
    %p230 = scmp.eq.s32.totalorder %s24, 1
    %p231 = por %p229, %p230
    %p232 = scmp.ne.s32.totalorder %s223, %s224
    %p233 = scmp.eq.s32.totalorder %s24, 0
    %p234 = por %p232, %p233
    %p235 = scmp.ne.s32.totalorder %s223, %s224
    %p236 = scmp.eq.s32.totalorder %s25, 1
    %p237 = por %p235, %p236
    %p239 = scmp.ne.s32.totalorder %s224, %s238
    %p240 = scmp.eq.s32.totalorder %s25, 0
    %p241 = por %p239, %p240
    %s243 = sadd.s32 %s242, 1
    %p246 = scmp.eq.s32.totalorder %s19, 1
    %p247 = scmp.ne.s32.totalorder %s242, %s244
    %p248 = scmp.eq.s32.totalorder %s19, 0
    %p249 = por %p247, %p248
    %p250 = scmp.ne.s32.totalorder %s242, %s244
    %p251 = scmp.eq.s32.totalorder %s24, 1
    %p252 = por %p250, %p251
    %p253 = scmp.ne.s32.totalorder %s244, %s245
    %p254 = scmp.eq.s32.totalorder %s24, 0
    %p255 = por %p253, %p254
    %p256 = scmp.ne.s32.totalorder %s244, %s245
    %p257 = scmp.eq.s32.totalorder %s25, 1
    %p258 = por %p256, %p257
    %p260 = scmp.ne.s32.totalorder %s245, %s259
    %p261 = scmp.eq.s32.totalorder %s25, 0
    %p262 = por %p260, %p261
    %s264 = sadd.s32 %s263, 1
    %p267 = scmp.eq.s32.totalorder %s19, 1
    %p268 = scmp.ne.s32.totalorder %s263, %s265
    %p269 = scmp.eq.s32.totalorder %s19, 0
    %p270 = por %p268, %p269
    %p271 = scmp.ne.s32.totalorder %s263, %s265
    %p272 = scmp.eq.s32.totalorder %s24, 1
    %p273 = por %p271, %p272
    %p274 = scmp.ne.s32.totalorder %s265, %s266
    %p275 = scmp.eq.s32.totalorder %s24, 0
    %p276 = por %p274, %p275
    %p277 = scmp.ne.s32.totalorder %s265, %s266
    %p278 = scmp.eq.s32.totalorder %s25, 1
    %p279 = por %p277, %p278
    %p281 = scmp.ne.s32.totalorder %s266, %s280
    %p282 = scmp.eq.s32.totalorder %s25, 0
    %p283 = por %p281, %p282
    %s285 = sadd.s32 %s284, 1
    %p288 = scmp.eq.s32.totalorder %s19, 1
    %p289 = scmp.ne.s32.totalorder %s284, %s286
    %p290 = scmp.eq.s32.totalorder %s19, 0
    %p291 = por %p289, %p290
    %p292 = scmp.ne.s32.totalorder %s284, %s286
    %p293 = scmp.eq.s32.totalorder %s24, 1
    %p294 = por %p292, %p293
    %p295 = scmp.ne.s32.totalorder %s286, %s287
    %p296 = scmp.eq.s32.totalorder %s24, 0
    %p297 = por %p295, %p296
    %p298 = scmp.ne.s32.totalorder %s286, %s287
    %p299 = scmp.eq.s32.totalorder %s25, 1
    %p300 = por %p298, %p299
    %p302 = scmp.ne.s32.totalorder %s287, %s301
    %p303 = scmp.eq.s32.totalorder %s25, 0
    %p304 = por %p302, %p303
    %s305 = ssub.s32 %s19, %s26
    %p306 = scmp.eq.s32.totalorder %s305, 0
    %s308 = sadd.s32 %s307, 1
    %s309 = scalar_select %p306, %s307, %s308
    %p312 = pneg %p306
    %p313 = scmp.eq.s32.totalorder %s19, 1
    %p314 = por %p312, %p313
    %p315 = scmp.ne.s32.totalorder %s307, %s310
    %p316 = scmp.eq.s32.totalorder %s19, 0
    %p317 = por %p315, %p316
    %p318 = scmp.ne.s32.totalorder %s307, %s310
    %p319 = scmp.eq.s32.totalorder %s24, 1
    %p320 = por %p318, %p319
    %p321 = scmp.ne.s32.totalorder %s310, %s311
    %p322 = scmp.eq.s32.totalorder %s24, 0
    %p323 = por %p321, %p322
    %p324 = scmp.ne.s32.totalorder %s310, %s311
    %p325 = scmp.eq.s32.totalorder %s25, 1
    %p326 = por %p324, %p325
    %p328 = scmp.ne.s32.totalorder %s311, %s327
    %p329 = scmp.eq.s32.totalorder %s25, 0
    %p330 = por %p328, %p329
    %p331 = scmp.le.s32.totalorder 1, %s19
    %p332 = scmp.lt.s32.totalorder %s19, 3
    %p333 = pnand %p331, %p332
    %p334 = pneg %p333
    // Predicated region
    $region9: #{bottleneck_forward.1} parent=5 // pred_check
      _
    $region10: #{bottleneck_forward.1} parent=5 // pred_check_branch
      %336 = sbr.rel (%p333) target = $region12
    $region11: #{bottleneck_forward.1} parent=5 // pred_region
      %s337 = ssub.s32 %s19, 1
      // Predicated region
      $region13: #{bottleneck_forward.1} parent=11 // pred_check
        %p338 = pneg %p66
      $region14: #{bottleneck_forward.1} parent=11 // pred_check_branch
        %340 = sbr.rel (%p338) target = $region16
      $region15: #{bottleneck_forward.1} parent=11 // pred_region
        _
      $region16: #{bottleneck_forward.1} parent=11 // pred_fallthru
        _
      // Predicated region
      $region17: #{bottleneck_forward.1} parent=11 // pred_check
        %p341 = pneg %p87
      $region18: #{bottleneck_forward.1} parent=11 // pred_check_branch
        %343 = sbr.rel (%p341) target = $region20
      $region19: #{bottleneck_forward.1} parent=11 // pred_region
        _
      $region20: #{bottleneck_forward.1} parent=11 // pred_fallthru
        _
      // Predicated region
      $region21: #{bottleneck_forward.1} parent=11 // pred_check
        %p344 = pneg %p108
      $region22: #{bottleneck_forward.1} parent=11 // pred_check_branch
        %346 = sbr.rel (%p344) target = $region24
      $region23: #{bottleneck_forward.1} parent=11 // pred_region
        _
      $region24: #{bottleneck_forward.1} parent=11 // pred_fallthru
        _
      // Predicated region
      $region25: #{bottleneck_forward.1} parent=11 // pred_check
        %p347 = pneg %p129
      $region26: #{bottleneck_forward.1} parent=11 // pred_check_branch
        %349 = sbr.rel (%p347) target = $region28
      $region27: #{bottleneck_forward.1} parent=11 // pred_region
        _
      $region28: #{bottleneck_forward.1} parent=11 // pred_fallthru
        _
      // Predicated region
      $region29: #{bottleneck_forward.1} parent=11 // pred_check
        %p350 = pneg %p150
      $region30: #{bottleneck_forward.1} parent=11 // pred_check_branch
        %352 = sbr.rel (%p350) target = $region32
      $region31: #{bottleneck_forward.1} parent=11 // pred_region
        _
      $region32: #{bottleneck_forward.1} parent=11 // pred_fallthru
        _
      // Predicated region
      $region33: #{bottleneck_forward.1} parent=11 // pred_check
        %p353 = pneg %p171
      $region34: #{bottleneck_forward.1} parent=11 // pred_check_branch
        %355 = sbr.rel (%p353) target = $region36
      $region35: #{bottleneck_forward.1} parent=11 // pred_region
        _
      $region36: #{bottleneck_forward.1} parent=11 // pred_fallthru
        _
      // Predicated region
      $region37: #{bottleneck_forward.1} parent=11 // pred_check
        %p356 = pneg %p192
      $region38: #{bottleneck_forward.1} parent=11 // pred_check_branch
        %358 = sbr.rel (%p356) target = $region40
      $region39: #{bottleneck_forward.1} parent=11 // pred_region
        _
      $region40: #{bottleneck_forward.1} parent=11 // pred_fallthru
        _
      // Predicated region
      $region41: #{bottleneck_forward.1} parent=11 // pred_check
        %p359 = pneg %p213
      $region42: #{bottleneck_forward.1} parent=11 // pred_check_branch
        %361 = sbr.rel (%p359) target = $region44
      $region43: #{bottleneck_forward.1} parent=11 // pred_region
        _
      $region44: #{bottleneck_forward.1} parent=11 // pred_fallthru
        _
      // Predicated region
      $region45: #{bottleneck_forward.1} parent=11 // pred_check
        %p362 = pneg %p234
      $region46: #{bottleneck_forward.1} parent=11 // pred_check_branch
        %364 = sbr.rel (%p362) target = $region48
      $region47: #{bottleneck_forward.1} parent=11 // pred_region
        _
      $region48: #{bottleneck_forward.1} parent=11 // pred_fallthru
        _
      // Predicated region
      $region49: #{bottleneck_forward.1} parent=11 // pred_check
        %p365 = pneg %p255
      $region50: #{bottleneck_forward.1} parent=11 // pred_check_branch
        %367 = sbr.rel (%p365) target = $region52
      $region51: #{bottleneck_forward.1} parent=11 // pred_region
        _
      $region52: #{bottleneck_forward.1} parent=11 // pred_fallthru
        _
      // Predicated region
      $region53: #{bottleneck_forward.1} parent=11 // pred_check
        %p368 = pneg %p276
      $region54: #{bottleneck_forward.1} parent=11 // pred_check_branch
        %370 = sbr.rel (%p368) target = $region56
      $region55: #{bottleneck_forward.1} parent=11 // pred_region
        _
      $region56: #{bottleneck_forward.1} parent=11 // pred_fallthru
        _
      // Predicated region
      $region57: #{bottleneck_forward.1} parent=11 // pred_check
        %p371 = pneg %p297
      $region58: #{bottleneck_forward.1} parent=11 // pred_check_branch
        %373 = sbr.rel (%p371) target = $region60
      $region59: #{bottleneck_forward.1} parent=11 // pred_region
        _
      $region60: #{bottleneck_forward.1} parent=11 // pred_fallthru
        _
    $region12: #{bottleneck_forward.1} parent=5 // pred_fallthru
      _
    %p374 = scmp.lt.s32.totalorder %s19, 2
    // Predicated region
    $region61: #{bottleneck_forward.1} parent=5 // pred_check
      %p375 = pneg %p374
    $region62: #{bottleneck_forward.1} parent=5 // pred_check_branch
      %377 = sbr.rel (%p375) target = $region64
    $region63: #{bottleneck_forward.1} parent=5 // pred_region
      // Predicated region
      $region65: #{bottleneck_forward.1} parent=63 // pred_check
        %p378 = pneg %p39
      $region66: #{bottleneck_forward.1} parent=63 // pred_check_branch
        %380 = sbr.rel (%p378) target = $region68
      $region67: #{bottleneck_forward.1} parent=63 // pred_region
        %p381 = scmp.lt.s32.totalorder %s19, 1
        %s382 = scalar_select %p381, %s19, 1
        %s383 = smul.addr %s382, 32
        %s384 = smul.addr %s383, 8
        %s385 = scalar_lea.vmem %s0, %s384
      $region68: #{bottleneck_forward.1} parent=63 // pred_fallthru
        _
    $region64: #{bottleneck_forward.1} parent=5 // pred_fallthru
      _
    %p386 = scmp.le.s32.totalorder 1, %s19
    %p387 = scmp.lt.s32.totalorder %s19, 3
    %p388 = pnand %p386, %p387
    %p389 = pneg %p388
    // Predicated region
    $region69: #{bottleneck_forward.1} parent=5 // pred_check
      _
    $region70: #{bottleneck_forward.1} parent=5 // pred_check_branch
      %391 = sbr.rel (%p388) target = $region72
    $region71: #{bottleneck_forward.1} parent=5 // pred_region
      %s392 = ssub.s32 %s19, 1
      %p393 = scmp.lt.s32.totalorder %s24, 1
      %s394 = scalar_select %p393, %s24, 1
      %s395 = smul.addr %s394, 32
      %s396 = smul.addr %s395, 8
      %s397 = scalar_lea.vmem %s0, %s396
      %p398 = pneg %p45
      %p399 = pneg %p42
      %p400 = pneg %p66
      %p401 = pneg %p63
      %p402 = pneg %p87
      %p403 = pneg %p84
      %p404 = pneg %p108
      %p405 = pneg %p105
      %p406 = pneg %p129
      %p407 = pneg %p126
      %p408 = pneg %p150
      %p409 = pneg %p147
      %p410 = pneg %p171
      %p411 = pneg %p168
      %p412 = pneg %p192
      %p413 = pneg %p189
      %p414 = pneg %p213
      %p415 = pneg %p210
      %p416 = pneg %p234
      %p417 = pneg %p231
      %p418 = pneg %p255
      %p419 = pneg %p252
      %p420 = pneg %p276
      %p421 = pneg %p273
      %p422 = pneg %p297
      %p423 = pneg %p294
      %p424 = pneg %p323
      %p425 = pneg %p320
      %p426 = scmp.lt.s32.totalorder %s24, 1
      %s427 = scalar_select %p426, %s24, 1
      %s428 = smul.addr %s427, 32
      %s429 = smul.addr %s428, 8
      %s430 = scalar_lea.vmem %s13, %s429
      %p431 = scmp.lt.s32.totalorder %s24, 1
      %s432 = scalar_select %p431, %s24, 1
      %s433 = smul.addr %s432, 32
      %s434 = smul.addr %s433, 8
      %s435 = scalar_lea.vmem %s0, %s434
      %p436 = scmp.lt.s32.totalorder %s24, 1
      %s437 = scalar_select %p436, %s24, 1
      %s438 = smul.addr %s437, 32
      %s439 = smul.addr %s438, 8
      %s440 = scalar_lea.vmem %s13, %s439
      %v444 = vld [vmem:[%s435] sm:$0xff]
      %v445 = vld [vmem:[%s435 + $0x8] sm:$0xff]
      %v446 = vld [vmem:[%s435 + $0x10] sm:$0xff]
      %v447 = vld [vmem:[%s435 + $0x18] sm:$0xff]
      %v448 = vld [vmem:[%s435 + $0x20] sm:$0xff]
      %v449 = vld [vmem:[%s435 + $0x28] sm:$0xff]
      %v450 = vld [vmem:[%s435 + $0x30] sm:$0xff]
      %v451 = vld [vmem:[%s435 + $0x38] sm:$0xff]
      %v452 = vld [vmem:[%s435 + $0x40] sm:$0xff]
      %v453 = vld [vmem:[%s435 + $0x48] sm:$0xff]
      %v454 = vld [vmem:[%s435 + $0x50] sm:$0xff]
      %v455 = vld [vmem:[%s435 + $0x58] sm:$0xff]
      %v456 = vld [vmem:[%s435 + $0x60] sm:$0xff]
      %v457 = vld [vmem:[%s435 + $0x68] sm:$0xff]
      %v458 = vld [vmem:[%s435 + $0x70] sm:$0xff]
      %v459 = vld [vmem:[%s435 + $0x78] sm:$0xff]
      %v460 = vld [vmem:[%s435 + $0x80] sm:$0xff]
      %v461 = vld [vmem:[%s435 + $0x88] sm:$0xff]
      %v462 = vld [vmem:[%s435 + $0x90] sm:$0xff]
      %v463 = vld [vmem:[%s435 + $0x98] sm:$0xff]
      %v464 = vld [vmem:[%s435 + $0xa0] sm:$0xff]
      %v465 = vld [vmem:[%s435 + $0xa8] sm:$0xff]
      %v466 = vld [vmem:[%s435 + $0xb0] sm:$0xff]
      %v467 = vld [vmem:[%s435 + $0xb8] sm:$0xff]
      %v468 = vld [vmem:[%s435 + $0xc0] sm:$0xff]
      %v469 = vld [vmem:[%s435 + $0xc8] sm:$0xff]
      %v470 = vld [vmem:[%s435 + $0xd0] sm:$0xff]
      %v471 = vld [vmem:[%s435 + $0xd8] sm:$0xff]
      %v472 = vld [vmem:[%s435 + $0xe0] sm:$0xff]
      %v473 = vld [vmem:[%s435 + $0xe8] sm:$0xff]
      %v474 = vld [vmem:[%s435 + $0xf0] sm:$0xff]
      %v475 = vld [vmem:[%s435 + $0xf8] sm:$0xff]
      %v476 = vld [vmem:[%s1] sm:$0x1]
      %v478 = vlaneseq
      %v479 = vshrl.u32 %v478, 7
      %v480 = vsub.s32 0, %v479
      %v481 = vrot.slane %v476, %v480
      %v483 = vmul.f32 %v444, %v481
      %v484 = vmul.f32 %v445, %v481
      %v485 = vmul.f32 %v446, %v481
      %v486 = vmul.f32 %v447, %v481
      %v487 = vmul.f32 %v448, %v481
      %v488 = vmul.f32 %v449, %v481
      %v489 = vmul.f32 %v450, %v481
      %v490 = vmul.f32 %v451, %v481
      %v491 = vmul.f32 %v452, %v481
      %v492 = vmul.f32 %v453, %v481
      %v493 = vmul.f32 %v454, %v481
      %v494 = vmul.f32 %v455, %v481
      %v495 = vmul.f32 %v456, %v481
      %v496 = vmul.f32 %v457, %v481
      %v497 = vmul.f32 %v458, %v481
      %v498 = vmul.f32 %v459, %v481
      %v499 = vmul.f32 %v460, %v481
      %v500 = vmul.f32 %v461, %v481
      %v501 = vmul.f32 %v462, %v481
      %v502 = vmul.f32 %v463, %v481
      %v503 = vmul.f32 %v464, %v481
      %v504 = vmul.f32 %v465, %v481
      %v505 = vmul.f32 %v466, %v481
      %v506 = vmul.f32 %v467, %v481
      %v507 = vmul.f32 %v468, %v481
      %v508 = vmul.f32 %v469, %v481
      %v509 = vmul.f32 %v470, %v481
      %v510 = vmul.f32 %v471, %v481
      %v511 = vmul.f32 %v472, %v481
      %v512 = vmul.f32 %v473, %v481
      %v513 = vmul.f32 %v474, %v481
      %v514 = vmul.f32 %v475, %v481
      %v515 = vld [vmem:[%s2] sm:$0x1]
      %v517 = vlaneseq
      %v518 = vshrl.u32 %v517, 7
      %v519 = vsub.s32 0, %v518
      %v520 = vrot.slane %v515, %v519
      %v522 = vadd.f32 %v483, %v520
      %v523 = vadd.f32 %v484, %v520
      %v524 = vadd.f32 %v485, %v520
      %v525 = vadd.f32 %v486, %v520
      %v526 = vadd.f32 %v487, %v520
      %v527 = vadd.f32 %v488, %v520
      %v528 = vadd.f32 %v489, %v520
      %v529 = vadd.f32 %v490, %v520
      %v530 = vadd.f32 %v491, %v520
      %v531 = vadd.f32 %v492, %v520
      %v532 = vadd.f32 %v493, %v520
      %v533 = vadd.f32 %v494, %v520
      %v534 = vadd.f32 %v495, %v520
      %v535 = vadd.f32 %v496, %v520
      %v536 = vadd.f32 %v497, %v520
      %v537 = vadd.f32 %v498, %v520
      %v538 = vadd.f32 %v499, %v520
      %v539 = vadd.f32 %v500, %v520
      %v540 = vadd.f32 %v501, %v520
      %v541 = vadd.f32 %v502, %v520
      %v542 = vadd.f32 %v503, %v520
      %v543 = vadd.f32 %v504, %v520
      %v544 = vadd.f32 %v505, %v520
      %v545 = vadd.f32 %v506, %v520
      %v546 = vadd.f32 %v507, %v520
      %v547 = vadd.f32 %v508, %v520
      %v548 = vadd.f32 %v509, %v520
      %v549 = vadd.f32 %v510, %v520
      %v550 = vadd.f32 %v511, %v520
      %v551 = vadd.f32 %v512, %v520
      %v552 = vadd.f32 %v513, %v520
      %v553 = vadd.f32 %v514, %v520
      %v554 = vmax.f32 %v522, 0.0
      %v555 = vmax.f32 %v523, 0.0
      %v556 = vmax.f32 %v524, 0.0
      %v557 = vmax.f32 %v525, 0.0
      %v558 = vmax.f32 %v526, 0.0
      %v559 = vmax.f32 %v527, 0.0
      %v560 = vmax.f32 %v528, 0.0
      %v561 = vmax.f32 %v529, 0.0
      %v562 = vmax.f32 %v530, 0.0
      %v563 = vmax.f32 %v531, 0.0
      %v564 = vmax.f32 %v532, 0.0
      %v565 = vmax.f32 %v533, 0.0
      %v566 = vmax.f32 %v534, 0.0
      %v567 = vmax.f32 %v535, 0.0
      %v568 = vmax.f32 %v536, 0.0
      %v569 = vmax.f32 %v537, 0.0
      %v570 = vmax.f32 %v538, 0.0
      %v571 = vmax.f32 %v539, 0.0
      %v572 = vmax.f32 %v540, 0.0
      %v573 = vmax.f32 %v541, 0.0
      %v574 = vmax.f32 %v542, 0.0
      %v575 = vmax.f32 %v543, 0.0
      %v576 = vmax.f32 %v544, 0.0
      %v577 = vmax.f32 %v545, 0.0
      %v578 = vmax.f32 %v546, 0.0
      %v579 = vmax.f32 %v547, 0.0
      %v580 = vmax.f32 %v548, 0.0
      %v581 = vmax.f32 %v549, 0.0
      %v582 = vmax.f32 %v550, 0.0
      %v583 = vmax.f32 %v551, 0.0
      %v584 = vmax.f32 %v552, 0.0
      %v585 = vmax.f32 %v553, 0.0
      %v586 = vpack.c.bf16 %v555, %v554
      %v587 = vpack.c.bf16 %v557, %v556
      %v588 = vpack.c.bf16 %v559, %v558
      %v589 = vpack.c.bf16 %v561, %v560
      %v590 = vpack.c.bf16 %v563, %v562
      %v591 = vpack.c.bf16 %v565, %v564
      %v592 = vpack.c.bf16 %v567, %v566
      %v593 = vpack.c.bf16 %v569, %v568
      %v594 = vpack.c.bf16 %v571, %v570
      %v595 = vpack.c.bf16 %v573, %v572
      %v596 = vpack.c.bf16 %v575, %v574
      %v597 = vpack.c.bf16 %v577, %v576
      %v598 = vpack.c.bf16 %v579, %v578
      %v599 = vpack.c.bf16 %v581, %v580
      %v600 = vpack.c.bf16 %v583, %v582
      %v601 = vpack.c.bf16 %v585, %v584
      %v602 = vld [vmem:[%s3] sm:$0xf]
      %v603 = vld [vmem:[%s3 + $0x4] sm:$0xf]
      %v604 = vld [vmem:[%s3 + $0x8] sm:$0xf]
      %v605 = vld [vmem:[%s3 + $0xc] sm:$0xf]
      %v606 = vld [vmem:[%s3 + $0x10] sm:$0xf]
      %v607 = vld [vmem:[%s3 + $0x14] sm:$0xf]
      %v608 = vld [vmem:[%s3 + $0x18] sm:$0xf]
      %v609 = vld [vmem:[%s3 + $0x1c] sm:$0xf]
      %v610 = vld [vmem:[%s3 + $0x20] sm:$0xf]
      %v611 = vld [vmem:[%s3 + $0x24] sm:$0xf]
      %v612 = vld [vmem:[%s3 + $0x28] sm:$0xf]
      %v613 = vld [vmem:[%s3 + $0x2c] sm:$0xf]
      %v614 = vld [vmem:[%s3 + $0x30] sm:$0xf]
      %v615 = vld [vmem:[%s3 + $0x34] sm:$0xf]
      %v616 = vld [vmem:[%s3 + $0x38] sm:$0xf]
      %v617 = vld [vmem:[%s3 + $0x3c] sm:$0xf]
      %v618 = vld [vmem:[%s4] sm:$0x1]
      %v620 = vlaneseq
      %v621 = vshrl.u32 %v620, 7
      %v622 = vsub.s32 0, %v621
      %v623 = vrot.slane %v618, %v622
      %v641 = vunpack.c.l.b16 %v602
      %v642 = vunpack.c.l.b16 %v603
      %v643 = vunpack.c.l.b16 %v604
      %v644 = vunpack.c.l.b16 %v605
      %v645 = vunpack.c.l.b16 %v606
      %v646 = vunpack.c.l.b16 %v607
      %v647 = vunpack.c.l.b16 %v608
      %v648 = vunpack.c.l.b16 %v609
      %v649 = vunpack.c.l.b16 %v610
      %v650 = vunpack.c.l.b16 %v611
      %v651 = vunpack.c.l.b16 %v612
      %v652 = vunpack.c.l.b16 %v613
      %v653 = vunpack.c.l.b16 %v614
      %v654 = vunpack.c.l.b16 %v615
      %v655 = vunpack.c.l.b16 %v616
      %v656 = vunpack.c.l.b16 %v617
      %v657 = vpack.c.b16 %v642, %v641
      %v658 = vpack.c.b16 %v644, %v643
      %v659 = vpack.c.b16 %v646, %v645
      %v660 = vpack.c.b16 %v648, %v647
      %v661 = vpack.c.b16 %v650, %v649
      %v662 = vpack.c.b16 %v652, %v651
      %v663 = vpack.c.b16 %v654, %v653
      %v664 = vpack.c.b16 %v656, %v655
      %673 = vmatprep.subr.bf16.mxu0 0
      %674 = vmatpush1.bf16.msra.mxu0 %v664
      %675 = vmatprep.subr.bf16.mxu0 0
      %676 = vmatpush1.bf16.msra.mxu0 %v663
      %677 = vmatprep.subr.bf16.mxu0 0
      %678 = vmatpush1.bf16.msra.mxu0 %v662
      %679 = vmatprep.subr.bf16.mxu0 0
      %680 = vmatpush1.bf16.msra.mxu0 %v661
      %681 = vmatprep.subr.bf16.mxu0 0
      %682 = vmatpush1.bf16.msra.mxu0 %v660
      %683 = vmatprep.subr.bf16.mxu0 0
      %684 = vmatpush1.bf16.msra.mxu0 %v659
      %685 = vmatprep.subr.bf16.mxu0 0
      %686 = vmatpush1.bf16.msra.mxu0 %v658
      %687 = vmatprep.subr.bf16.mxu0 0
      %688 = vmatpush1.bf16.msra.mxu0 %v657
      %689 = vmatprep.subr.bf16.mxu0 0
      %690 = vmatpush2.bf16.msra.mxu0 0
      %691 = vmatprep.subr.bf16.mxu0 0
      %692 = vmatpush2.bf16.msra.mxu0 0
      %693 = vmatprep.subr.bf16.mxu0 0
      %694 = vmatpush2.bf16.msra.mxu0 0
      %695 = vmatprep.subr.bf16.mxu0 0
      %696 = vmatpush2.bf16.msra.mxu0 0
      %697 = vmatprep.subr.bf16.mxu0 0
      %698 = vmatpush2.bf16.msra.mxu0 0
      %699 = vmatprep.subr.bf16.mxu0 0
      %700 = vmatpush2.bf16.msra.mxu0 0
      %701 = vmatprep.subr.bf16.mxu0 0
      %702 = vmatpush2.bf16.msra.mxu0 0
      %703 = vmatprep.subr.bf16.mxu0 0
      %704 = vmatpush2.bf16.msra.mxu0 0
      %705 = vmatprep.mubr.bf16.mxu0 0
      %706 = vmatmul.mubr.bf16.gmra.mxu0 %v586
      %v707 = vpop.f32.mrf.mxu0
      %v708 = vadd.f32 %v623, %v707
      %v709 = vpop.f32.mrf.mxu0
      %v710 = vpop.f32.mrf.mxu0
      %v711 = vadd.f32 %v623, %v710
      %v712 = vpop.f32.mrf.mxu0
      %713 = vmatprep.mubr.bf16.mxu0 0
      %714 = vmatmul.mubr.bf16.gmra.mxu0 %v587
      %v715 = vpop.f32.mrf.mxu0
      %v716 = vadd.f32 %v623, %v715
      %v717 = vpop.f32.mrf.mxu0
      %v718 = vpop.f32.mrf.mxu0
      %v719 = vadd.f32 %v623, %v718
      %v720 = vpop.f32.mrf.mxu0
      %721 = vmatprep.mubr.bf16.mxu0 0
      %722 = vmatmul.mubr.bf16.gmra.mxu0 %v588
      %v723 = vpop.f32.mrf.mxu0
      %v724 = vadd.f32 %v623, %v723
      %v725 = vpop.f32.mrf.mxu0
      %v726 = vpop.f32.mrf.mxu0
      %v727 = vadd.f32 %v623, %v726
      %v728 = vpop.f32.mrf.mxu0
      %729 = vmatprep.mubr.bf16.mxu0 0
      %730 = vmatmul.mubr.bf16.gmra.mxu0 %v589
      %v731 = vpop.f32.mrf.mxu0
      %v732 = vadd.f32 %v623, %v731
      %v733 = vpop.f32.mrf.mxu0
      %v734 = vpop.f32.mrf.mxu0
      %v735 = vadd.f32 %v623, %v734
      %v736 = vpop.f32.mrf.mxu0
      %737 = vmatprep.mubr.bf16.mxu0 0
      %738 = vmatmul.mubr.bf16.gmra.mxu0 %v590
      %v739 = vpop.f32.mrf.mxu0
      %v740 = vadd.f32 %v623, %v739
      %v741 = vpop.f32.mrf.mxu0
      %v742 = vpop.f32.mrf.mxu0
      %v743 = vadd.f32 %v623, %v742
      %v744 = vpop.f32.mrf.mxu0
      %745 = vmatprep.mubr.bf16.mxu0 0
      %746 = vmatmul.mubr.bf16.gmra.mxu0 %v591
      %v747 = vpop.f32.mrf.mxu0
      %v748 = vadd.f32 %v623, %v747
      %v749 = vpop.f32.mrf.mxu0
      %v750 = vpop.f32.mrf.mxu0
      %v751 = vadd.f32 %v623, %v750
      %v752 = vpop.f32.mrf.mxu0
      %753 = vmatprep.mubr.bf16.mxu0 0
      %754 = vmatmul.mubr.bf16.gmra.mxu0 %v592
      %v755 = vpop.f32.mrf.mxu0
      %v756 = vadd.f32 %v623, %v755
      %v757 = vpop.f32.mrf.mxu0
      %v758 = vpop.f32.mrf.mxu0
      %v759 = vadd.f32 %v623, %v758
      %v760 = vpop.f32.mrf.mxu0
      %761 = vmatprep.mubr.bf16.mxu0 0
      %762 = vmatmul.mubr.bf16.gmra.mxu0 %v593
      %v763 = vpop.f32.mrf.mxu0
      %v764 = vadd.f32 %v623, %v763
      %v765 = vpop.f32.mrf.mxu0
      %v766 = vpop.f32.mrf.mxu0
      %v767 = vadd.f32 %v623, %v766
      %v768 = vpop.f32.mrf.mxu0
      %769 = vmatprep.mubr.bf16.mxu0 0
      %770 = vmatmul.mubr.bf16.gmra.mxu0 %v594
      %v771 = vpop.f32.mrf.mxu0
      %v772 = vadd.f32 %v623, %v771
      %v773 = vpop.f32.mrf.mxu0
      %v774 = vpop.f32.mrf.mxu0
      %v775 = vadd.f32 %v623, %v774
      %v776 = vpop.f32.mrf.mxu0
      %777 = vmatprep.mubr.bf16.mxu0 0
      %778 = vmatmul.mubr.bf16.gmra.mxu0 %v595
      %v779 = vpop.f32.mrf.mxu0
      %v780 = vadd.f32 %v623, %v779
      %v781 = vpop.f32.mrf.mxu0
      %v782 = vpop.f32.mrf.mxu0
      %v783 = vadd.f32 %v623, %v782
      %v784 = vpop.f32.mrf.mxu0
      %785 = vmatprep.mubr.bf16.mxu0 0
      %786 = vmatmul.mubr.bf16.gmra.mxu0 %v596
      %v787 = vpop.f32.mrf.mxu0
      %v788 = vadd.f32 %v623, %v787
      %v789 = vpop.f32.mrf.mxu0
      %v790 = vpop.f32.mrf.mxu0
      %v791 = vadd.f32 %v623, %v790
      %v792 = vpop.f32.mrf.mxu0
      %793 = vmatprep.mubr.bf16.mxu0 0
      %794 = vmatmul.mubr.bf16.gmra.mxu0 %v597
      %v795 = vpop.f32.mrf.mxu0
      %v796 = vadd.f32 %v623, %v795
      %v797 = vpop.f32.mrf.mxu0
      %v798 = vpop.f32.mrf.mxu0
      %v799 = vadd.f32 %v623, %v798
      %v800 = vpop.f32.mrf.mxu0
      %801 = vmatprep.mubr.bf16.mxu0 0
      %802 = vmatmul.mubr.bf16.gmra.mxu0 %v598
      %v803 = vpop.f32.mrf.mxu0
      %v804 = vadd.f32 %v623, %v803
      %v805 = vpop.f32.mrf.mxu0
      %v806 = vpop.f32.mrf.mxu0
      %v807 = vadd.f32 %v623, %v806
      %v808 = vpop.f32.mrf.mxu0
      %809 = vmatprep.mubr.bf16.mxu0 0
      %810 = vmatmul.mubr.bf16.gmra.mxu0 %v599
      %v811 = vpop.f32.mrf.mxu0
      %v812 = vadd.f32 %v623, %v811
      %v813 = vpop.f32.mrf.mxu0
      %v814 = vpop.f32.mrf.mxu0
      %v815 = vadd.f32 %v623, %v814
      %v816 = vpop.f32.mrf.mxu0
      %817 = vmatprep.mubr.bf16.mxu0 0
      %818 = vmatmul.mubr.bf16.gmra.mxu0 %v600
      %v819 = vpop.f32.mrf.mxu0
      %v820 = vadd.f32 %v623, %v819
      %v821 = vpop.f32.mrf.mxu0
      %v822 = vpop.f32.mrf.mxu0
      %v823 = vadd.f32 %v623, %v822
      %v824 = vpop.f32.mrf.mxu0
      %825 = vmatprep.mubr.bf16.mxu0 0
      %826 = vmatmul.mubr.bf16.gmra.mxu0 %v601
      %v827 = vpop.f32.mrf.mxu0
      %v828 = vadd.f32 %v623, %v827
      %v829 = vpop.f32.mrf.mxu0
      %v830 = vpop.f32.mrf.mxu0
      %v831 = vadd.f32 %v623, %v830
      %v832 = vpop.f32.mrf.mxu0
      %833 = vdwg.mxu0
      %v834 = vld [vmem:[%s5] sm:$0x1]
      %v836 = vlaneseq
      %v837 = vshrl.u32 %v836, 7
      %v838 = vsub.s32 0, %v837
      %v839 = vrot.slane %v834, %v838
      %v841 = vmul.f32 %v708, %v839
      %v842 = vmul.f32 %v711, %v839
      %v843 = vmul.f32 %v716, %v839
      %v844 = vmul.f32 %v719, %v839
      %v845 = vmul.f32 %v724, %v839
      %v846 = vmul.f32 %v727, %v839
      %v847 = vmul.f32 %v732, %v839
      %v848 = vmul.f32 %v735, %v839
      %v849 = vmul.f32 %v740, %v839
      %v850 = vmul.f32 %v743, %v839
      %v851 = vmul.f32 %v748, %v839
      %v852 = vmul.f32 %v751, %v839
      %v853 = vmul.f32 %v756, %v839
      %v854 = vmul.f32 %v759, %v839
      %v855 = vmul.f32 %v764, %v839
      %v856 = vmul.f32 %v767, %v839
      %v857 = vmul.f32 %v772, %v839
      %v858 = vmul.f32 %v775, %v839
      %v859 = vmul.f32 %v780, %v839
      %v860 = vmul.f32 %v783, %v839
      %v861 = vmul.f32 %v788, %v839
      %v862 = vmul.f32 %v791, %v839
      %v863 = vmul.f32 %v796, %v839
      %v864 = vmul.f32 %v799, %v839
      %v865 = vmul.f32 %v804, %v839
      %v866 = vmul.f32 %v807, %v839
      %v867 = vmul.f32 %v812, %v839
      %v868 = vmul.f32 %v815, %v839
      %v869 = vmul.f32 %v820, %v839
      %v870 = vmul.f32 %v823, %v839
      %v871 = vmul.f32 %v828, %v839
      %v872 = vmul.f32 %v831, %v839
      %v873 = vld [vmem:[%s6] sm:$0x1]
      %v875 = vlaneseq
      %v876 = vshrl.u32 %v875, 7
      %v877 = vsub.s32 0, %v876
      %v878 = vrot.slane %v873, %v877
      %v880 = vadd.f32 %v841, %v878
      %v881 = vadd.f32 %v842, %v878
      %v882 = vadd.f32 %v843, %v878
      %v883 = vadd.f32 %v844, %v878
      %v884 = vadd.f32 %v845, %v878
      %v885 = vadd.f32 %v846, %v878
      %v886 = vadd.f32 %v847, %v878
      %v887 = vadd.f32 %v848, %v878
      %v888 = vadd.f32 %v849, %v878
      %v889 = vadd.f32 %v850, %v878
      %v890 = vadd.f32 %v851, %v878
      %v891 = vadd.f32 %v852, %v878
      %v892 = vadd.f32 %v853, %v878
      %v893 = vadd.f32 %v854, %v878
      %v894 = vadd.f32 %v855, %v878
      %v895 = vadd.f32 %v856, %v878
      %v896 = vadd.f32 %v857, %v878
      %v897 = vadd.f32 %v858, %v878
      %v898 = vadd.f32 %v859, %v878
      %v899 = vadd.f32 %v860, %v878
      %v900 = vadd.f32 %v861, %v878
      %v901 = vadd.f32 %v862, %v878
      %v902 = vadd.f32 %v863, %v878
      %v903 = vadd.f32 %v864, %v878
      %v904 = vadd.f32 %v865, %v878
      %v905 = vadd.f32 %v866, %v878
      %v906 = vadd.f32 %v867, %v878
      %v907 = vadd.f32 %v868, %v878
      %v908 = vadd.f32 %v869, %v878
      %v909 = vadd.f32 %v870, %v878
      %v910 = vadd.f32 %v871, %v878
      %v911 = vadd.f32 %v872, %v878
      %v912 = vmax.f32 %v880, 0.0
      %v913 = vmax.f32 %v881, 0.0
      %v914 = vmax.f32 %v882, 0.0
      %v915 = vmax.f32 %v883, 0.0
      %v916 = vmax.f32 %v884, 0.0
      %v917 = vmax.f32 %v885, 0.0
      %v918 = vmax.f32 %v886, 0.0
      %v919 = vmax.f32 %v887, 0.0
      %v920 = vmax.f32 %v888, 0.0
      %v921 = vmax.f32 %v889, 0.0
      %v922 = vmax.f32 %v890, 0.0
      %v923 = vmax.f32 %v891, 0.0
      %v924 = vmax.f32 %v892, 0.0
      %v925 = vmax.f32 %v893, 0.0
      %v926 = vmax.f32 %v894, 0.0
      %v927 = vmax.f32 %v895, 0.0
      %v928 = vmax.f32 %v896, 0.0
      %v929 = vmax.f32 %v897, 0.0
      %v930 = vmax.f32 %v898, 0.0
      %v931 = vmax.f32 %v899, 0.0
      %v932 = vmax.f32 %v900, 0.0
      %v933 = vmax.f32 %v901, 0.0
      %v934 = vmax.f32 %v902, 0.0
      %v935 = vmax.f32 %v903, 0.0
      %v936 = vmax.f32 %v904, 0.0
      %v937 = vmax.f32 %v905, 0.0
      %v938 = vmax.f32 %v906, 0.0
      %v939 = vmax.f32 %v907, 0.0
      %v940 = vmax.f32 %v908, 0.0
      %v941 = vmax.f32 %v909, 0.0
      %v942 = vmax.f32 %v910, 0.0
      %v943 = vmax.f32 %v911, 0.0
      %v944 = vpack.c.bf16 %v913, %v912
      %v945 = vpack.c.bf16 %v915, %v914
      %v946 = vpack.c.bf16 %v917, %v916
      %v947 = vpack.c.bf16 %v919, %v918
      %v948 = vpack.c.bf16 %v921, %v920
      %v949 = vpack.c.bf16 %v923, %v922
      %v950 = vpack.c.bf16 %v925, %v924
      %v951 = vpack.c.bf16 %v927, %v926
      %v952 = vpack.c.bf16 %v929, %v928
      %v953 = vpack.c.bf16 %v931, %v930
      %v954 = vpack.c.bf16 %v933, %v932
      %v955 = vpack.c.bf16 %v935, %v934
      %v956 = vpack.c.bf16 %v937, %v936
      %v957 = vpack.c.bf16 %v939, %v938
      %v958 = vpack.c.bf16 %v941, %v940
      %v959 = vpack.c.bf16 %v943, %v942
      %960 = vst [vmem:[#allocation2] sm:$0xf] 0
      %961 = vst [vmem:[#allocation2 + $0x4] sm:$0xf] 0
      %962 = vst [vmem:[#allocation2 + $0x8] sm:$0xf] 0
      %963 = vst [vmem:[#allocation2 + $0xc] sm:$0xf] 0
      %964 = vst [vmem:[#allocation2 + $0x90] sm:$0xf] 0
      %965 = vst [vmem:[#allocation2 + $0x94] sm:$0xf] 0
      %966 = vst [vmem:[#allocation2 + $0x98] sm:$0xf] 0
      %967 = vst [vmem:[#allocation2 + $0x9c] sm:$0xf] 0
      %v984 = vunpack.c.l.b16 %v944
      %v985 = vunpack.c.h.b16 %v944
      %v986 = vunpack.c.l.b16 %v945
      %v987 = vunpack.c.h.b16 %v945
      %v988 = vunpack.c.l.b16 %v946
      %v989 = vunpack.c.h.b16 %v946
      %v990 = vunpack.c.l.b16 %v947
      %v991 = vunpack.c.h.b16 %v947
      %v992 = vunpack.c.l.b16 %v948
      %v993 = vunpack.c.h.b16 %v948
      %v994 = vunpack.c.l.b16 %v949
      %v995 = vunpack.c.h.b16 %v949
      %v996 = vunpack.c.l.b16 %v950
      %v997 = vunpack.c.h.b16 %v950
      %v998 = vunpack.c.l.b16 %v951
      %v999 = vunpack.c.h.b16 %v951
      %v1000 = vunpack.c.l.b16 %v952
      %v1001 = vunpack.c.h.b16 %v952
      %v1002 = vunpack.c.l.b16 %v953
      %v1003 = vunpack.c.h.b16 %v953
      %v1004 = vunpack.c.l.b16 %v954
      %v1005 = vunpack.c.h.b16 %v954
      %v1006 = vunpack.c.l.b16 %v955
      %v1007 = vunpack.c.h.b16 %v955
      %v1008 = vunpack.c.l.b16 %v956
      %v1009 = vunpack.c.h.b16 %v956
      %v1010 = vunpack.c.l.b16 %v957
      %v1011 = vunpack.c.h.b16 %v957
      %v1012 = vunpack.c.l.b16 %v958
      %v1013 = vunpack.c.h.b16 %v958
      %v1014 = vunpack.c.l.b16 %v959
      %v1015 = vunpack.c.h.b16 %v959
      %v1016 = vpack.c.b16 %v984, %v984
      %v1017 = vpack.c.b16 %v985, %v985
      %v1018 = vpack.c.b16 %v986, %v986
      %v1019 = vpack.c.b16 %v987, %v987
      %v1020 = vpack.c.b16 %v988, %v988
      %v1021 = vpack.c.b16 %v989, %v989
      %v1022 = vpack.c.b16 %v990, %v990
      %v1023 = vpack.c.b16 %v991, %v991
      %v1024 = vpack.c.b16 %v992, %v992
      %v1025 = vpack.c.b16 %v993, %v993
      %v1026 = vpack.c.b16 %v994, %v994
      %v1027 = vpack.c.b16 %v995, %v995
      %v1028 = vpack.c.b16 %v996, %v996
      %v1029 = vpack.c.b16 %v997, %v997
      %v1030 = vpack.c.b16 %v998, %v998
      %v1031 = vpack.c.b16 %v999, %v999
      %v1032 = vpack.c.b16 %v1000, %v1000
      %v1033 = vpack.c.b16 %v1001, %v1001
      %v1034 = vpack.c.b16 %v1002, %v1002
      %v1035 = vpack.c.b16 %v1003, %v1003
      %v1036 = vpack.c.b16 %v1004, %v1004
      %v1037 = vpack.c.b16 %v1005, %v1005
      %v1038 = vpack.c.b16 %v1006, %v1006
      %v1039 = vpack.c.b16 %v1007, %v1007
      %v1040 = vpack.c.b16 %v1008, %v1008
      %v1041 = vpack.c.b16 %v1009, %v1009
      %v1042 = vpack.c.b16 %v1010, %v1010
      %v1043 = vpack.c.b16 %v1011, %v1011
      %v1044 = vpack.c.b16 %v1012, %v1012
      %v1045 = vpack.c.b16 %v1013, %v1013
      %v1046 = vpack.c.b16 %v1014, %v1014
      %v1047 = vpack.c.b16 %v1015, %v1015
      %1080 = vst [vmem:[#allocation2 + $0x10] sm:$0xf] %v1016
      %1081 = vst [vmem:[#allocation2 + $0x14] sm:$0xf] %v1017
      %1082 = vst [vmem:[#allocation2 + $0x18] sm:$0xf] %v1018
      %1083 = vst [vmem:[#allocation2 + $0x1c] sm:$0xf] %v1019
      %1084 = vst [vmem:[#allocation2 + $0x20] sm:$0xf] %v1020
      %1085 = vst [vmem:[#allocation2 + $0x24] sm:$0xf] %v1021
      %1086 = vst [vmem:[#allocation2 + $0x28] sm:$0xf] %v1022
      %1087 = vst [vmem:[#allocation2 + $0x2c] sm:$0xf] %v1023
      %1088 = vst [vmem:[#allocation2 + $0x30] sm:$0xf] %v1024
      %1089 = vst [vmem:[#allocation2 + $0x34] sm:$0xf] %v1025
      %1090 = vst [vmem:[#allocation2 + $0x38] sm:$0xf] %v1026
      %1091 = vst [vmem:[#allocation2 + $0x3c] sm:$0xf] %v1027
      %1092 = vst [vmem:[#allocation2 + $0x40] sm:$0xf] %v1028
      %1093 = vst [vmem:[#allocation2 + $0x44] sm:$0xf] %v1029
      %1094 = vst [vmem:[#allocation2 + $0x48] sm:$0xf] %v1030
      %1095 = vst [vmem:[#allocation2 + $0x4c] sm:$0xf] %v1031
      %1096 = vst [vmem:[#allocation2 + $0x50] sm:$0xf] %v1032
      %1097 = vst [vmem:[#allocation2 + $0x54] sm:$0xf] %v1033
      %1098 = vst [vmem:[#allocation2 + $0x58] sm:$0xf] %v1034
      %1099 = vst [vmem:[#allocation2 + $0x5c] sm:$0xf] %v1035
      %1100 = vst [vmem:[#allocation2 + $0x60] sm:$0xf] %v1036
      %1101 = vst [vmem:[#allocation2 + $0x64] sm:$0xf] %v1037
      %1102 = vst [vmem:[#allocation2 + $0x68] sm:$0xf] %v1038
      %1103 = vst [vmem:[#allocation2 + $0x6c] sm:$0xf] %v1039
      %1104 = vst [vmem:[#allocation2 + $0x70] sm:$0xf] %v1040
      %1105 = vst [vmem:[#allocation2 + $0x74] sm:$0xf] %v1041
      %1106 = vst [vmem:[#allocation2 + $0x78] sm:$0xf] %v1042
      %1107 = vst [vmem:[#allocation2 + $0x7c] sm:$0xf] %v1043
      %1108 = vst [vmem:[#allocation2 + $0x80] sm:$0xf] %v1044
      %1109 = vst [vmem:[#allocation2 + $0x84] sm:$0xf] %v1045
      %1110 = vst [vmem:[#allocation2 + $0x88] sm:$0xf] %v1046
      %1111 = vst [vmem:[#allocation2 + $0x8c] sm:$0xf] %v1047
      %v1112 = vlaneseq
      %v1113 = vshrl.u32 %v1112, 7
      %v1114 = vadd.s32 %v1113, 8
      %v1115 = vadd.s32 %v1113, 16
      %v1116 = vadd.s32 %v1113, 24
      %v1117 = vadd.s32 %v1113, 32
      %v1118 = vadd.s32 %v1113, 40
      %v1119 = vadd.s32 %v1113, 48
      %v1120 = vadd.s32 %v1113, 56
      %v1121 = vadd.s32 %v1113, 64
      %v1122 = vadd.s32 %v1113, 72
      %v1123 = vadd.s32 %v1113, 80
      %v1124 = vadd.s32 %v1113, 88
      %v1125 = vadd.s32 %v1113, 96
      %v1126 = vadd.s32 %v1113, 104
      %v1127 = vadd.s32 %v1113, 112
      %v1128 = vadd.s32 %v1113, 120
      %v1129 = vadd.s32 %v1113, 128
      %v1130 = vadd.s32 %v1113, 136
      %v1131 = vadd.s32 %v1113, 144
      %v1132 = vadd.s32 %v1113, 152
      %v1133 = vadd.s32 %v1113, 160
      %v1134 = vadd.s32 %v1113, 168
      %v1135 = vadd.s32 %v1113, 176
      %v1136 = vadd.s32 %v1113, 184
      %v1137 = vadd.s32 %v1113, 192
      %v1138 = vadd.s32 %v1113, 200
      %v1139 = vadd.s32 %v1113, 208
      %v1140 = vadd.s32 %v1113, 216
      %v1141 = vadd.s32 %v1113, 224
      %v1142 = vadd.s32 %v1113, 232
      %v1143 = vadd.s32 %v1113, 240
      %v1144 = vadd.s32 %v1113, 248
      %vm1145 = vcmp.lt.s32.totalorder %v1113, 0
      %v1146 = vsub.s32 0, %v1113
      %v1147 = vsel %vm1145, %v1146, %v1113
      %v1148 = vshrl.u32 %v1147, 4
      %v1149 = vand.u32 %v1147, 15
      %v1150 = vsub.s32 0, %v1149
      %v1151 = vsel %vm1145, %v1150, %v1149
      %vm1152 = vcmp.lt.s32.totalorder %v1114, 0
      %v1153 = vsub.s32 0, %v1114
      %v1154 = vsel %vm1152, %v1153, %v1114
      %v1155 = vshrl.u32 %v1154, 4
      %v1156 = vand.u32 %v1154, 15
      %v1157 = vsub.s32 0, %v1156
      %v1158 = vsel %vm1152, %v1157, %v1156
      %vm1159 = vcmp.lt.s32.totalorder %v1115, 0
      %v1160 = vsub.s32 0, %v1115
      %v1161 = vsel %vm1159, %v1160, %v1115
      %v1162 = vshrl.u32 %v1161, 4
      %v1163 = vand.u32 %v1161, 15
      %v1164 = vsub.s32 0, %v1163
      %v1165 = vsel %vm1159, %v1164, %v1163
      %vm1166 = vcmp.lt.s32.totalorder %v1116, 0
      %v1167 = vsub.s32 0, %v1116
      %v1168 = vsel %vm1166, %v1167, %v1116
      %v1169 = vshrl.u32 %v1168, 4
      %v1170 = vand.u32 %v1168, 15
      %v1171 = vsub.s32 0, %v1170
      %v1172 = vsel %vm1166, %v1171, %v1170
      %vm1173 = vcmp.lt.s32.totalorder %v1117, 0
      %v1174 = vsub.s32 0, %v1117
      %v1175 = vsel %vm1173, %v1174, %v1117
      %v1176 = vshrl.u32 %v1175, 4
      %v1177 = vand.u32 %v1175, 15
      %v1178 = vsub.s32 0, %v1177
      %v1179 = vsel %vm1173, %v1178, %v1177
      %vm1180 = vcmp.lt.s32.totalorder %v1118, 0
      %v1181 = vsub.s32 0, %v1118
      %v1182 = vsel %vm1180, %v1181, %v1118
      %v1183 = vshrl.u32 %v1182, 4
      %v1184 = vand.u32 %v1182, 15
      %v1185 = vsub.s32 0, %v1184
      %v1186 = vsel %vm1180, %v1185, %v1184
      %vm1187 = vcmp.lt.s32.totalorder %v1119, 0
      %v1188 = vsub.s32 0, %v1119
      %v1189 = vsel %vm1187, %v1188, %v1119
      %v1190 = vshrl.u32 %v1189, 4
      %v1191 = vand.u32 %v1189, 15
      %v1192 = vsub.s32 0, %v1191
      %v1193 = vsel %vm1187, %v1192, %v1191
      %vm1194 = vcmp.lt.s32.totalorder %v1120, 0
      %v1195 = vsub.s32 0, %v1120
      %v1196 = vsel %vm1194, %v1195, %v1120
      %v1197 = vshrl.u32 %v1196, 4
      %v1198 = vand.u32 %v1196, 15
      %v1199 = vsub.s32 0, %v1198
      %v1200 = vsel %vm1194, %v1199, %v1198
      %vm1201 = vcmp.lt.s32.totalorder %v1121, 0
      %v1202 = vsub.s32 0, %v1121
      %v1203 = vsel %vm1201, %v1202, %v1121
      %v1204 = vshrl.u32 %v1203, 4
      %v1205 = vand.u32 %v1203, 15
      %v1206 = vsub.s32 0, %v1205
      %v1207 = vsel %vm1201, %v1206, %v1205
      %vm1208 = vcmp.lt.s32.totalorder %v1122, 0
      %v1209 = vsub.s32 0, %v1122
      %v1210 = vsel %vm1208, %v1209, %v1122
      %v1211 = vshrl.u32 %v1210, 4
      %v1212 = vand.u32 %v1210, 15
      %v1213 = vsub.s32 0, %v1212
      %v1214 = vsel %vm1208, %v1213, %v1212
      %vm1215 = vcmp.lt.s32.totalorder %v1123, 0
      %v1216 = vsub.s32 0, %v1123
      %v1217 = vsel %vm1215, %v1216, %v1123
      %v1218 = vshrl.u32 %v1217, 4
      %v1219 = vand.u32 %v1217, 15
      %v1220 = vsub.s32 0, %v1219
      %v1221 = vsel %vm1215, %v1220, %v1219
      %vm1222 = vcmp.lt.s32.totalorder %v1124, 0
      %v1223 = vsub.s32 0, %v1124
      %v1224 = vsel %vm1222, %v1223, %v1124
      %v1225 = vshrl.u32 %v1224, 4
      %v1226 = vand.u32 %v1224, 15
      %v1227 = vsub.s32 0, %v1226
      %v1228 = vsel %vm1222, %v1227, %v1226
      %vm1229 = vcmp.lt.s32.totalorder %v1125, 0
      %v1230 = vsub.s32 0, %v1125
      %v1231 = vsel %vm1229, %v1230, %v1125
      %v1232 = vshrl.u32 %v1231, 4
      %v1233 = vand.u32 %v1231, 15
      %v1234 = vsub.s32 0, %v1233
      %v1235 = vsel %vm1229, %v1234, %v1233
      %vm1236 = vcmp.lt.s32.totalorder %v1126, 0
      %v1237 = vsub.s32 0, %v1126
      %v1238 = vsel %vm1236, %v1237, %v1126
      %v1239 = vshrl.u32 %v1238, 4
      %v1240 = vand.u32 %v1238, 15
      %v1241 = vsub.s32 0, %v1240
      %v1242 = vsel %vm1236, %v1241, %v1240
      %vm1243 = vcmp.lt.s32.totalorder %v1127, 0
      %v1244 = vsub.s32 0, %v1127
      %v1245 = vsel %vm1243, %v1244, %v1127
      %v1246 = vshrl.u32 %v1245, 4
      %v1247 = vand.u32 %v1245, 15
      %v1248 = vsub.s32 0, %v1247
      %v1249 = vsel %vm1243, %v1248, %v1247
      %vm1250 = vcmp.lt.s32.totalorder %v1128, 0
      %v1251 = vsub.s32 0, %v1128
      %v1252 = vsel %vm1250, %v1251, %v1128
      %v1253 = vshrl.u32 %v1252, 4
      %v1254 = vand.u32 %v1252, 15
      %v1255 = vsub.s32 0, %v1254
      %v1256 = vsel %vm1250, %v1255, %v1254
      %vm1257 = vcmp.lt.s32.totalorder %v1129, 0
      %v1258 = vsub.s32 0, %v1129
      %v1259 = vsel %vm1257, %v1258, %v1129
      %v1260 = vshrl.u32 %v1259, 4
      %v1261 = vand.u32 %v1259, 15
      %v1262 = vsub.s32 0, %v1261
      %v1263 = vsel %vm1257, %v1262, %v1261
      %vm1264 = vcmp.lt.s32.totalorder %v1130, 0
      %v1265 = vsub.s32 0, %v1130
      %v1266 = vsel %vm1264, %v1265, %v1130
      %v1267 = vshrl.u32 %v1266, 4
      %v1268 = vand.u32 %v1266, 15
      %v1269 = vsub.s32 0, %v1268
      %v1270 = vsel %vm1264, %v1269, %v1268
      %vm1271 = vcmp.lt.s32.totalorder %v1131, 0
      %v1272 = vsub.s32 0, %v1131
      %v1273 = vsel %vm1271, %v1272, %v1131
      %v1274 = vshrl.u32 %v1273, 4
      %v1275 = vand.u32 %v1273, 15
      %v1276 = vsub.s32 0, %v1275
      %v1277 = vsel %vm1271, %v1276, %v1275
      %vm1278 = vcmp.lt.s32.totalorder %v1132, 0
      %v1279 = vsub.s32 0, %v1132
      %v1280 = vsel %vm1278, %v1279, %v1132
      %v1281 = vshrl.u32 %v1280, 4
      %v1282 = vand.u32 %v1280, 15
      %v1283 = vsub.s32 0, %v1282
      %v1284 = vsel %vm1278, %v1283, %v1282
      %vm1285 = vcmp.lt.s32.totalorder %v1133, 0
      %v1286 = vsub.s32 0, %v1133
      %v1287 = vsel %vm1285, %v1286, %v1133
      %v1288 = vshrl.u32 %v1287, 4
      %v1289 = vand.u32 %v1287, 15
      %v1290 = vsub.s32 0, %v1289
      %v1291 = vsel %vm1285, %v1290, %v1289
      %vm1292 = vcmp.lt.s32.totalorder %v1134, 0
      %v1293 = vsub.s32 0, %v1134
      %v1294 = vsel %vm1292, %v1293, %v1134
      %v1295 = vshrl.u32 %v1294, 4
      %v1296 = vand.u32 %v1294, 15
      %v1297 = vsub.s32 0, %v1296
      %v1298 = vsel %vm1292, %v1297, %v1296
      %vm1299 = vcmp.lt.s32.totalorder %v1135, 0
      %v1300 = vsub.s32 0, %v1135
      %v1301 = vsel %vm1299, %v1300, %v1135
      %v1302 = vshrl.u32 %v1301, 4
      %v1303 = vand.u32 %v1301, 15
      %v1304 = vsub.s32 0, %v1303
      %v1305 = vsel %vm1299, %v1304, %v1303
      %vm1306 = vcmp.lt.s32.totalorder %v1136, 0
      %v1307 = vsub.s32 0, %v1136
      %v1308 = vsel %vm1306, %v1307, %v1136
      %v1309 = vshrl.u32 %v1308, 4
      %v1310 = vand.u32 %v1308, 15
      %v1311 = vsub.s32 0, %v1310
      %v1312 = vsel %vm1306, %v1311, %v1310
      %vm1313 = vcmp.lt.s32.totalorder %v1137, 0
      %v1314 = vsub.s32 0, %v1137
      %v1315 = vsel %vm1313, %v1314, %v1137
      %v1316 = vshrl.u32 %v1315, 4
      %v1317 = vand.u32 %v1315, 15
      %v1318 = vsub.s32 0, %v1317
      %v1319 = vsel %vm1313, %v1318, %v1317
      %vm1320 = vcmp.lt.s32.totalorder %v1138, 0
      %v1321 = vsub.s32 0, %v1138
      %v1322 = vsel %vm1320, %v1321, %v1138
      %v1323 = vshrl.u32 %v1322, 4
      %v1324 = vand.u32 %v1322, 15
      %v1325 = vsub.s32 0, %v1324
      %v1326 = vsel %vm1320, %v1325, %v1324
      %vm1327 = vcmp.lt.s32.totalorder %v1139, 0
      %v1328 = vsub.s32 0, %v1139
      %v1329 = vsel %vm1327, %v1328, %v1139
      %v1330 = vshrl.u32 %v1329, 4
      %v1331 = vand.u32 %v1329, 15
      %v1332 = vsub.s32 0, %v1331
      %v1333 = vsel %vm1327, %v1332, %v1331
      %vm1334 = vcmp.lt.s32.totalorder %v1140, 0
      %v1335 = vsub.s32 0, %v1140
      %v1336 = vsel %vm1334, %v1335, %v1140
      %v1337 = vshrl.u32 %v1336, 4
      %v1338 = vand.u32 %v1336, 15
      %v1339 = vsub.s32 0, %v1338
      %v1340 = vsel %vm1334, %v1339, %v1338
      %vm1341 = vcmp.lt.s32.totalorder %v1141, 0
      %v1342 = vsub.s32 0, %v1141
      %v1343 = vsel %vm1341, %v1342, %v1141
      %v1344 = vshrl.u32 %v1343, 4
      %v1345 = vand.u32 %v1343, 15
      %v1346 = vsub.s32 0, %v1345
      %v1347 = vsel %vm1341, %v1346, %v1345
      %vm1348 = vcmp.lt.s32.totalorder %v1142, 0
      %v1349 = vsub.s32 0, %v1142
      %v1350 = vsel %vm1348, %v1349, %v1142
      %v1351 = vshrl.u32 %v1350, 4
      %v1352 = vand.u32 %v1350, 15
      %v1353 = vsub.s32 0, %v1352
      %v1354 = vsel %vm1348, %v1353, %v1352
      %vm1355 = vcmp.lt.s32.totalorder %v1143, 0
      %v1356 = vsub.s32 0, %v1143
      %v1357 = vsel %vm1355, %v1356, %v1143
      %v1358 = vshrl.u32 %v1357, 4
      %v1359 = vand.u32 %v1357, 15
      %v1360 = vsub.s32 0, %v1359
      %v1361 = vsel %vm1355, %v1360, %v1359
      %vm1362 = vcmp.lt.s32.totalorder %v1144, 0
      %v1363 = vsub.s32 0, %v1144
      %v1364 = vsel %vm1362, %v1363, %v1144
      %v1365 = vshrl.u32 %v1364, 4
      %v1366 = vand.u32 %v1364, 15
      %v1367 = vsub.s32 0, %v1366
      %v1368 = vsel %vm1362, %v1367, %v1366
      %vm1369 = vcmp.ne.s32.totalorder %v1151, 0
      %vm1370 = vcmp.ne.s32.totalorder %v1158, 0
      %vm1371 = vcmp.ne.s32.totalorder %v1165, 0
      %vm1372 = vcmp.ne.s32.totalorder %v1172, 0
      %vm1373 = vcmp.ne.s32.totalorder %v1179, 0
      %vm1374 = vcmp.ne.s32.totalorder %v1186, 0
      %vm1375 = vcmp.ne.s32.totalorder %v1193, 0
      %vm1376 = vcmp.ne.s32.totalorder %v1200, 0
      %vm1377 = vcmp.ne.s32.totalorder %v1207, 0
      %vm1378 = vcmp.ne.s32.totalorder %v1214, 0
      %vm1379 = vcmp.ne.s32.totalorder %v1221, 0
      %vm1380 = vcmp.ne.s32.totalorder %v1228, 0
      %vm1381 = vcmp.ne.s32.totalorder %v1235, 0
      %vm1382 = vcmp.ne.s32.totalorder %v1242, 0
      %vm1383 = vcmp.ne.s32.totalorder %v1249, 0
      %vm1384 = vcmp.ne.s32.totalorder %v1256, 0
      %vm1385 = vcmp.ne.s32.totalorder %v1263, 0
      %vm1386 = vcmp.ne.s32.totalorder %v1270, 0
      %vm1387 = vcmp.ne.s32.totalorder %v1277, 0
      %vm1388 = vcmp.ne.s32.totalorder %v1284, 0
      %vm1389 = vcmp.ne.s32.totalorder %v1291, 0
      %vm1390 = vcmp.ne.s32.totalorder %v1298, 0
      %vm1391 = vcmp.ne.s32.totalorder %v1305, 0
      %vm1392 = vcmp.ne.s32.totalorder %v1312, 0
      %vm1393 = vcmp.ne.s32.totalorder %v1319, 0
      %vm1394 = vcmp.ne.s32.totalorder %v1326, 0
      %vm1395 = vcmp.ne.s32.totalorder %v1333, 0
      %vm1396 = vcmp.ne.s32.totalorder %v1340, 0
      %vm1397 = vcmp.ne.s32.totalorder %v1347, 0
      %vm1398 = vcmp.ne.s32.totalorder %v1354, 0
      %vm1399 = vcmp.ne.s32.totalorder %v1361, 0
      %vm1400 = vcmp.ne.s32.totalorder %v1368, 0
      %vm1401 = vcmp.lt.s32.totalorder %v1151, 0
      %vm1402 = vcmp.lt.s32.totalorder %v1158, 0
      %vm1403 = vcmp.lt.s32.totalorder %v1165, 0
      %vm1404 = vcmp.lt.s32.totalorder %v1172, 0
      %vm1405 = vcmp.lt.s32.totalorder %v1179, 0
      %vm1406 = vcmp.lt.s32.totalorder %v1186, 0
      %vm1407 = vcmp.lt.s32.totalorder %v1193, 0
      %vm1408 = vcmp.lt.s32.totalorder %v1200, 0
      %vm1409 = vcmp.lt.s32.totalorder %v1207, 0
      %vm1410 = vcmp.lt.s32.totalorder %v1214, 0
      %vm1411 = vcmp.lt.s32.totalorder %v1221, 0
      %vm1412 = vcmp.lt.s32.totalorder %v1228, 0
      %vm1413 = vcmp.lt.s32.totalorder %v1235, 0
      %vm1414 = vcmp.lt.s32.totalorder %v1242, 0
      %vm1415 = vcmp.lt.s32.totalorder %v1249, 0
      %vm1416 = vcmp.lt.s32.totalorder %v1256, 0
      %vm1417 = vcmp.lt.s32.totalorder %v1263, 0
      %vm1418 = vcmp.lt.s32.totalorder %v1270, 0
      %vm1419 = vcmp.lt.s32.totalorder %v1277, 0
      %vm1420 = vcmp.lt.s32.totalorder %v1284, 0
      %vm1421 = vcmp.lt.s32.totalorder %v1291, 0
      %vm1422 = vcmp.lt.s32.totalorder %v1298, 0
      %vm1423 = vcmp.lt.s32.totalorder %v1305, 0
      %vm1424 = vcmp.lt.s32.totalorder %v1312, 0
      %vm1425 = vcmp.lt.s32.totalorder %v1319, 0
      %vm1426 = vcmp.lt.s32.totalorder %v1326, 0
      %vm1427 = vcmp.lt.s32.totalorder %v1333, 0
      %vm1428 = vcmp.lt.s32.totalorder %v1340, 0
      %vm1429 = vcmp.lt.s32.totalorder %v1347, 0
      %vm1430 = vcmp.lt.s32.totalorder %v1354, 0
      %vm1431 = vcmp.lt.s32.totalorder %v1361, 0
      %vm1432 = vcmp.lt.s32.totalorder %v1368, 0
      %vm1433 = vmand %vm1401, %vm1369
      %vm1434 = vmand %vm1402, %vm1370
      %vm1435 = vmand %vm1403, %vm1371
      %vm1436 = vmand %vm1404, %vm1372
      %vm1437 = vmand %vm1405, %vm1373
      %vm1438 = vmand %vm1406, %vm1374
      %vm1439 = vmand %vm1407, %vm1375
      %vm1440 = vmand %vm1408, %vm1376
      %vm1441 = vmand %vm1409, %vm1377
      %vm1442 = vmand %vm1410, %vm1378
      %vm1443 = vmand %vm1411, %vm1379
      %vm1444 = vmand %vm1412, %vm1380
      %vm1445 = vmand %vm1413, %vm1381
      %vm1446 = vmand %vm1414, %vm1382
      %vm1447 = vmand %vm1415, %vm1383
      %vm1448 = vmand %vm1416, %vm1384
      %vm1449 = vmand %vm1417, %vm1385
      %vm1450 = vmand %vm1418, %vm1386
      %vm1451 = vmand %vm1419, %vm1387
      %vm1452 = vmand %vm1420, %vm1388
      %vm1453 = vmand %vm1421, %vm1389
      %vm1454 = vmand %vm1422, %vm1390
      %vm1455 = vmand %vm1423, %vm1391
      %vm1456 = vmand %vm1424, %vm1392
      %vm1457 = vmand %vm1425, %vm1393
      %vm1458 = vmand %vm1426, %vm1394
      %vm1459 = vmand %vm1427, %vm1395
      %vm1460 = vmand %vm1428, %vm1396
      %vm1461 = vmand %vm1429, %vm1397
      %vm1462 = vmand %vm1430, %vm1398
      %vm1463 = vmand %vm1431, %vm1399
      %vm1464 = vmand %vm1432, %vm1400
      %v1465 = vadd.s32 %v1151, 16
      %v1466 = vadd.s32 %v1158, 16
      %v1467 = vadd.s32 %v1165, 16
      %v1468 = vadd.s32 %v1172, 16
      %v1469 = vadd.s32 %v1179, 16
      %v1470 = vadd.s32 %v1186, 16
      %v1471 = vadd.s32 %v1193, 16
      %v1472 = vadd.s32 %v1200, 16
      %v1473 = vadd.s32 %v1207, 16
      %v1474 = vadd.s32 %v1214, 16
      %v1475 = vadd.s32 %v1221, 16
      %v1476 = vadd.s32 %v1228, 16
      %v1477 = vadd.s32 %v1235, 16
      %v1478 = vadd.s32 %v1242, 16
      %v1479 = vadd.s32 %v1249, 16
      %v1480 = vadd.s32 %v1256, 16
      %v1481 = vadd.s32 %v1263, 16
      %v1482 = vadd.s32 %v1270, 16
      %v1483 = vadd.s32 %v1277, 16
      %v1484 = vadd.s32 %v1284, 16
      %v1485 = vadd.s32 %v1291, 16
      %v1486 = vadd.s32 %v1298, 16
      %v1487 = vadd.s32 %v1305, 16
      %v1488 = vadd.s32 %v1312, 16
      %v1489 = vadd.s32 %v1319, 16
      %v1490 = vadd.s32 %v1326, 16
      %v1491 = vadd.s32 %v1333, 16
      %v1492 = vadd.s32 %v1340, 16
      %v1493 = vadd.s32 %v1347, 16
      %v1494 = vadd.s32 %v1354, 16
      %v1495 = vadd.s32 %v1361, 16
      %v1496 = vadd.s32 %v1368, 16
      %v1497 = vsel %vm1433, %v1465, %v1151
      %v1498 = vsel %vm1434, %v1466, %v1158
      %v1499 = vsel %vm1435, %v1467, %v1165
      %v1500 = vsel %vm1436, %v1468, %v1172
      %v1501 = vsel %vm1437, %v1469, %v1179
      %v1502 = vsel %vm1438, %v1470, %v1186
      %v1503 = vsel %vm1439, %v1471, %v1193
      %v1504 = vsel %vm1440, %v1472, %v1200
      %v1505 = vsel %vm1441, %v1473, %v1207
      %v1506 = vsel %vm1442, %v1474, %v1214
      %v1507 = vsel %vm1443, %v1475, %v1221
      %v1508 = vsel %vm1444, %v1476, %v1228
      %v1509 = vsel %vm1445, %v1477, %v1235
      %v1510 = vsel %vm1446, %v1478, %v1242
      %v1511 = vsel %vm1447, %v1479, %v1249
      %v1512 = vsel %vm1448, %v1480, %v1256
      %v1513 = vsel %vm1449, %v1481, %v1263
      %v1514 = vsel %vm1450, %v1482, %v1270
      %v1515 = vsel %vm1451, %v1483, %v1277
      %v1516 = vsel %vm1452, %v1484, %v1284
      %v1517 = vsel %vm1453, %v1485, %v1291
      %v1518 = vsel %vm1454, %v1486, %v1298
      %v1519 = vsel %vm1455, %v1487, %v1305
      %v1520 = vsel %vm1456, %v1488, %v1312
      %v1521 = vsel %vm1457, %v1489, %v1319
      %v1522 = vsel %vm1458, %v1490, %v1326
      %v1523 = vsel %vm1459, %v1491, %v1333
      %v1524 = vsel %vm1460, %v1492, %v1340
      %v1525 = vsel %vm1461, %v1493, %v1347
      %v1526 = vsel %vm1462, %v1494, %v1354
      %v1527 = vsel %vm1463, %v1495, %v1361
      %v1528 = vsel %vm1464, %v1496, %v1368
      %vm1529 = vcmp.gt.s32.totalorder %v1497, 0
      %vm1530 = vcmp.gt.s32.totalorder %v1498, 0
      %vm1531 = vcmp.gt.s32.totalorder %v1499, 0
      %vm1532 = vcmp.gt.s32.totalorder %v1500, 0
      %vm1533 = vcmp.gt.s32.totalorder %v1501, 0
      %vm1534 = vcmp.gt.s32.totalorder %v1502, 0
      %vm1535 = vcmp.gt.s32.totalorder %v1503, 0
      %vm1536 = vcmp.gt.s32.totalorder %v1504, 0
      %vm1537 = vcmp.gt.s32.totalorder %v1505, 0
      %vm1538 = vcmp.gt.s32.totalorder %v1506, 0
      %vm1539 = vcmp.gt.s32.totalorder %v1507, 0
      %vm1540 = vcmp.gt.s32.totalorder %v1508, 0
      %vm1541 = vcmp.gt.s32.totalorder %v1509, 0
      %vm1542 = vcmp.gt.s32.totalorder %v1510, 0
      %vm1543 = vcmp.gt.s32.totalorder %v1511, 0
      %vm1544 = vcmp.gt.s32.totalorder %v1512, 0
      %vm1545 = vcmp.gt.s32.totalorder %v1513, 0
      %vm1546 = vcmp.gt.s32.totalorder %v1514, 0
      %vm1547 = vcmp.gt.s32.totalorder %v1515, 0
      %vm1548 = vcmp.gt.s32.totalorder %v1516, 0
      %vm1549 = vcmp.gt.s32.totalorder %v1517, 0
      %vm1550 = vcmp.gt.s32.totalorder %v1518, 0
      %vm1551 = vcmp.gt.s32.totalorder %v1519, 0
      %vm1552 = vcmp.gt.s32.totalorder %v1520, 0
      %vm1553 = vcmp.gt.s32.totalorder %v1521, 0
      %vm1554 = vcmp.gt.s32.totalorder %v1522, 0
      %vm1555 = vcmp.gt.s32.totalorder %v1523, 0
      %vm1556 = vcmp.gt.s32.totalorder %v1524, 0
      %vm1557 = vcmp.gt.s32.totalorder %v1525, 0
      %vm1558 = vcmp.gt.s32.totalorder %v1526, 0
      %vm1559 = vcmp.gt.s32.totalorder %v1527, 0
      %vm1560 = vcmp.gt.s32.totalorder %v1528, 0
      %vm1561 = vcmp.lt.s32.totalorder %v1497, 15
      %vm1562 = vcmp.lt.s32.totalorder %v1498, 15
      %vm1563 = vcmp.lt.s32.totalorder %v1499, 15
      %vm1564 = vcmp.lt.s32.totalorder %v1500, 15
      %vm1565 = vcmp.lt.s32.totalorder %v1501, 15
      %vm1566 = vcmp.lt.s32.totalorder %v1502, 15
      %vm1567 = vcmp.lt.s32.totalorder %v1503, 15
      %vm1568 = vcmp.lt.s32.totalorder %v1504, 15
      %vm1569 = vcmp.lt.s32.totalorder %v1505, 15
      %vm1570 = vcmp.lt.s32.totalorder %v1506, 15
      %vm1571 = vcmp.lt.s32.totalorder %v1507, 15
      %vm1572 = vcmp.lt.s32.totalorder %v1508, 15
      %vm1573 = vcmp.lt.s32.totalorder %v1509, 15
      %vm1574 = vcmp.lt.s32.totalorder %v1510, 15
      %vm1575 = vcmp.lt.s32.totalorder %v1511, 15
      %vm1576 = vcmp.lt.s32.totalorder %v1512, 15
      %vm1577 = vcmp.lt.s32.totalorder %v1513, 15
      %vm1578 = vcmp.lt.s32.totalorder %v1514, 15
      %vm1579 = vcmp.lt.s32.totalorder %v1515, 15
      %vm1580 = vcmp.lt.s32.totalorder %v1516, 15
      %vm1581 = vcmp.lt.s32.totalorder %v1517, 15
      %vm1582 = vcmp.lt.s32.totalorder %v1518, 15
      %vm1583 = vcmp.lt.s32.totalorder %v1519, 15
      %vm1584 = vcmp.lt.s32.totalorder %v1520, 15
      %vm1585 = vcmp.lt.s32.totalorder %v1521, 15
      %vm1586 = vcmp.lt.s32.totalorder %v1522, 15
      %vm1587 = vcmp.lt.s32.totalorder %v1523, 15
      %vm1588 = vcmp.lt.s32.totalorder %v1524, 15
      %vm1589 = vcmp.lt.s32.totalorder %v1525, 15
      %vm1590 = vcmp.lt.s32.totalorder %v1526, 15
      %vm1591 = vcmp.lt.s32.totalorder %v1527, 15
      %vm1592 = vcmp.lt.s32.totalorder %v1528, 15
      %v1593 = vld [vmem:[#allocation2 + $0x4] sm:$0x8]
      %v1594 = vld [vmem:[#allocation2 + $0x8] sm:$0xf]
      %v1595 = vld [vmem:[#allocation2 + $0xc] sm:$0xf]
      %v1596 = vld [vmem:[#allocation2 + $0x10] sm:$0xf]
      %v1597 = vld [vmem:[#allocation2 + $0x14] sm:$0xf]
      %v1598 = vld [vmem:[#allocation2 + $0x18] sm:$0xf]
      %v1599 = vld [vmem:[#allocation2 + $0x1c] sm:$0xf]
      %v1600 = vld [vmem:[#allocation2 + $0x20] sm:$0xf]
      %v1601 = vld [vmem:[#allocation2 + $0x24] sm:$0xf]
      %v1602 = vld [vmem:[#allocation2 + $0x28] sm:$0xf]
      %v1603 = vld [vmem:[#allocation2 + $0x2c] sm:$0xf]
      %v1604 = vld [vmem:[#allocation2 + $0x30] sm:$0xf]
      %v1605 = vld [vmem:[#allocation2 + $0x34] sm:$0xf]
      %v1606 = vld [vmem:[#allocation2 + $0x38] sm:$0xf]
      %v1607 = vld [vmem:[#allocation2 + $0x3c] sm:$0xf]
      %v1608 = vld [vmem:[#allocation2 + $0x40] sm:$0xf]
      %v1609 = vld [vmem:[#allocation2 + $0x44] sm:$0xf]
      %v1610 = vld [vmem:[#allocation2 + $0x48] sm:$0xf]
      %v1611 = vld [vmem:[#allocation2 + $0x4c] sm:$0xf]
      %v1612 = vld [vmem:[#allocation2 + $0x50] sm:$0xf]
      %v1613 = vld [vmem:[#allocation2 + $0x54] sm:$0xf]
      %v1614 = vld [vmem:[#allocation2 + $0x58] sm:$0xf]
      %v1615 = vld [vmem:[#allocation2 + $0x5c] sm:$0xf]
      %v1616 = vld [vmem:[#allocation2 + $0x60] sm:$0xf]
      %v1617 = vld [vmem:[#allocation2 + $0x64] sm:$0xf]
      %v1618 = vld [vmem:[#allocation2 + $0x68] sm:$0xf]
      %v1619 = vld [vmem:[#allocation2 + $0x6c] sm:$0xf]
      %v1620 = vld [vmem:[#allocation2 + $0x70] sm:$0xf]
      %v1621 = vld [vmem:[#allocation2 + $0x74] sm:$0xf]
      %v1622 = vld [vmem:[#allocation2 + $0x78] sm:$0xf]
      %v1623 = vld [vmem:[#allocation2 + $0x7c] sm:$0xf]
      %v1624 = vld [vmem:[#allocation2 + $0x80] sm:$0xf]
      %v1625 = vld [vmem:[#allocation2 + $0x84] sm:$0xf]
      %v1626 = vld [vmem:[#allocation2 + $0xc] sm:$0x8]
      %v1627 = vld [vmem:[#allocation2 + $0x88] sm:$0xf]
      %v1628 = vld [vmem:[#allocation2 + $0x8c] sm:$0xf]
      %v1629 = vld [vmem:[#allocation2 + $0x14] sm:$0x8]
      %v1630 = vld [vmem:[#allocation2 + $0x90] sm:$0xf]
      %v1631 = vld [vmem:[#allocation2 + $0x94] sm:$0xf]
      %v1665 = vunpack.c.l.b16 %v1593
      %v1666 = vunpack.c.l.b16 %v1594
      %v1667 = vunpack.c.l.b16 %v1595
      %v1668 = vunpack.c.l.b16 %v1596
      %v1669 = vunpack.c.l.b16 %v1597
      %v1670 = vunpack.c.l.b16 %v1598
      %v1671 = vunpack.c.l.b16 %v1599
      %v1672 = vunpack.c.l.b16 %v1600
      %v1673 = vunpack.c.l.b16 %v1601
      %v1674 = vunpack.c.l.b16 %v1602
      %v1675 = vunpack.c.l.b16 %v1603
      %v1676 = vunpack.c.l.b16 %v1604
      %v1677 = vunpack.c.l.b16 %v1605
      %v1678 = vunpack.c.l.b16 %v1606
      %v1679 = vunpack.c.l.b16 %v1607
      %v1680 = vunpack.c.l.b16 %v1608
      %v1681 = vunpack.c.l.b16 %v1609
      %v1682 = vunpack.c.l.b16 %v1610
      %v1683 = vunpack.c.l.b16 %v1611
      %v1684 = vunpack.c.l.b16 %v1612
      %v1685 = vunpack.c.l.b16 %v1613
      %v1686 = vunpack.c.l.b16 %v1614
      %v1687 = vunpack.c.l.b16 %v1615
      %v1688 = vunpack.c.l.b16 %v1616
      %v1689 = vunpack.c.l.b16 %v1617
      %v1690 = vunpack.c.l.b16 %v1618
      %v1691 = vunpack.c.l.b16 %v1619
      %v1692 = vunpack.c.l.b16 %v1620
      %v1693 = vunpack.c.l.b16 %v1621
      %v1694 = vunpack.c.l.b16 %v1622
      %v1695 = vunpack.c.l.b16 %v1623
      %v1696 = vunpack.c.l.b16 %v1624
      %v1697 = vunpack.c.l.b16 %v1625
      %v1698 = vpack.c.b16 %v1666, %v1665
      %v1699 = vpack.c.b16 %v1668, %v1667
      %v1700 = vpack.c.b16 %v1670, %v1669
      %v1701 = vpack.c.b16 %v1672, %v1671
      %v1702 = vpack.c.b16 %v1674, %v1673
      %v1703 = vpack.c.b16 %v1676, %v1675
      %v1704 = vpack.c.b16 %v1678, %v1677
      %v1705 = vpack.c.b16 %v1680, %v1679
      %v1706 = vpack.c.b16 %v1682, %v1681
      %v1707 = vpack.c.b16 %v1684, %v1683
      %v1708 = vpack.c.b16 %v1686, %v1685
      %v1709 = vpack.c.b16 %v1688, %v1687
      %v1710 = vpack.c.b16 %v1690, %v1689
      %v1711 = vpack.c.b16 %v1692, %v1691
      %v1712 = vpack.c.b16 %v1694, %v1693
      %v1713 = vpack.c.b16 %v1696, %v1695
      %v1714 = vpack.c.b16 %v1697, %v1697
      %v1735 = vunpack.c.l.b16 %v1626
      %v1736 = vunpack.c.l.b16 %v1627
      %v1737 = vunpack.c.l.b16 %v1628
      %v1738 = vpack.c.b16 %v1668, %v1735
      %v1739 = vpack.c.b16 %v1736, %v1697
      %v1740 = vpack.c.b16 %v1737, %v1737
      %v1747 = vunpack.c.l.b16 %v1629
      %v1748 = vunpack.c.l.b16 %v1630
      %v1749 = vunpack.c.l.b16 %v1631
      %v1750 = vpack.c.b16 %v1670, %v1747
      %v1751 = vpack.c.b16 %v1748, %v1737
      %v1752 = vpack.c.b16 %v1749, %v1749
      %v1756 = vsel %vm1529, 1, 0
      %v1757 = vsel %vm1530, 1, 0
      %v1758 = vsel %vm1531, 1, 0
      %v1759 = vsel %vm1532, 1, 0
      %v1760 = vsel %vm1533, 1, 0
      %v1761 = vsel %vm1534, 1, 0
      %v1762 = vsel %vm1535, 1, 0
      %v1763 = vsel %vm1536, 1, 0
      %v1764 = vsel %vm1537, 1, 0
      %v1765 = vsel %vm1538, 1, 0
      %v1766 = vsel %vm1539, 1, 0
      %v1767 = vsel %vm1540, 1, 0
      %v1768 = vsel %vm1541, 1, 0
      %v1769 = vsel %vm1542, 1, 0
      %v1770 = vsel %vm1543, 1, 0
      %v1771 = vsel %vm1544, 1, 0
      %v1772 = vsel %vm1545, 1, 0
      %v1773 = vsel %vm1546, 1, 0
      %v1774 = vsel %vm1547, 1, 0
      %v1775 = vsel %vm1548, 1, 0
      %v1776 = vsel %vm1549, 1, 0
      %v1777 = vsel %vm1550, 1, 0
      %v1778 = vsel %vm1551, 1, 0
      %v1779 = vsel %vm1552, 1, 0
      %v1780 = vsel %vm1553, 1, 0
      %v1781 = vsel %vm1554, 1, 0
      %v1782 = vsel %vm1555, 1, 0
      %v1783 = vsel %vm1556, 1, 0
      %v1784 = vsel %vm1557, 1, 0
      %v1785 = vsel %vm1558, 1, 0
      %v1786 = vsel %vm1559, 1, 0
      %v1787 = vsel %vm1560, 1, 0
      %vm1788 = vcmp.eq.s32.totalorder %v1756, 1
      %vm1789 = vcmp.eq.s32.totalorder %v1757, 1
      %vm1790 = vcmp.eq.s32.totalorder %v1758, 1
      %vm1791 = vcmp.eq.s32.totalorder %v1759, 1
      %vm1792 = vcmp.eq.s32.totalorder %v1760, 1
      %vm1793 = vcmp.eq.s32.totalorder %v1761, 1
      %vm1794 = vcmp.eq.s32.totalorder %v1762, 1
      %vm1795 = vcmp.eq.s32.totalorder %v1763, 1
      %vm1796 = vcmp.eq.s32.totalorder %v1764, 1
      %vm1797 = vcmp.eq.s32.totalorder %v1765, 1
      %vm1798 = vcmp.eq.s32.totalorder %v1766, 1
      %vm1799 = vcmp.eq.s32.totalorder %v1767, 1
      %vm1800 = vcmp.eq.s32.totalorder %v1768, 1
      %vm1801 = vcmp.eq.s32.totalorder %v1769, 1
      %vm1802 = vcmp.eq.s32.totalorder %v1770, 1
      %vm1803 = vcmp.eq.s32.totalorder %v1771, 1
      %vm1804 = vcmp.eq.s32.totalorder %v1772, 1
      %vm1805 = vcmp.eq.s32.totalorder %v1773, 1
      %vm1806 = vcmp.eq.s32.totalorder %v1774, 1
      %vm1807 = vcmp.eq.s32.totalorder %v1775, 1
      %vm1808 = vcmp.eq.s32.totalorder %v1776, 1
      %vm1809 = vcmp.eq.s32.totalorder %v1777, 1
      %vm1810 = vcmp.eq.s32.totalorder %v1778, 1
      %vm1811 = vcmp.eq.s32.totalorder %v1779, 1
      %vm1812 = vcmp.eq.s32.totalorder %v1780, 1
      %vm1813 = vcmp.eq.s32.totalorder %v1781, 1
      %vm1814 = vcmp.eq.s32.totalorder %v1782, 1
      %vm1815 = vcmp.eq.s32.totalorder %v1783, 1
      %vm1816 = vcmp.eq.s32.totalorder %v1784, 1
      %vm1817 = vcmp.eq.s32.totalorder %v1785, 1
      %vm1818 = vcmp.eq.s32.totalorder %v1786, 1
      %vm1819 = vcmp.eq.s32.totalorder %v1787, 1
      %vm1820 = vmpackc.low %vm1788, %vm1788
      %vm1821 = vmpackc.low %vm1789, %vm1789
      %vm1822 = vmpackc.low %vm1790, %vm1790
      %vm1823 = vmpackc.low %vm1791, %vm1791
      %vm1824 = vmpackc.low %vm1792, %vm1792
      %vm1825 = vmpackc.low %vm1793, %vm1793
      %vm1826 = vmpackc.low %vm1794, %vm1794
      %vm1827 = vmpackc.low %vm1795, %vm1795
      %vm1828 = vmpackc.low %vm1796, %vm1796
      %vm1829 = vmpackc.low %vm1797, %vm1797
      %vm1830 = vmpackc.low %vm1798, %vm1798
      %vm1831 = vmpackc.low %vm1799, %vm1799
      %vm1832 = vmpackc.low %vm1800, %vm1800
      %vm1833 = vmpackc.low %vm1801, %vm1801
      %vm1834 = vmpackc.low %vm1802, %vm1802
      %vm1835 = vmpackc.low %vm1803, %vm1803
      %vm1836 = vmpackc.low %vm1804, %vm1804
      %vm1837 = vmpackc.low %vm1805, %vm1805
      %vm1838 = vmpackc.low %vm1806, %vm1806
      %vm1839 = vmpackc.low %vm1807, %vm1807
      %vm1840 = vmpackc.low %vm1808, %vm1808
      %vm1841 = vmpackc.low %vm1809, %vm1809
      %vm1842 = vmpackc.low %vm1810, %vm1810
      %vm1843 = vmpackc.low %vm1811, %vm1811
      %vm1844 = vmpackc.low %vm1812, %vm1812
      %vm1845 = vmpackc.low %vm1813, %vm1813
      %vm1846 = vmpackc.low %vm1814, %vm1814
      %vm1847 = vmpackc.low %vm1815, %vm1815
      %vm1848 = vmpackc.low %vm1816, %vm1816
      %vm1849 = vmpackc.low %vm1817, %vm1817
      %vm1850 = vmpackc.low %vm1818, %vm1818
      %vm1851 = vmpackc.low %vm1819, %vm1819
      %v1852 = vsel %vm1820, 65537, 0
      %v1853 = vsel %vm1821, 65537, 0
      %v1854 = vsel %vm1822, 65537, 0
      %v1855 = vsel %vm1823, 65537, 0
      %v1856 = vsel %vm1824, 65537, 0
      %v1857 = vsel %vm1825, 65537, 0
      %v1858 = vsel %vm1826, 65537, 0
      %v1859 = vsel %vm1827, 65537, 0
      %v1860 = vsel %vm1828, 65537, 0
      %v1861 = vsel %vm1829, 65537, 0
      %v1862 = vsel %vm1830, 65537, 0
      %v1863 = vsel %vm1831, 65537, 0
      %v1864 = vsel %vm1832, 65537, 0
      %v1865 = vsel %vm1833, 65537, 0
      %v1866 = vsel %vm1834, 65537, 0
      %v1867 = vsel %vm1835, 65537, 0
      %v1868 = vsel %vm1836, 65537, 0
      %v1869 = vsel %vm1837, 65537, 0
      %v1870 = vsel %vm1838, 65537, 0
      %v1871 = vsel %vm1839, 65537, 0
      %v1872 = vsel %vm1840, 65537, 0
      %v1873 = vsel %vm1841, 65537, 0
      %v1874 = vsel %vm1842, 65537, 0
      %v1875 = vsel %vm1843, 65537, 0
      %v1876 = vsel %vm1844, 65537, 0
      %v1877 = vsel %vm1845, 65537, 0
      %v1878 = vsel %vm1846, 65537, 0
      %v1879 = vsel %vm1847, 65537, 0
      %v1880 = vsel %vm1848, 65537, 0
      %v1881 = vsel %vm1849, 65537, 0
      %v1882 = vsel %vm1850, 65537, 0
      %v1883 = vsel %vm1851, 65537, 0
      %v1884 = vunpack.c.l.b16 %v1852
      %v1885 = vunpack.c.l.b16 %v1853
      %v1886 = vunpack.c.l.b16 %v1854
      %v1887 = vunpack.c.l.b16 %v1855
      %v1888 = vunpack.c.l.b16 %v1856
      %v1889 = vunpack.c.l.b16 %v1857
      %v1890 = vunpack.c.l.b16 %v1858
      %v1891 = vunpack.c.l.b16 %v1859
      %v1892 = vunpack.c.l.b16 %v1860
      %v1893 = vunpack.c.l.b16 %v1861
      %v1894 = vunpack.c.l.b16 %v1862
      %v1895 = vunpack.c.l.b16 %v1863
      %v1896 = vunpack.c.l.b16 %v1864
      %v1897 = vunpack.c.l.b16 %v1865
      %v1898 = vunpack.c.l.b16 %v1866
      %v1899 = vunpack.c.l.b16 %v1867
      %v1900 = vunpack.c.l.b16 %v1868
      %v1901 = vunpack.c.l.b16 %v1869
      %v1902 = vunpack.c.l.b16 %v1870
      %v1903 = vunpack.c.l.b16 %v1871
      %v1904 = vunpack.c.l.b16 %v1872
      %v1905 = vunpack.c.l.b16 %v1873
      %v1906 = vunpack.c.l.b16 %v1874
      %v1907 = vunpack.c.l.b16 %v1875
      %v1908 = vunpack.c.l.b16 %v1876
      %v1909 = vunpack.c.l.b16 %v1877
      %v1910 = vunpack.c.l.b16 %v1878
      %v1911 = vunpack.c.l.b16 %v1879
      %v1912 = vunpack.c.l.b16 %v1880
      %v1913 = vunpack.c.l.b16 %v1881
      %v1914 = vunpack.c.l.b16 %v1882
      %v1915 = vunpack.c.l.b16 %v1883
      %v1916 = vpack.c.b16 %v1885, %v1884
      %v1917 = vpack.c.b16 %v1887, %v1886
      %v1918 = vpack.c.b16 %v1889, %v1888
      %v1919 = vpack.c.b16 %v1891, %v1890
      %v1920 = vpack.c.b16 %v1893, %v1892
      %v1921 = vpack.c.b16 %v1895, %v1894
      %v1922 = vpack.c.b16 %v1897, %v1896
      %v1923 = vpack.c.b16 %v1899, %v1898
      %v1924 = vpack.c.b16 %v1901, %v1900
      %v1925 = vpack.c.b16 %v1903, %v1902
      %v1926 = vpack.c.b16 %v1905, %v1904
      %v1927 = vpack.c.b16 %v1907, %v1906
      %v1928 = vpack.c.b16 %v1909, %v1908
      %v1929 = vpack.c.b16 %v1911, %v1910
      %v1930 = vpack.c.b16 %v1913, %v1912
      %v1931 = vpack.c.b16 %v1915, %v1914
      %vm1932 = vsmask.f32 3328
      %v1934 = vshrl.u32 %v1916, 16
      %v1936 = vrot.slane %v1934, 4
      %v1937 = vshll.u32 %v1916, 16
      %v1939 = vrot.slane %v1937, 5
      %v1940 = vor.u32 %v1936, %v1939
      %v1942 = vshrl.u32 %v1917, 16
      %v1944 = vrot.slane %v1942, 4
      %v1945 = vshll.u32 %v1917, 16
      %v1947 = vrot.slane %v1945, 5
      %v1948 = vor.u32 %v1944, %v1947
      %v1949 = vsel %vm1932, %v1940, %v1948
      %v1951 = vshrl.u32 %v1918, 16
      %v1953 = vrot.slane %v1951, 4
      %v1954 = vshll.u32 %v1918, 16
      %v1956 = vrot.slane %v1954, 5
      %v1957 = vor.u32 %v1953, %v1956
      %v1958 = vsel %vm1932, %v1948, %v1957
      %v1960 = vshrl.u32 %v1919, 16
      %v1962 = vrot.slane %v1960, 4
      %v1963 = vshll.u32 %v1919, 16
      %v1965 = vrot.slane %v1963, 5
      %v1966 = vor.u32 %v1962, %v1965
      %v1967 = vsel %vm1932, %v1957, %v1966
      %v1969 = vshrl.u32 %v1920, 16
      %v1971 = vrot.slane %v1969, 4
      %v1972 = vshll.u32 %v1920, 16
      %v1974 = vrot.slane %v1972, 5
      %v1975 = vor.u32 %v1971, %v1974
      %v1976 = vsel %vm1932, %v1966, %v1975
      %v1978 = vshrl.u32 %v1921, 16
      %v1980 = vrot.slane %v1978, 4
      %v1981 = vshll.u32 %v1921, 16
      %v1983 = vrot.slane %v1981, 5
      %v1984 = vor.u32 %v1980, %v1983
      %v1985 = vsel %vm1932, %v1975, %v1984
      %v1987 = vshrl.u32 %v1922, 16
      %v1989 = vrot.slane %v1987, 4
      %v1990 = vshll.u32 %v1922, 16
      %v1992 = vrot.slane %v1990, 5
      %v1993 = vor.u32 %v1989, %v1992
      %v1994 = vsel %vm1932, %v1984, %v1993
      %v1996 = vshrl.u32 %v1923, 16
      %v1998 = vrot.slane %v1996, 4
      %v1999 = vshll.u32 %v1923, 16
      %v2001 = vrot.slane %v1999, 5
      %v2002 = vor.u32 %v1998, %v2001
      %v2003 = vsel %vm1932, %v1993, %v2002
      %v2005 = vshrl.u32 %v1924, 16
      %v2007 = vrot.slane %v2005, 4
      %v2008 = vshll.u32 %v1924, 16
      %v2010 = vrot.slane %v2008, 5
      %v2011 = vor.u32 %v2007, %v2010
      %v2012 = vsel %vm1932, %v2002, %v2011
      %v2014 = vshrl.u32 %v1925, 16
      %v2016 = vrot.slane %v2014, 4
      %v2017 = vshll.u32 %v1925, 16
      %v2019 = vrot.slane %v2017, 5
      %v2020 = vor.u32 %v2016, %v2019
      %v2021 = vsel %vm1932, %v2011, %v2020
      %v2023 = vshrl.u32 %v1926, 16
      %v2025 = vrot.slane %v2023, 4
      %v2026 = vshll.u32 %v1926, 16
      %v2028 = vrot.slane %v2026, 5
      %v2029 = vor.u32 %v2025, %v2028
      %v2030 = vsel %vm1932, %v2020, %v2029
      %v2032 = vshrl.u32 %v1927, 16
      %v2034 = vrot.slane %v2032, 4
      %v2035 = vshll.u32 %v1927, 16
      %v2037 = vrot.slane %v2035, 5
      %v2038 = vor.u32 %v2034, %v2037
      %v2039 = vsel %vm1932, %v2029, %v2038
      %v2041 = vshrl.u32 %v1928, 16
      %v2043 = vrot.slane %v2041, 4
      %v2044 = vshll.u32 %v1928, 16
      %v2046 = vrot.slane %v2044, 5
      %v2047 = vor.u32 %v2043, %v2046
      %v2048 = vsel %vm1932, %v2038, %v2047
      %v2050 = vshrl.u32 %v1929, 16
      %v2052 = vrot.slane %v2050, 4
      %v2053 = vshll.u32 %v1929, 16
      %v2055 = vrot.slane %v2053, 5
      %v2056 = vor.u32 %v2052, %v2055
      %v2057 = vsel %vm1932, %v2047, %v2056
      %v2059 = vshrl.u32 %v1930, 16
      %v2061 = vrot.slane %v2059, 4
      %v2062 = vshll.u32 %v1930, 16
      %v2064 = vrot.slane %v2062, 5
      %v2065 = vor.u32 %v2061, %v2064
      %v2066 = vsel %vm1932, %v2056, %v2065
      %v2068 = vshrl.u32 %v1931, 16
      %v2070 = vrot.slane %v2068, 4
      %v2071 = vshll.u32 %v1931, 16
      %v2073 = vrot.slane %v2071, 5
      %v2074 = vor.u32 %v2070, %v2073
      %v2075 = vsel %vm1932, %v2065, %v2074
      %vm2076 = vcmp.ne.s16.totalorder %v1940, 0
      %vm2077 = vcmp.ne.s16.totalorder %v1949, 0
      %vm2078 = vcmp.ne.s16.totalorder %v1958, 0
      %vm2079 = vcmp.ne.s16.totalorder %v1967, 0
      %vm2080 = vcmp.ne.s16.totalorder %v1976, 0
      %vm2081 = vcmp.ne.s16.totalorder %v1985, 0
      %vm2082 = vcmp.ne.s16.totalorder %v1994, 0
      %vm2083 = vcmp.ne.s16.totalorder %v2003, 0
      %vm2084 = vcmp.ne.s16.totalorder %v2012, 0
      %vm2085 = vcmp.ne.s16.totalorder %v2021, 0
      %vm2086 = vcmp.ne.s16.totalorder %v2030, 0
      %vm2087 = vcmp.ne.s16.totalorder %v2039, 0
      %vm2088 = vcmp.ne.s16.totalorder %v2048, 0
      %vm2089 = vcmp.ne.s16.totalorder %v2057, 0
      %vm2090 = vcmp.ne.s16.totalorder %v2066, 0
      %vm2091 = vcmp.ne.s16.totalorder %v2075, 0
      %vm2092 = vcmp.ne.s16.totalorder %v2074, 0
      %v2093 = vsel %vm2076, %v1698, 0
      %v2094 = vsel %vm2076, %v1738, 0
      %v2095 = vsel %vm2076, %v1750, 0
      %v2096 = vsel %vm2077, %v1699, 0
      %v2097 = vsel %vm2077, %v1700, 0
      %v2098 = vsel %vm2077, %v1701, 0
      %v2099 = vsel %vm2078, %v1700, 0
      %v2100 = vsel %vm2078, %v1701, 0
      %v2101 = vsel %vm2078, %v1702, 0
      %v2102 = vsel %vm2079, %v1701, 0
      %v2103 = vsel %vm2079, %v1702, 0
      %v2104 = vsel %vm2079, %v1703, 0
      %v2105 = vsel %vm2080, %v1702, 0
      %v2106 = vsel %vm2080, %v1703, 0
      %v2107 = vsel %vm2080, %v1704, 0
      %v2108 = vsel %vm2081, %v1703, 0
      %v2109 = vsel %vm2081, %v1704, 0
      %v2110 = vsel %vm2081, %v1705, 0
      %v2111 = vsel %vm2082, %v1704, 0
      %v2112 = vsel %vm2082, %v1705, 0
      %v2113 = vsel %vm2082, %v1706, 0
      %v2114 = vsel %vm2083, %v1705, 0
      %v2115 = vsel %vm2083, %v1706, 0
      %v2116 = vsel %vm2083, %v1707, 0
      %v2117 = vsel %vm2084, %v1706, 0
      %v2118 = vsel %vm2084, %v1707, 0
      %v2119 = vsel %vm2084, %v1708, 0
      %v2120 = vsel %vm2085, %v1707, 0
      %v2121 = vsel %vm2085, %v1708, 0
      %v2122 = vsel %vm2085, %v1709, 0
      %v2123 = vsel %vm2086, %v1708, 0
      %v2124 = vsel %vm2086, %v1709, 0
      %v2125 = vsel %vm2086, %v1710, 0
      %v2126 = vsel %vm2087, %v1709, 0
      %v2127 = vsel %vm2087, %v1710, 0
      %v2128 = vsel %vm2087, %v1711, 0
      %v2129 = vsel %vm2088, %v1710, 0
      %v2130 = vsel %vm2088, %v1711, 0
      %v2131 = vsel %vm2088, %v1712, 0
      %v2132 = vsel %vm2089, %v1711, 0
      %v2133 = vsel %vm2089, %v1712, 0
      %v2134 = vsel %vm2089, %v1713, 0
      %v2135 = vsel %vm2090, %v1712, 0
      %v2136 = vsel %vm2090, %v1713, 0
      %v2137 = vsel %vm2090, %v1739, 0
      %v2138 = vsel %vm2091, %v1713, 0
      %v2139 = vsel %vm2091, %v1739, 0
      %v2140 = vsel %vm2091, %v1751, 0
      %v2141 = vsel %vm2092, %v1714, 0
      %v2142 = vsel %vm2092, %v1740, 0
      %v2143 = vsel %vm2092, %v1752, 0
      %v2144 = vld [vmem:[%s7] sm:$0xf]
      %v2145 = vld [vmem:[%s7 + $0x4] sm:$0xf]
      %v2146 = vld [vmem:[%s7 + $0x8] sm:$0xf]
      %v2147 = vld [vmem:[%s7 + $0xc] sm:$0xf]
      %v2148 = vld [vmem:[%s7 + $0x10] sm:$0xf]
      %v2149 = vld [vmem:[%s7 + $0x14] sm:$0xf]
      %v2150 = vld [vmem:[%s7 + $0x18] sm:$0xf]
      %v2151 = vld [vmem:[%s7 + $0x1c] sm:$0xf]
      %v2152 = vld [vmem:[%s7 + $0x20] sm:$0xf]
      %v2153 = vld [vmem:[%s7 + $0x24] sm:$0xf]
      %v2154 = vld [vmem:[%s7 + $0x28] sm:$0xf]
      %v2155 = vld [vmem:[%s7 + $0x2c] sm:$0xf]
      %v2156 = vld [vmem:[%s7 + $0x30] sm:$0xf]
      %v2157 = vld [vmem:[%s7 + $0x34] sm:$0xf]
      %v2158 = vld [vmem:[%s7 + $0x38] sm:$0xf]
      %v2159 = vld [vmem:[%s7 + $0x3c] sm:$0xf]
      %v2160 = vld [vmem:[%s7 + $0x40] sm:$0xf]
      %v2161 = vld [vmem:[%s7 + $0x44] sm:$0xf]
      %v2162 = vld [vmem:[%s7 + $0x48] sm:$0xf]
      %v2163 = vld [vmem:[%s7 + $0x4c] sm:$0xf]
      %v2164 = vld [vmem:[%s7 + $0x50] sm:$0xf]
      %v2165 = vld [vmem:[%s7 + $0x54] sm:$0xf]
      %v2166 = vld [vmem:[%s7 + $0x58] sm:$0xf]
      %v2167 = vld [vmem:[%s7 + $0x5c] sm:$0xf]
      %v2168 = vld [vmem:[%s7 + $0x60] sm:$0xf]
      %v2169 = vld [vmem:[%s7 + $0x64] sm:$0xf]
      %v2170 = vld [vmem:[%s7 + $0x68] sm:$0xf]
      %v2171 = vld [vmem:[%s7 + $0x6c] sm:$0xf]
      %v2172 = vld [vmem:[%s7 + $0x70] sm:$0xf]
      %v2173 = vld [vmem:[%s7 + $0x74] sm:$0xf]
      %v2174 = vld [vmem:[%s7 + $0x78] sm:$0xf]
      %v2175 = vld [vmem:[%s7 + $0x7c] sm:$0xf]
      %v2176 = vld [vmem:[%s7 + $0x80] sm:$0xf]
      %v2177 = vld [vmem:[%s7 + $0x84] sm:$0xf]
      %v2178 = vld [vmem:[%s7 + $0x88] sm:$0xf]
      %v2179 = vld [vmem:[%s7 + $0x8c] sm:$0xf]
      %v2180 = vld [vmem:[%s7 + $0x90] sm:$0xf]
      %v2181 = vld [vmem:[%s7 + $0x94] sm:$0xf]
      %v2182 = vld [vmem:[%s7 + $0x98] sm:$0xf]
      %v2183 = vld [vmem:[%s7 + $0x9c] sm:$0xf]
      %v2184 = vld [vmem:[%s7 + $0xa0] sm:$0xf]
      %v2185 = vld [vmem:[%s7 + $0xa4] sm:$0xf]
      %v2186 = vld [vmem:[%s7 + $0xa8] sm:$0xf]
      %v2187 = vld [vmem:[%s7 + $0xac] sm:$0xf]
      %v2188 = vld [vmem:[%s7 + $0xb0] sm:$0xf]
      %v2189 = vld [vmem:[%s7 + $0xb4] sm:$0xf]
      %v2190 = vld [vmem:[%s7 + $0xb8] sm:$0xf]
      %v2191 = vld [vmem:[%s7 + $0xbc] sm:$0xf]
      %v2192 = vpack.c.b16 %v1667, %v1666
      %v2193 = vpack.c.b16 %v1669, %v1668
      %v2194 = vpack.c.b16 %v1671, %v1670
      %v2195 = vpack.c.b16 %v1673, %v1672
      %v2196 = vpack.c.b16 %v1675, %v1674
      %v2197 = vpack.c.b16 %v1677, %v1676
      %v2198 = vpack.c.b16 %v1679, %v1678
      %v2199 = vpack.c.b16 %v1681, %v1680
      %v2200 = vpack.c.b16 %v1683, %v1682
      %v2201 = vpack.c.b16 %v1685, %v1684
      %v2202 = vpack.c.b16 %v1687, %v1686
      %v2203 = vpack.c.b16 %v1689, %v1688
      %v2204 = vpack.c.b16 %v1691, %v1690
      %v2205 = vpack.c.b16 %v1693, %v1692
      %v2206 = vpack.c.b16 %v1695, %v1694
      %v2207 = vpack.c.b16 %v1697, %v1696
      %v2224 = vpack.c.b16 %v1737, %v1736
      %v2225 = vpack.c.b16 %v1749, %v1748
      %s2228 = scalar_lea.vmem %s7, 192
      %v2229 = vld [vmem:[%s2228] sm:$0xf]
      %v2230 = vld [vmem:[%s2228 + $0x4] sm:$0xf]
      %v2231 = vld [vmem:[%s2228 + $0x8] sm:$0xf]
      %v2232 = vld [vmem:[%s2228 + $0xc] sm:$0xf]
      %v2233 = vld [vmem:[%s2228 + $0x10] sm:$0xf]
      %v2234 = vld [vmem:[%s2228 + $0x14] sm:$0xf]
      %v2235 = vld [vmem:[%s2228 + $0x18] sm:$0xf]
      %v2236 = vld [vmem:[%s2228 + $0x1c] sm:$0xf]
      %v2237 = vld [vmem:[%s2228 + $0x20] sm:$0xf]
      %v2238 = vld [vmem:[%s2228 + $0x24] sm:$0xf]
      %v2239 = vld [vmem:[%s2228 + $0x28] sm:$0xf]
      %v2240 = vld [vmem:[%s2228 + $0x2c] sm:$0xf]
      %v2241 = vld [vmem:[%s2228 + $0x30] sm:$0xf]
      %v2242 = vld [vmem:[%s2228 + $0x34] sm:$0xf]
      %v2243 = vld [vmem:[%s2228 + $0x38] sm:$0xf]
      %v2244 = vld [vmem:[%s2228 + $0x3c] sm:$0xf]
      %v2245 = vld [vmem:[%s2228 + $0x40] sm:$0xf]
      %v2246 = vld [vmem:[%s2228 + $0x44] sm:$0xf]
      %v2247 = vld [vmem:[%s2228 + $0x48] sm:$0xf]
      %v2248 = vld [vmem:[%s2228 + $0x4c] sm:$0xf]
      %v2249 = vld [vmem:[%s2228 + $0x50] sm:$0xf]
      %v2250 = vld [vmem:[%s2228 + $0x54] sm:$0xf]
      %v2251 = vld [vmem:[%s2228 + $0x58] sm:$0xf]
      %v2252 = vld [vmem:[%s2228 + $0x5c] sm:$0xf]
      %v2253 = vld [vmem:[%s2228 + $0x60] sm:$0xf]
      %v2254 = vld [vmem:[%s2228 + $0x64] sm:$0xf]
      %v2255 = vld [vmem:[%s2228 + $0x68] sm:$0xf]
      %v2256 = vld [vmem:[%s2228 + $0x6c] sm:$0xf]
      %v2257 = vld [vmem:[%s2228 + $0x70] sm:$0xf]
      %v2258 = vld [vmem:[%s2228 + $0x74] sm:$0xf]
      %v2259 = vld [vmem:[%s2228 + $0x78] sm:$0xf]
      %v2260 = vld [vmem:[%s2228 + $0x7c] sm:$0xf]
      %v2261 = vld [vmem:[%s2228 + $0x80] sm:$0xf]
      %v2262 = vld [vmem:[%s2228 + $0x84] sm:$0xf]
      %v2263 = vld [vmem:[%s2228 + $0x88] sm:$0xf]
      %v2264 = vld [vmem:[%s2228 + $0x8c] sm:$0xf]
      %v2265 = vld [vmem:[%s2228 + $0x90] sm:$0xf]
      %v2266 = vld [vmem:[%s2228 + $0x94] sm:$0xf]
      %v2267 = vld [vmem:[%s2228 + $0x98] sm:$0xf]
      %v2268 = vld [vmem:[%s2228 + $0x9c] sm:$0xf]
      %v2269 = vld [vmem:[%s2228 + $0xa0] sm:$0xf]
      %v2270 = vld [vmem:[%s2228 + $0xa4] sm:$0xf]
      %v2271 = vld [vmem:[%s2228 + $0xa8] sm:$0xf]
      %v2272 = vld [vmem:[%s2228 + $0xac] sm:$0xf]
      %v2273 = vld [vmem:[%s2228 + $0xb0] sm:$0xf]
      %v2274 = vld [vmem:[%s2228 + $0xb4] sm:$0xf]
      %v2275 = vld [vmem:[%s2228 + $0xb8] sm:$0xf]
      %v2276 = vld [vmem:[%s2228 + $0xbc] sm:$0xf]
      %v2325 = vunpack.c.l.b16 %v2229
      %v2326 = vunpack.c.l.b16 %v2230
      %v2327 = vunpack.c.l.b16 %v2231
      %v2328 = vunpack.c.l.b16 %v2232
      %v2329 = vunpack.c.l.b16 %v2233
      %v2330 = vunpack.c.l.b16 %v2234
      %v2331 = vunpack.c.l.b16 %v2235
      %v2332 = vunpack.c.l.b16 %v2236
      %v2333 = vunpack.c.l.b16 %v2237
      %v2334 = vunpack.c.l.b16 %v2238
      %v2335 = vunpack.c.l.b16 %v2239
      %v2336 = vunpack.c.l.b16 %v2240
      %v2337 = vunpack.c.l.b16 %v2241
      %v2338 = vunpack.c.l.b16 %v2242
      %v2339 = vunpack.c.l.b16 %v2243
      %v2340 = vunpack.c.l.b16 %v2244
      %v2341 = vunpack.c.l.b16 %v2245
      %v2342 = vunpack.c.l.b16 %v2246
      %v2343 = vunpack.c.l.b16 %v2247
      %v2344 = vunpack.c.l.b16 %v2248
      %v2345 = vunpack.c.l.b16 %v2249
      %v2346 = vunpack.c.l.b16 %v2250
      %v2347 = vunpack.c.l.b16 %v2251
      %v2348 = vunpack.c.l.b16 %v2252
      %v2349 = vunpack.c.l.b16 %v2253
      %v2350 = vunpack.c.l.b16 %v2254
      %v2351 = vunpack.c.l.b16 %v2255
      %v2352 = vunpack.c.l.b16 %v2256
      %v2353 = vunpack.c.l.b16 %v2257
      %v2354 = vunpack.c.l.b16 %v2258
      %v2355 = vunpack.c.l.b16 %v2259
      %v2356 = vunpack.c.l.b16 %v2260
      %v2357 = vunpack.c.l.b16 %v2261
      %v2358 = vunpack.c.l.b16 %v2262
      %v2359 = vunpack.c.l.b16 %v2263
      %v2360 = vunpack.c.l.b16 %v2264
      %v2361 = vunpack.c.l.b16 %v2265
      %v2362 = vunpack.c.l.b16 %v2266
      %v2363 = vunpack.c.l.b16 %v2267
      %v2364 = vunpack.c.l.b16 %v2268
      %v2365 = vunpack.c.l.b16 %v2269
      %v2366 = vunpack.c.l.b16 %v2270
      %v2367 = vunpack.c.l.b16 %v2271
      %v2368 = vunpack.c.l.b16 %v2272
      %v2369 = vunpack.c.l.b16 %v2273
      %v2370 = vunpack.c.l.b16 %v2274
      %v2371 = vunpack.c.l.b16 %v2275
      %v2372 = vunpack.c.l.b16 %v2276
      %v2373 = vpack.c.b16 %v2326, %v2325
      %v2374 = vpack.c.b16 %v2328, %v2327
      %v2375 = vpack.c.b16 %v2330, %v2329
      %v2376 = vpack.c.b16 %v2332, %v2331
      %v2377 = vpack.c.b16 %v2334, %v2333
      %v2378 = vpack.c.b16 %v2336, %v2335
      %v2379 = vpack.c.b16 %v2338, %v2337
      %v2380 = vpack.c.b16 %v2340, %v2339
      %v2381 = vpack.c.b16 %v2342, %v2341
      %v2382 = vpack.c.b16 %v2344, %v2343
      %v2383 = vpack.c.b16 %v2346, %v2345
      %v2384 = vpack.c.b16 %v2348, %v2347
      %v2385 = vpack.c.b16 %v2350, %v2349
      %v2386 = vpack.c.b16 %v2352, %v2351
      %v2387 = vpack.c.b16 %v2354, %v2353
      %v2388 = vpack.c.b16 %v2356, %v2355
      %v2389 = vpack.c.b16 %v2358, %v2357
      %v2390 = vpack.c.b16 %v2360, %v2359
      %v2391 = vpack.c.b16 %v2362, %v2361
      %v2392 = vpack.c.b16 %v2364, %v2363
      %v2393 = vpack.c.b16 %v2366, %v2365
      %v2394 = vpack.c.b16 %v2368, %v2367
      %v2395 = vpack.c.b16 %v2370, %v2369
      %v2396 = vpack.c.b16 %v2372, %v2371
      %2421 = vmatprep.subr.bf16.mxu0 0
      %2422 = vmatpush1.bf16.msra.mxu0 %v2380
      %2423 = vmatprep.subr.bf16.mxu0 0
      %2424 = vmatpush1.bf16.msra.mxu0 %v2379
      %2425 = vmatprep.subr.bf16.mxu0 0
      %2426 = vmatpush1.bf16.msra.mxu0 %v2378
      %2427 = vmatprep.subr.bf16.mxu0 0
      %2428 = vmatpush1.bf16.msra.mxu0 %v2377
      %2429 = vmatprep.subr.bf16.mxu0 0
      %2430 = vmatpush1.bf16.msra.mxu0 %v2376
      %2431 = vmatprep.subr.bf16.mxu0 0
      %2432 = vmatpush1.bf16.msra.mxu0 %v2375
      %2433 = vmatprep.subr.bf16.mxu0 0
      %2434 = vmatpush1.bf16.msra.mxu0 %v2374
      %2435 = vmatprep.subr.bf16.mxu0 0
      %2436 = vmatpush1.bf16.msra.mxu0 %v2373
      %2437 = vmatprep.subr.bf16.mxu0 0
      %2438 = vmatpush2.bf16.msra.mxu0 %v2388
      %2439 = vmatprep.subr.bf16.mxu0 0
      %2440 = vmatpush2.bf16.msra.mxu0 %v2387
      %2441 = vmatprep.subr.bf16.mxu0 0
      %2442 = vmatpush2.bf16.msra.mxu0 %v2386
      %2443 = vmatprep.subr.bf16.mxu0 0
      %2444 = vmatpush2.bf16.msra.mxu0 %v2385
      %2445 = vmatprep.subr.bf16.mxu0 0
      %2446 = vmatpush2.bf16.msra.mxu0 %v2384
      %2447 = vmatprep.subr.bf16.mxu0 0
      %2448 = vmatpush2.bf16.msra.mxu0 %v2383
      %2449 = vmatprep.subr.bf16.mxu0 0
      %2450 = vmatpush2.bf16.msra.mxu0 %v2382
      %2451 = vmatprep.subr.bf16.mxu0 0
      %2452 = vmatpush2.bf16.msra.mxu0 %v2381
      %2453 = vmatprep.mubr.bf16.mxu0 %v944
      %2454 = vmatmul.mubr.bf16.gmra.mxu0 %v2192
      %v2455 = vpop.f32.mrf.mxu0
      %v2456 = vadd.f32 0.0, %v2455
      %v2457 = vpop.f32.mrf.mxu0
      %v2458 = vpop.f32.mrf.mxu0
      %v2459 = vadd.f32 0.0, %v2458
      %v2460 = vpop.f32.mrf.mxu0
      %2461 = vmatprep.mubr.bf16.mxu0 %v945
      %2462 = vmatmul.mubr.bf16.gmra.mxu0 %v2193
      %v2463 = vpop.f32.mrf.mxu0
      %v2464 = vadd.f32 0.0, %v2463
      %v2465 = vpop.f32.mrf.mxu0
      %v2466 = vpop.f32.mrf.mxu0
      %v2467 = vadd.f32 0.0, %v2466
      %v2468 = vpop.f32.mrf.mxu0
      %2469 = vmatprep.mubr.bf16.mxu0 %v946
      %2470 = vmatmul.mubr.bf16.gmra.mxu0 %v2194
      %v2471 = vpop.f32.mrf.mxu0
      %v2472 = vadd.f32 0.0, %v2471
      %v2473 = vpop.f32.mrf.mxu0
      %v2474 = vpop.f32.mrf.mxu0
      %v2475 = vadd.f32 0.0, %v2474
      %v2476 = vpop.f32.mrf.mxu0
      %2477 = vmatprep.mubr.bf16.mxu0 %v947
      %2478 = vmatmul.mubr.bf16.gmra.mxu0 %v2195
      %v2479 = vpop.f32.mrf.mxu0
      %v2480 = vadd.f32 0.0, %v2479
      %v2481 = vpop.f32.mrf.mxu0
      %v2482 = vpop.f32.mrf.mxu0
      %v2483 = vadd.f32 0.0, %v2482
      %v2484 = vpop.f32.mrf.mxu0
      %2485 = vmatprep.mubr.bf16.mxu0 %v948
      %2486 = vmatmul.mubr.bf16.gmra.mxu0 %v2196
      %v2487 = vpop.f32.mrf.mxu0
      %v2488 = vadd.f32 0.0, %v2487
      %v2489 = vpop.f32.mrf.mxu0
      %v2490 = vpop.f32.mrf.mxu0
      %v2491 = vadd.f32 0.0, %v2490
      %v2492 = vpop.f32.mrf.mxu0
      %2493 = vmatprep.mubr.bf16.mxu0 %v949
      %2494 = vmatmul.mubr.bf16.gmra.mxu0 %v2197
      %v2495 = vpop.f32.mrf.mxu0
      %v2496 = vadd.f32 0.0, %v2495
      %v2497 = vpop.f32.mrf.mxu0
      %v2498 = vpop.f32.mrf.mxu0
      %v2499 = vadd.f32 0.0, %v2498
      %v2500 = vpop.f32.mrf.mxu0
      %2501 = vmatprep.mubr.bf16.mxu0 %v950
      %2502 = vmatmul.mubr.bf16.gmra.mxu0 %v2198
      %v2503 = vpop.f32.mrf.mxu0
      %v2504 = vadd.f32 0.0, %v2503
      %v2505 = vpop.f32.mrf.mxu0
      %v2506 = vpop.f32.mrf.mxu0
      %v2507 = vadd.f32 0.0, %v2506
      %v2508 = vpop.f32.mrf.mxu0
      %2509 = vmatprep.mubr.bf16.mxu0 %v951
      %2510 = vmatmul.mubr.bf16.gmra.mxu0 %v2199
      %v2511 = vpop.f32.mrf.mxu0
      %v2512 = vadd.f32 0.0, %v2511
      %v2513 = vpop.f32.mrf.mxu0
      %v2514 = vpop.f32.mrf.mxu0
      %v2515 = vadd.f32 0.0, %v2514
      %v2516 = vpop.f32.mrf.mxu0
      %2517 = vmatprep.mubr.bf16.mxu0 %v952
      %2518 = vmatmul.mubr.bf16.gmra.mxu0 %v2200
      %v2519 = vpop.f32.mrf.mxu0
      %v2520 = vadd.f32 0.0, %v2519
      %v2521 = vpop.f32.mrf.mxu0
      %v2522 = vpop.f32.mrf.mxu0
      %v2523 = vadd.f32 0.0, %v2522
      %v2524 = vpop.f32.mrf.mxu0
      %2525 = vmatprep.mubr.bf16.mxu0 %v953
      %2526 = vmatmul.mubr.bf16.gmra.mxu0 %v2201
      %v2527 = vpop.f32.mrf.mxu0
      %v2528 = vadd.f32 0.0, %v2527
      %v2529 = vpop.f32.mrf.mxu0
      %v2530 = vpop.f32.mrf.mxu0
      %v2531 = vadd.f32 0.0, %v2530
      %v2532 = vpop.f32.mrf.mxu0
      %2533 = vmatprep.mubr.bf16.mxu0 %v954
      %2534 = vmatmul.mubr.bf16.gmra.mxu0 %v2202
      %v2535 = vpop.f32.mrf.mxu0
      %v2536 = vadd.f32 0.0, %v2535
      %v2537 = vpop.f32.mrf.mxu0
      %v2538 = vpop.f32.mrf.mxu0
      %v2539 = vadd.f32 0.0, %v2538
      %v2540 = vpop.f32.mrf.mxu0
      %2541 = vmatprep.mubr.bf16.mxu0 %v955
      %2542 = vmatmul.mubr.bf16.gmra.mxu0 %v2203
      %v2543 = vpop.f32.mrf.mxu0
      %v2544 = vadd.f32 0.0, %v2543
      %v2545 = vpop.f32.mrf.mxu0
      %v2546 = vpop.f32.mrf.mxu0
      %v2547 = vadd.f32 0.0, %v2546
      %v2548 = vpop.f32.mrf.mxu0
      %2549 = vmatprep.mubr.bf16.mxu0 %v956
      %2550 = vmatmul.mubr.bf16.gmra.mxu0 %v2204
      %v2551 = vpop.f32.mrf.mxu0
      %v2552 = vadd.f32 0.0, %v2551
      %v2553 = vpop.f32.mrf.mxu0
      %v2554 = vpop.f32.mrf.mxu0
      %v2555 = vadd.f32 0.0, %v2554
      %v2556 = vpop.f32.mrf.mxu0
      %2557 = vmatprep.mubr.bf16.mxu0 %v957
      %2558 = vmatmul.mubr.bf16.gmra.mxu0 %v2205
      %v2559 = vpop.f32.mrf.mxu0
      %v2560 = vadd.f32 0.0, %v2559
      %v2561 = vpop.f32.mrf.mxu0
      %v2562 = vpop.f32.mrf.mxu0
      %v2563 = vadd.f32 0.0, %v2562
      %v2564 = vpop.f32.mrf.mxu0
      %2565 = vmatprep.mubr.bf16.mxu0 %v958
      %2566 = vmatmul.mubr.bf16.gmra.mxu0 %v2206
      %v2567 = vpop.f32.mrf.mxu0
      %v2568 = vadd.f32 0.0, %v2567
      %v2569 = vpop.f32.mrf.mxu0
      %v2570 = vpop.f32.mrf.mxu0
      %v2571 = vadd.f32 0.0, %v2570
      %v2572 = vpop.f32.mrf.mxu0
      %2573 = vmatprep.mubr.bf16.mxu0 %v959
      %2574 = vmatmul.mubr.bf16.gmra.mxu0 %v2207
      %v2575 = vpop.f32.mrf.mxu0
      %v2576 = vadd.f32 0.0, %v2575
      %v2577 = vpop.f32.mrf.mxu0
      %v2578 = vpop.f32.mrf.mxu0
      %v2579 = vadd.f32 0.0, %v2578
      %v2580 = vpop.f32.mrf.mxu0
      %2581 = vdwg.mxu0
      %2582 = vmatprep.subr.bf16.mxu0 0
      %2583 = vmatpush1.bf16.msra.mxu0 %v2396
      %2584 = vmatprep.subr.bf16.mxu0 0
      %2585 = vmatpush1.bf16.msra.mxu0 %v2395
      %2586 = vmatprep.subr.bf16.mxu0 0
      %2587 = vmatpush1.bf16.msra.mxu0 %v2394
      %2588 = vmatprep.subr.bf16.mxu0 0
      %2589 = vmatpush1.bf16.msra.mxu0 %v2393
      %2590 = vmatprep.subr.bf16.mxu0 0
      %2591 = vmatpush1.bf16.msra.mxu0 %v2392
      %2592 = vmatprep.subr.bf16.mxu0 0
      %2593 = vmatpush1.bf16.msra.mxu0 %v2391
      %2594 = vmatprep.subr.bf16.mxu0 0
      %2595 = vmatpush1.bf16.msra.mxu0 %v2390
      %2596 = vmatprep.subr.bf16.mxu0 0
      %2597 = vmatpush1.bf16.msra.mxu0 %v2389
      %2598 = vmatprep.subr.bf16.mxu0 0
      %2599 = vmatpush2.bf16.msra.mxu0 0
      %2600 = vmatprep.subr.bf16.mxu0 0
      %2601 = vmatpush2.bf16.msra.mxu0 0
      %2602 = vmatprep.subr.bf16.mxu0 0
      %2603 = vmatpush2.bf16.msra.mxu0 0
      %2604 = vmatprep.subr.bf16.mxu0 0
      %2605 = vmatpush2.bf16.msra.mxu0 0
      %2606 = vmatprep.subr.bf16.mxu0 0
      %2607 = vmatpush2.bf16.msra.mxu0 0
      %2608 = vmatprep.subr.bf16.mxu0 0
      %2609 = vmatpush2.bf16.msra.mxu0 0
      %2610 = vmatprep.subr.bf16.mxu0 0
      %2611 = vmatpush2.bf16.msra.mxu0 0
      %2612 = vmatprep.subr.bf16.mxu0 0
      %2613 = vmatpush2.bf16.msra.mxu0 0
      %2614 = vmatprep.mubr.bf16.mxu0 0
      %2615 = vmatmul.mubr.bf16.gmra.mxu0 %v2194
      %v2616 = vpop.f32.mrf.mxu0
      %v2617 = vadd.f32 %v2456, %v2616
      %v2618 = vpop.f32.mrf.mxu0
      %v2619 = vpop.f32.mrf.mxu0
      %v2620 = vadd.f32 %v2459, %v2619
      %v2621 = vpop.f32.mrf.mxu0
      %2622 = vmatprep.mubr.bf16.mxu0 0
      %2623 = vmatmul.mubr.bf16.gmra.mxu0 %v2195
      %v2624 = vpop.f32.mrf.mxu0
      %v2625 = vadd.f32 %v2464, %v2624
      %v2626 = vpop.f32.mrf.mxu0
      %v2627 = vpop.f32.mrf.mxu0
      %v2628 = vadd.f32 %v2467, %v2627
      %v2629 = vpop.f32.mrf.mxu0
      %2630 = vmatprep.mubr.bf16.mxu0 0
      %2631 = vmatmul.mubr.bf16.gmra.mxu0 %v2196
      %v2632 = vpop.f32.mrf.mxu0
      %v2633 = vadd.f32 %v2472, %v2632
      %v2634 = vpop.f32.mrf.mxu0
      %v2635 = vpop.f32.mrf.mxu0
      %v2636 = vadd.f32 %v2475, %v2635
      %v2637 = vpop.f32.mrf.mxu0
      %2638 = vmatprep.mubr.bf16.mxu0 0
      %2639 = vmatmul.mubr.bf16.gmra.mxu0 %v2197
      %v2640 = vpop.f32.mrf.mxu0
      %v2641 = vadd.f32 %v2480, %v2640
      %v2642 = vpop.f32.mrf.mxu0
      %v2643 = vpop.f32.mrf.mxu0
      %v2644 = vadd.f32 %v2483, %v2643
      %v2645 = vpop.f32.mrf.mxu0
      %2646 = vmatprep.mubr.bf16.mxu0 0
      %2647 = vmatmul.mubr.bf16.gmra.mxu0 %v2198
      %v2648 = vpop.f32.mrf.mxu0
      %v2649 = vadd.f32 %v2488, %v2648
      %v2650 = vpop.f32.mrf.mxu0
      %v2651 = vpop.f32.mrf.mxu0
      %v2652 = vadd.f32 %v2491, %v2651
      %v2653 = vpop.f32.mrf.mxu0
      %2654 = vmatprep.mubr.bf16.mxu0 0
      %2655 = vmatmul.mubr.bf16.gmra.mxu0 %v2199
      %v2656 = vpop.f32.mrf.mxu0
      %v2657 = vadd.f32 %v2496, %v2656
      %v2658 = vpop.f32.mrf.mxu0
      %v2659 = vpop.f32.mrf.mxu0
      %v2660 = vadd.f32 %v2499, %v2659
      %v2661 = vpop.f32.mrf.mxu0
      %2662 = vmatprep.mubr.bf16.mxu0 0
      %2663 = vmatmul.mubr.bf16.gmra.mxu0 %v2200
      %v2664 = vpop.f32.mrf.mxu0
      %v2665 = vadd.f32 %v2504, %v2664
      %v2666 = vpop.f32.mrf.mxu0
      %v2667 = vpop.f32.mrf.mxu0
      %v2668 = vadd.f32 %v2507, %v2667
      %v2669 = vpop.f32.mrf.mxu0
      %2670 = vmatprep.mubr.bf16.mxu0 0
      %2671 = vmatmul.mubr.bf16.gmra.mxu0 %v2201
      %v2672 = vpop.f32.mrf.mxu0
      %v2673 = vadd.f32 %v2512, %v2672
      %v2674 = vpop.f32.mrf.mxu0
      %v2675 = vpop.f32.mrf.mxu0
      %v2676 = vadd.f32 %v2515, %v2675
      %v2677 = vpop.f32.mrf.mxu0
      %2678 = vmatprep.mubr.bf16.mxu0 0
      %2679 = vmatmul.mubr.bf16.gmra.mxu0 %v2202
      %v2680 = vpop.f32.mrf.mxu0
      %v2681 = vadd.f32 %v2520, %v2680
      %v2682 = vpop.f32.mrf.mxu0
      %v2683 = vpop.f32.mrf.mxu0
      %v2684 = vadd.f32 %v2523, %v2683
      %v2685 = vpop.f32.mrf.mxu0
      %2686 = vmatprep.mubr.bf16.mxu0 0
      %2687 = vmatmul.mubr.bf16.gmra.mxu0 %v2203
      %v2688 = vpop.f32.mrf.mxu0
      %v2689 = vadd.f32 %v2528, %v2688
      %v2690 = vpop.f32.mrf.mxu0
      %v2691 = vpop.f32.mrf.mxu0
      %v2692 = vadd.f32 %v2531, %v2691
      %v2693 = vpop.f32.mrf.mxu0
      %2694 = vmatprep.mubr.bf16.mxu0 0
      %2695 = vmatmul.mubr.bf16.gmra.mxu0 %v2204
      %v2696 = vpop.f32.mrf.mxu0
      %v2697 = vadd.f32 %v2536, %v2696
      %v2698 = vpop.f32.mrf.mxu0
      %v2699 = vpop.f32.mrf.mxu0
      %v2700 = vadd.f32 %v2539, %v2699
      %v2701 = vpop.f32.mrf.mxu0
      %2702 = vmatprep.mubr.bf16.mxu0 0
      %2703 = vmatmul.mubr.bf16.gmra.mxu0 %v2205
      %v2704 = vpop.f32.mrf.mxu0
      %v2705 = vadd.f32 %v2544, %v2704
      %v2706 = vpop.f32.mrf.mxu0
      %v2707 = vpop.f32.mrf.mxu0
      %v2708 = vadd.f32 %v2547, %v2707
      %v2709 = vpop.f32.mrf.mxu0
      %2710 = vmatprep.mubr.bf16.mxu0 0
      %2711 = vmatmul.mubr.bf16.gmra.mxu0 %v2206
      %v2712 = vpop.f32.mrf.mxu0
      %v2713 = vadd.f32 %v2552, %v2712
      %v2714 = vpop.f32.mrf.mxu0
      %v2715 = vpop.f32.mrf.mxu0
      %v2716 = vadd.f32 %v2555, %v2715
      %v2717 = vpop.f32.mrf.mxu0
      %2718 = vmatprep.mubr.bf16.mxu0 0
      %2719 = vmatmul.mubr.bf16.gmra.mxu0 %v2207
      %v2720 = vpop.f32.mrf.mxu0
      %v2721 = vadd.f32 %v2560, %v2720
      %v2722 = vpop.f32.mrf.mxu0
      %v2723 = vpop.f32.mrf.mxu0
      %v2724 = vadd.f32 %v2563, %v2723
      %v2725 = vpop.f32.mrf.mxu0
      %2726 = vmatprep.mubr.bf16.mxu0 0
      %2727 = vmatmul.mubr.bf16.gmra.mxu0 %v2224
      %v2728 = vpop.f32.mrf.mxu0
      %v2729 = vadd.f32 %v2568, %v2728
      %v2730 = vpop.f32.mrf.mxu0
      %v2731 = vpop.f32.mrf.mxu0
      %v2732 = vadd.f32 %v2571, %v2731
      %v2733 = vpop.f32.mrf.mxu0
      %2734 = vmatprep.mubr.bf16.mxu0 0
      %2735 = vmatmul.mubr.bf16.gmra.mxu0 %v2225
      %v2736 = vpop.f32.mrf.mxu0
      %v2737 = vadd.f32 %v2576, %v2736
      %v2738 = vpop.f32.mrf.mxu0
      %v2739 = vpop.f32.mrf.mxu0
      %v2740 = vadd.f32 %v2579, %v2739
      %v2741 = vpop.f32.mrf.mxu0
      %2742 = vdwg.mxu0
      %vm2743 = vsmask.f32 4352
      %v2745 = vshrl.u32 %v2093, 16
      %v2747 = vrot.slane %v2745, 3
      %v2748 = vshll.u32 %v2093, 16
      %v2750 = vrot.slane %v2748, 4
      %v2751 = vor.u32 %v2747, %v2750
      %v2753 = vshrl.u32 %v2096, 16
      %v2755 = vrot.slane %v2753, 3
      %v2756 = vshll.u32 %v2096, 16
      %v2758 = vrot.slane %v2756, 4
      %v2759 = vor.u32 %v2755, %v2758
      %v2760 = vsel %vm2743, %v2751, %v2759
      %v2762 = vshrl.u32 %v2094, 16
      %v2764 = vrot.slane %v2762, 3
      %v2765 = vshll.u32 %v2094, 16
      %v2767 = vrot.slane %v2765, 4
      %v2768 = vor.u32 %v2764, %v2767
      %v2770 = vshrl.u32 %v2097, 16
      %v2772 = vrot.slane %v2770, 3
      %v2773 = vshll.u32 %v2097, 16
      %v2775 = vrot.slane %v2773, 4
      %v2776 = vor.u32 %v2772, %v2775
      %v2777 = vsel %vm2743, %v2768, %v2776
      %v2779 = vshrl.u32 %v2095, 16
      %v2781 = vrot.slane %v2779, 3
      %v2782 = vshll.u32 %v2095, 16
      %v2784 = vrot.slane %v2782, 4
      %v2785 = vor.u32 %v2781, %v2784
      %v2787 = vshrl.u32 %v2098, 16
      %v2789 = vrot.slane %v2787, 3
      %v2790 = vshll.u32 %v2098, 16
      %v2792 = vrot.slane %v2790, 4
      %v2793 = vor.u32 %v2789, %v2792
      %v2794 = vsel %vm2743, %v2785, %v2793
      %v2796 = vshrl.u32 %v2099, 16
      %v2798 = vrot.slane %v2796, 3
      %v2799 = vshll.u32 %v2099, 16
      %v2801 = vrot.slane %v2799, 4
      %v2802 = vor.u32 %v2798, %v2801
      %v2803 = vsel %vm2743, %v2759, %v2802
      %v2805 = vshrl.u32 %v2100, 16
      %v2807 = vrot.slane %v2805, 3
      %v2808 = vshll.u32 %v2100, 16
      %v2810 = vrot.slane %v2808, 4
      %v2811 = vor.u32 %v2807, %v2810
      %v2812 = vsel %vm2743, %v2776, %v2811
      %v2814 = vshrl.u32 %v2101, 16
      %v2816 = vrot.slane %v2814, 3
      %v2817 = vshll.u32 %v2101, 16
      %v2819 = vrot.slane %v2817, 4
      %v2820 = vor.u32 %v2816, %v2819
      %v2821 = vsel %vm2743, %v2793, %v2820
      %v2823 = vshrl.u32 %v2102, 16
      %v2825 = vrot.slane %v2823, 3
      %v2826 = vshll.u32 %v2102, 16
      %v2828 = vrot.slane %v2826, 4
      %v2829 = vor.u32 %v2825, %v2828
      %v2830 = vsel %vm2743, %v2802, %v2829
      %v2832 = vshrl.u32 %v2103, 16
      %v2834 = vrot.slane %v2832, 3
      %v2835 = vshll.u32 %v2103, 16
      %v2837 = vrot.slane %v2835, 4
      %v2838 = vor.u32 %v2834, %v2837
      %v2839 = vsel %vm2743, %v2811, %v2838
      %v2841 = vshrl.u32 %v2104, 16
      %v2843 = vrot.slane %v2841, 3
      %v2844 = vshll.u32 %v2104, 16
      %v2846 = vrot.slane %v2844, 4
      %v2847 = vor.u32 %v2843, %v2846
      %v2848 = vsel %vm2743, %v2820, %v2847
      %v2850 = vshrl.u32 %v2105, 16
      %v2852 = vrot.slane %v2850, 3
      %v2853 = vshll.u32 %v2105, 16
      %v2855 = vrot.slane %v2853, 4
      %v2856 = vor.u32 %v2852, %v2855
      %v2857 = vsel %vm2743, %v2829, %v2856
      %v2859 = vshrl.u32 %v2106, 16
      %v2861 = vrot.slane %v2859, 3
      %v2862 = vshll.u32 %v2106, 16
      %v2864 = vrot.slane %v2862, 4
      %v2865 = vor.u32 %v2861, %v2864
      %v2866 = vsel %vm2743, %v2838, %v2865
      %v2868 = vshrl.u32 %v2107, 16
      %v2870 = vrot.slane %v2868, 3
      %v2871 = vshll.u32 %v2107, 16
      %v2873 = vrot.slane %v2871, 4
      %v2874 = vor.u32 %v2870, %v2873
      %v2875 = vsel %vm2743, %v2847, %v2874
      %v2877 = vshrl.u32 %v2108, 16
      %v2879 = vrot.slane %v2877, 3
      %v2880 = vshll.u32 %v2108, 16
      %v2882 = vrot.slane %v2880, 4
      %v2883 = vor.u32 %v2879, %v2882
      %v2884 = vsel %vm2743, %v2856, %v2883
      %v2886 = vshrl.u32 %v2109, 16
      %v2888 = vrot.slane %v2886, 3
      %v2889 = vshll.u32 %v2109, 16
      %v2891 = vrot.slane %v2889, 4
      %v2892 = vor.u32 %v2888, %v2891
      %v2893 = vsel %vm2743, %v2865, %v2892
      %v2895 = vshrl.u32 %v2110, 16
      %v2897 = vrot.slane %v2895, 3
      %v2898 = vshll.u32 %v2110, 16
      %v2900 = vrot.slane %v2898, 4
      %v2901 = vor.u32 %v2897, %v2900
      %v2902 = vsel %vm2743, %v2874, %v2901
      %v2904 = vshrl.u32 %v2111, 16
      %v2906 = vrot.slane %v2904, 3
      %v2907 = vshll.u32 %v2111, 16
      %v2909 = vrot.slane %v2907, 4
      %v2910 = vor.u32 %v2906, %v2909
      %v2911 = vsel %vm2743, %v2883, %v2910
      %v2913 = vshrl.u32 %v2112, 16
      %v2915 = vrot.slane %v2913, 3
      %v2916 = vshll.u32 %v2112, 16
      %v2918 = vrot.slane %v2916, 4
      %v2919 = vor.u32 %v2915, %v2918
      %v2920 = vsel %vm2743, %v2892, %v2919
      %v2922 = vshrl.u32 %v2113, 16
      %v2924 = vrot.slane %v2922, 3
      %v2925 = vshll.u32 %v2113, 16
      %v2927 = vrot.slane %v2925, 4
      %v2928 = vor.u32 %v2924, %v2927
      %v2929 = vsel %vm2743, %v2901, %v2928
      %v2931 = vshrl.u32 %v2114, 16
      %v2933 = vrot.slane %v2931, 3
      %v2934 = vshll.u32 %v2114, 16
      %v2936 = vrot.slane %v2934, 4
      %v2937 = vor.u32 %v2933, %v2936
      %v2938 = vsel %vm2743, %v2910, %v2937
      %v2940 = vshrl.u32 %v2115, 16
      %v2942 = vrot.slane %v2940, 3
      %v2943 = vshll.u32 %v2115, 16
      %v2945 = vrot.slane %v2943, 4
      %v2946 = vor.u32 %v2942, %v2945
      %v2947 = vsel %vm2743, %v2919, %v2946
      %v2949 = vshrl.u32 %v2116, 16
      %v2951 = vrot.slane %v2949, 3
      %v2952 = vshll.u32 %v2116, 16
      %v2954 = vrot.slane %v2952, 4
      %v2955 = vor.u32 %v2951, %v2954
      %v2956 = vsel %vm2743, %v2928, %v2955
      %v2958 = vshrl.u32 %v2117, 16
      %v2960 = vrot.slane %v2958, 3
      %v2961 = vshll.u32 %v2117, 16
      %v2963 = vrot.slane %v2961, 4
      %v2964 = vor.u32 %v2960, %v2963
      %v2965 = vsel %vm2743, %v2937, %v2964
      %v2967 = vshrl.u32 %v2118, 16
      %v2969 = vrot.slane %v2967, 3
      %v2970 = vshll.u32 %v2118, 16
      %v2972 = vrot.slane %v2970, 4
      %v2973 = vor.u32 %v2969, %v2972
      %v2974 = vsel %vm2743, %v2946, %v2973
      %v2976 = vshrl.u32 %v2119, 16
      %v2978 = vrot.slane %v2976, 3
      %v2979 = vshll.u32 %v2119, 16
      %v2981 = vrot.slane %v2979, 4
      %v2982 = vor.u32 %v2978, %v2981
      %v2983 = vsel %vm2743, %v2955, %v2982
      %v2985 = vshrl.u32 %v2120, 16
      %v2987 = vrot.slane %v2985, 3
      %v2988 = vshll.u32 %v2120, 16
      %v2990 = vrot.slane %v2988, 4
      %v2991 = vor.u32 %v2987, %v2990
      %v2992 = vsel %vm2743, %v2964, %v2991
      %v2994 = vshrl.u32 %v2121, 16
      %v2996 = vrot.slane %v2994, 3
      %v2997 = vshll.u32 %v2121, 16
      %v2999 = vrot.slane %v2997, 4
      %v3000 = vor.u32 %v2996, %v2999
      %v3001 = vsel %vm2743, %v2973, %v3000
      %v3003 = vshrl.u32 %v2122, 16
      %v3005 = vrot.slane %v3003, 3
      %v3006 = vshll.u32 %v2122, 16
      %v3008 = vrot.slane %v3006, 4
      %v3009 = vor.u32 %v3005, %v3008
      %v3010 = vsel %vm2743, %v2982, %v3009
      %v3012 = vshrl.u32 %v2123, 16
      %v3014 = vrot.slane %v3012, 3
      %v3015 = vshll.u32 %v2123, 16
      %v3017 = vrot.slane %v3015, 4
      %v3018 = vor.u32 %v3014, %v3017
      %v3019 = vsel %vm2743, %v2991, %v3018
      %v3021 = vshrl.u32 %v2124, 16
      %v3023 = vrot.slane %v3021, 3
      %v3024 = vshll.u32 %v2124, 16
      %v3026 = vrot.slane %v3024, 4
      %v3027 = vor.u32 %v3023, %v3026
      %v3028 = vsel %vm2743, %v3000, %v3027
      %v3030 = vshrl.u32 %v2125, 16
      %v3032 = vrot.slane %v3030, 3
      %v3033 = vshll.u32 %v2125, 16
      %v3035 = vrot.slane %v3033, 4
      %v3036 = vor.u32 %v3032, %v3035
      %v3037 = vsel %vm2743, %v3009, %v3036
      %v3039 = vshrl.u32 %v2126, 16
      %v3041 = vrot.slane %v3039, 3
      %v3042 = vshll.u32 %v2126, 16
      %v3044 = vrot.slane %v3042, 4
      %v3045 = vor.u32 %v3041, %v3044
      %v3046 = vsel %vm2743, %v3018, %v3045
      %v3048 = vshrl.u32 %v2127, 16
      %v3050 = vrot.slane %v3048, 3
      %v3051 = vshll.u32 %v2127, 16
      %v3053 = vrot.slane %v3051, 4
      %v3054 = vor.u32 %v3050, %v3053
      %v3055 = vsel %vm2743, %v3027, %v3054
      %v3057 = vshrl.u32 %v2128, 16
      %v3059 = vrot.slane %v3057, 3
      %v3060 = vshll.u32 %v2128, 16
      %v3062 = vrot.slane %v3060, 4
      %v3063 = vor.u32 %v3059, %v3062
      %v3064 = vsel %vm2743, %v3036, %v3063
      %v3066 = vshrl.u32 %v2129, 16
      %v3068 = vrot.slane %v3066, 3
      %v3069 = vshll.u32 %v2129, 16
      %v3071 = vrot.slane %v3069, 4
      %v3072 = vor.u32 %v3068, %v3071
      %v3073 = vsel %vm2743, %v3045, %v3072
      %v3075 = vshrl.u32 %v2130, 16
      %v3077 = vrot.slane %v3075, 3
      %v3078 = vshll.u32 %v2130, 16
      %v3080 = vrot.slane %v3078, 4
      %v3081 = vor.u32 %v3077, %v3080
      %v3082 = vsel %vm2743, %v3054, %v3081
      %v3084 = vshrl.u32 %v2131, 16
      %v3086 = vrot.slane %v3084, 3
      %v3087 = vshll.u32 %v2131, 16
      %v3089 = vrot.slane %v3087, 4
      %v3090 = vor.u32 %v3086, %v3089
      %v3091 = vsel %vm2743, %v3063, %v3090
      %v3093 = vshrl.u32 %v2132, 16
      %v3095 = vrot.slane %v3093, 3
      %v3096 = vshll.u32 %v2132, 16
      %v3098 = vrot.slane %v3096, 4
      %v3099 = vor.u32 %v3095, %v3098
      %v3100 = vsel %vm2743, %v3072, %v3099
      %v3102 = vshrl.u32 %v2133, 16
      %v3104 = vrot.slane %v3102, 3
      %v3105 = vshll.u32 %v2133, 16
      %v3107 = vrot.slane %v3105, 4
      %v3108 = vor.u32 %v3104, %v3107
      %v3109 = vsel %vm2743, %v3081, %v3108
      %v3111 = vshrl.u32 %v2134, 16
      %v3113 = vrot.slane %v3111, 3
      %v3114 = vshll.u32 %v2134, 16
      %v3116 = vrot.slane %v3114, 4
      %v3117 = vor.u32 %v3113, %v3116
      %v3118 = vsel %vm2743, %v3090, %v3117
      %v3120 = vshrl.u32 %v2135, 16
      %v3122 = vrot.slane %v3120, 3
      %v3123 = vshll.u32 %v2135, 16
      %v3125 = vrot.slane %v3123, 4
      %v3126 = vor.u32 %v3122, %v3125
      %v3127 = vsel %vm2743, %v3099, %v3126
      %v3129 = vshrl.u32 %v2136, 16
      %v3131 = vrot.slane %v3129, 3
      %v3132 = vshll.u32 %v2136, 16
      %v3134 = vrot.slane %v3132, 4
      %v3135 = vor.u32 %v3131, %v3134
      %v3136 = vsel %vm2743, %v3108, %v3135
      %v3138 = vshrl.u32 %v2137, 16
      %v3140 = vrot.slane %v3138, 3
      %v3141 = vshll.u32 %v2137, 16
      %v3143 = vrot.slane %v3141, 4
      %v3144 = vor.u32 %v3140, %v3143
      %v3145 = vsel %vm2743, %v3117, %v3144
      %v3147 = vshrl.u32 %v2138, 16
      %v3149 = vrot.slane %v3147, 3
      %v3150 = vshll.u32 %v2138, 16
      %v3152 = vrot.slane %v3150, 4
      %v3153 = vor.u32 %v3149, %v3152
      %v3154 = vsel %vm2743, %v3126, %v3153
      %v3156 = vshrl.u32 %v2139, 16
      %v3158 = vrot.slane %v3156, 3
      %v3159 = vshll.u32 %v2139, 16
      %v3161 = vrot.slane %v3159, 4
      %v3162 = vor.u32 %v3158, %v3161
      %v3163 = vsel %vm2743, %v3135, %v3162
      %v3165 = vshrl.u32 %v2140, 16
      %v3167 = vrot.slane %v3165, 3
      %v3168 = vshll.u32 %v2140, 16
      %v3170 = vrot.slane %v3168, 4
      %v3171 = vor.u32 %v3167, %v3170
      %v3172 = vsel %vm2743, %v3144, %v3171
      %v3174 = vshrl.u32 %v2141, 16
      %v3176 = vrot.slane %v3174, 3
      %v3177 = vshll.u32 %v2141, 16
      %v3179 = vrot.slane %v3177, 4
      %v3180 = vor.u32 %v3176, %v3179
      %v3181 = vsel %vm2743, %v3153, %v3180
      %v3183 = vshrl.u32 %v2142, 16
      %v3185 = vrot.slane %v3183, 3
      %v3186 = vshll.u32 %v2142, 16
      %v3188 = vrot.slane %v3186, 4
      %v3189 = vor.u32 %v3185, %v3188
      %v3190 = vsel %vm2743, %v3162, %v3189
      %v3192 = vshrl.u32 %v2143, 16
      %v3194 = vrot.slane %v3192, 3
      %v3195 = vshll.u32 %v2143, 16
      %v3197 = vrot.slane %v3195, 4
      %v3198 = vor.u32 %v3194, %v3197
      %v3199 = vsel %vm2743, %v3171, %v3198
      %v3296 = vunpack.c.l.b16 %v2144
      %v3297 = vunpack.c.l.b16 %v2145
      %v3298 = vunpack.c.l.b16 %v2146
      %v3299 = vunpack.c.l.b16 %v2147
      %v3300 = vunpack.c.l.b16 %v2148
      %v3301 = vunpack.c.l.b16 %v2149
      %v3302 = vunpack.c.l.b16 %v2150
      %v3303 = vunpack.c.l.b16 %v2151
      %v3304 = vunpack.c.l.b16 %v2152
      %v3305 = vunpack.c.l.b16 %v2153
      %v3306 = vunpack.c.l.b16 %v2154
      %v3307 = vunpack.c.l.b16 %v2155
      %v3308 = vunpack.c.l.b16 %v2156
      %v3309 = vunpack.c.l.b16 %v2157
      %v3310 = vunpack.c.l.b16 %v2158
      %v3311 = vunpack.c.l.b16 %v2159
      %v3312 = vunpack.c.l.b16 %v2160
      %v3313 = vunpack.c.l.b16 %v2161
      %v3314 = vunpack.c.l.b16 %v2162
      %v3315 = vunpack.c.l.b16 %v2163
      %v3316 = vunpack.c.l.b16 %v2164
      %v3317 = vunpack.c.l.b16 %v2165
      %v3318 = vunpack.c.l.b16 %v2166
      %v3319 = vunpack.c.l.b16 %v2167
      %v3320 = vunpack.c.l.b16 %v2168
      %v3321 = vunpack.c.l.b16 %v2169
      %v3322 = vunpack.c.l.b16 %v2170
      %v3323 = vunpack.c.l.b16 %v2171
      %v3324 = vunpack.c.l.b16 %v2172
      %v3325 = vunpack.c.l.b16 %v2173
      %v3326 = vunpack.c.l.b16 %v2174
      %v3327 = vunpack.c.l.b16 %v2175
      %v3328 = vunpack.c.l.b16 %v2176
      %v3329 = vunpack.c.l.b16 %v2177
      %v3330 = vunpack.c.l.b16 %v2178
      %v3331 = vunpack.c.l.b16 %v2179
      %v3332 = vunpack.c.l.b16 %v2180
      %v3333 = vunpack.c.l.b16 %v2181
      %v3334 = vunpack.c.l.b16 %v2182
      %v3335 = vunpack.c.l.b16 %v2183
      %v3336 = vunpack.c.l.b16 %v2184
      %v3337 = vunpack.c.l.b16 %v2185
      %v3338 = vunpack.c.l.b16 %v2186
      %v3339 = vunpack.c.l.b16 %v2187
      %v3340 = vunpack.c.l.b16 %v2188
      %v3341 = vunpack.c.l.b16 %v2189
      %v3342 = vunpack.c.l.b16 %v2190
      %v3343 = vunpack.c.l.b16 %v2191
      %v3344 = vpack.c.b16 %v3297, %v3296
      %v3345 = vpack.c.b16 %v3299, %v3298
      %v3346 = vpack.c.b16 %v3301, %v3300
      %v3347 = vpack.c.b16 %v3303, %v3302
      %v3348 = vpack.c.b16 %v3305, %v3304
      %v3349 = vpack.c.b16 %v3307, %v3306
      %v3350 = vpack.c.b16 %v3309, %v3308
      %v3351 = vpack.c.b16 %v3311, %v3310
      %v3352 = vpack.c.b16 %v3313, %v3312
      %v3353 = vpack.c.b16 %v3315, %v3314
      %v3354 = vpack.c.b16 %v3317, %v3316
      %v3355 = vpack.c.b16 %v3319, %v3318
      %v3356 = vpack.c.b16 %v3321, %v3320
      %v3357 = vpack.c.b16 %v3323, %v3322
      %v3358 = vpack.c.b16 %v3325, %v3324
      %v3359 = vpack.c.b16 %v3327, %v3326
      %v3360 = vpack.c.b16 %v3329, %v3328
      %v3361 = vpack.c.b16 %v3331, %v3330
      %v3362 = vpack.c.b16 %v3333, %v3332
      %v3363 = vpack.c.b16 %v3335, %v3334
      %v3364 = vpack.c.b16 %v3337, %v3336
      %v3365 = vpack.c.b16 %v3339, %v3338
      %v3366 = vpack.c.b16 %v3341, %v3340
      %v3367 = vpack.c.b16 %v3343, %v3342
      %3392 = vmatprep.subr.bf16.mxu0 0
      %3393 = vmatpush1.bf16.msra.mxu0 %v3351
      %3394 = vmatprep.subr.bf16.mxu0 0
      %3395 = vmatpush1.bf16.msra.mxu0 %v3350
      %3396 = vmatprep.subr.bf16.mxu0 0
      %3397 = vmatpush1.bf16.msra.mxu0 %v3349
      %3398 = vmatprep.subr.bf16.mxu0 0
      %3399 = vmatpush1.bf16.msra.mxu0 %v3348
      %3400 = vmatprep.subr.bf16.mxu0 0
      %3401 = vmatpush1.bf16.msra.mxu0 %v3347
      %3402 = vmatprep.subr.bf16.mxu0 0
      %3403 = vmatpush1.bf16.msra.mxu0 %v3346
      %3404 = vmatprep.subr.bf16.mxu0 0
      %3405 = vmatpush1.bf16.msra.mxu0 %v3345
      %3406 = vmatprep.subr.bf16.mxu0 0
      %3407 = vmatpush1.bf16.msra.mxu0 %v3344
      %3408 = vmatprep.subr.bf16.mxu0 0
      %3409 = vmatpush2.bf16.msra.mxu0 %v3359
      %3410 = vmatprep.subr.bf16.mxu0 0
      %3411 = vmatpush2.bf16.msra.mxu0 %v3358
      %3412 = vmatprep.subr.bf16.mxu0 0
      %3413 = vmatpush2.bf16.msra.mxu0 %v3357
      %3414 = vmatprep.subr.bf16.mxu0 0
      %3415 = vmatpush2.bf16.msra.mxu0 %v3356
      %3416 = vmatprep.subr.bf16.mxu0 0
      %3417 = vmatpush2.bf16.msra.mxu0 %v3355
      %3418 = vmatprep.subr.bf16.mxu0 0
      %3419 = vmatpush2.bf16.msra.mxu0 %v3354
      %3420 = vmatprep.subr.bf16.mxu0 0
      %3421 = vmatpush2.bf16.msra.mxu0 %v3353
      %3422 = vmatprep.subr.bf16.mxu0 0
      %3423 = vmatpush2.bf16.msra.mxu0 %v3352
      %3424 = vmatprep.mubr.bf16.mxu0 %v2777
      %3425 = vmatmul.mubr.bf16.gmra.mxu0 %v2760
      %v3426 = vpop.f32.mrf.mxu0
      %v3427 = vadd.f32 %v2617, %v3426
      %v3428 = vpop.f32.mrf.mxu0
      %v3429 = vpop.f32.mrf.mxu0
      %v3430 = vadd.f32 %v2620, %v3429
      %v3431 = vpop.f32.mrf.mxu0
      %3432 = vmatprep.mubr.bf16.mxu0 %v2812
      %3433 = vmatmul.mubr.bf16.gmra.mxu0 %v2803
      %v3434 = vpop.f32.mrf.mxu0
      %v3435 = vadd.f32 %v2625, %v3434
      %v3436 = vpop.f32.mrf.mxu0
      %v3437 = vpop.f32.mrf.mxu0
      %v3438 = vadd.f32 %v2628, %v3437
      %v3439 = vpop.f32.mrf.mxu0
      %3440 = vmatprep.mubr.bf16.mxu0 %v2839
      %3441 = vmatmul.mubr.bf16.gmra.mxu0 %v2830
      %v3442 = vpop.f32.mrf.mxu0
      %v3443 = vadd.f32 %v2633, %v3442
      %v3444 = vpop.f32.mrf.mxu0
      %v3445 = vpop.f32.mrf.mxu0
      %v3446 = vadd.f32 %v2636, %v3445
      %v3447 = vpop.f32.mrf.mxu0
      %3448 = vmatprep.mubr.bf16.mxu0 %v2866
      %3449 = vmatmul.mubr.bf16.gmra.mxu0 %v2857
      %v3450 = vpop.f32.mrf.mxu0
      %v3451 = vadd.f32 %v2641, %v3450
      %v3452 = vpop.f32.mrf.mxu0
      %v3453 = vpop.f32.mrf.mxu0
      %v3454 = vadd.f32 %v2644, %v3453
      %v3455 = vpop.f32.mrf.mxu0
      %3456 = vmatprep.mubr.bf16.mxu0 %v2893
      %3457 = vmatmul.mubr.bf16.gmra.mxu0 %v2884
      %v3458 = vpop.f32.mrf.mxu0
      %v3459 = vadd.f32 %v2649, %v3458
      %v3460 = vpop.f32.mrf.mxu0
      %v3461 = vpop.f32.mrf.mxu0
      %v3462 = vadd.f32 %v2652, %v3461
      %v3463 = vpop.f32.mrf.mxu0
      %3464 = vmatprep.mubr.bf16.mxu0 %v2920
      %3465 = vmatmul.mubr.bf16.gmra.mxu0 %v2911
      %v3466 = vpop.f32.mrf.mxu0
      %v3467 = vadd.f32 %v2657, %v3466
      %v3468 = vpop.f32.mrf.mxu0
      %v3469 = vpop.f32.mrf.mxu0
      %v3470 = vadd.f32 %v2660, %v3469
      %v3471 = vpop.f32.mrf.mxu0
      %3472 = vmatprep.mubr.bf16.mxu0 %v2947
      %3473 = vmatmul.mubr.bf16.gmra.mxu0 %v2938
      %v3474 = vpop.f32.mrf.mxu0
      %v3475 = vadd.f32 %v2665, %v3474
      %v3476 = vpop.f32.mrf.mxu0
      %v3477 = vpop.f32.mrf.mxu0
      %v3478 = vadd.f32 %v2668, %v3477
      %v3479 = vpop.f32.mrf.mxu0
      %3480 = vmatprep.mubr.bf16.mxu0 %v2974
      %3481 = vmatmul.mubr.bf16.gmra.mxu0 %v2965
      %v3482 = vpop.f32.mrf.mxu0
      %v3483 = vadd.f32 %v2673, %v3482
      %v3484 = vpop.f32.mrf.mxu0
      %v3485 = vpop.f32.mrf.mxu0
      %v3486 = vadd.f32 %v2676, %v3485
      %v3487 = vpop.f32.mrf.mxu0
      %3488 = vmatprep.mubr.bf16.mxu0 %v3001
      %3489 = vmatmul.mubr.bf16.gmra.mxu0 %v2992
      %v3490 = vpop.f32.mrf.mxu0
      %v3491 = vadd.f32 %v2681, %v3490
      %v3492 = vpop.f32.mrf.mxu0
      %v3493 = vpop.f32.mrf.mxu0
      %v3494 = vadd.f32 %v2684, %v3493
      %v3495 = vpop.f32.mrf.mxu0
      %3496 = vmatprep.mubr.bf16.mxu0 %v3028
      %3497 = vmatmul.mubr.bf16.gmra.mxu0 %v3019
      %v3498 = vpop.f32.mrf.mxu0
      %v3499 = vadd.f32 %v2689, %v3498
      %v3500 = vpop.f32.mrf.mxu0
      %v3501 = vpop.f32.mrf.mxu0
      %v3502 = vadd.f32 %v2692, %v3501
      %v3503 = vpop.f32.mrf.mxu0
      %3504 = vmatprep.mubr.bf16.mxu0 %v3055
      %3505 = vmatmul.mubr.bf16.gmra.mxu0 %v3046
      %v3506 = vpop.f32.mrf.mxu0
      %v3507 = vadd.f32 %v2697, %v3506
      %v3508 = vpop.f32.mrf.mxu0
      %v3509 = vpop.f32.mrf.mxu0
      %v3510 = vadd.f32 %v2700, %v3509
      %v3511 = vpop.f32.mrf.mxu0
      %3512 = vmatprep.mubr.bf16.mxu0 %v3082
      %3513 = vmatmul.mubr.bf16.gmra.mxu0 %v3073
      %v3514 = vpop.f32.mrf.mxu0
      %v3515 = vadd.f32 %v2705, %v3514
      %v3516 = vpop.f32.mrf.mxu0
      %v3517 = vpop.f32.mrf.mxu0
      %v3518 = vadd.f32 %v2708, %v3517
      %v3519 = vpop.f32.mrf.mxu0
      %3520 = vmatprep.mubr.bf16.mxu0 %v3109
      %3521 = vmatmul.mubr.bf16.gmra.mxu0 %v3100
      %v3522 = vpop.f32.mrf.mxu0
      %v3523 = vadd.f32 %v2713, %v3522
      %v3524 = vpop.f32.mrf.mxu0
      %v3525 = vpop.f32.mrf.mxu0
      %v3526 = vadd.f32 %v2716, %v3525
      %v3527 = vpop.f32.mrf.mxu0
      %3528 = vmatprep.mubr.bf16.mxu0 %v3136
      %3529 = vmatmul.mubr.bf16.gmra.mxu0 %v3127
      %v3530 = vpop.f32.mrf.mxu0
      %v3531 = vadd.f32 %v2721, %v3530
      %v3532 = vpop.f32.mrf.mxu0
      %v3533 = vpop.f32.mrf.mxu0
      %v3534 = vadd.f32 %v2724, %v3533
      %v3535 = vpop.f32.mrf.mxu0
      %3536 = vmatprep.mubr.bf16.mxu0 %v3163
      %3537 = vmatmul.mubr.bf16.gmra.mxu0 %v3154
      %v3538 = vpop.f32.mrf.mxu0
      %v3539 = vadd.f32 %v2729, %v3538
      %v3540 = vpop.f32.mrf.mxu0
      %v3541 = vpop.f32.mrf.mxu0
      %v3542 = vadd.f32 %v2732, %v3541
      %v3543 = vpop.f32.mrf.mxu0
      %3544 = vmatprep.mubr.bf16.mxu0 %v3190
      %3545 = vmatmul.mubr.bf16.gmra.mxu0 %v3181
      %v3546 = vpop.f32.mrf.mxu0
      %v3547 = vadd.f32 %v2737, %v3546
      %v3548 = vpop.f32.mrf.mxu0
      %v3549 = vpop.f32.mrf.mxu0
      %v3550 = vadd.f32 %v2740, %v3549
      %v3551 = vpop.f32.mrf.mxu0
      %3552 = vdwg.mxu0
      %3553 = vmatprep.subr.bf16.mxu0 0
      %3554 = vmatpush1.bf16.msra.mxu0 %v3367
      %3555 = vmatprep.subr.bf16.mxu0 0
      %3556 = vmatpush1.bf16.msra.mxu0 %v3366
      %3557 = vmatprep.subr.bf16.mxu0 0
      %3558 = vmatpush1.bf16.msra.mxu0 %v3365
      %3559 = vmatprep.subr.bf16.mxu0 0
      %3560 = vmatpush1.bf16.msra.mxu0 %v3364
      %3561 = vmatprep.subr.bf16.mxu0 0
      %3562 = vmatpush1.bf16.msra.mxu0 %v3363
      %3563 = vmatprep.subr.bf16.mxu0 0
      %3564 = vmatpush1.bf16.msra.mxu0 %v3362
      %3565 = vmatprep.subr.bf16.mxu0 0
      %3566 = vmatpush1.bf16.msra.mxu0 %v3361
      %3567 = vmatprep.subr.bf16.mxu0 0
      %3568 = vmatpush1.bf16.msra.mxu0 %v3360
      %3569 = vmatprep.subr.bf16.mxu0 0
      %3570 = vmatpush2.bf16.msra.mxu0 0
      %3571 = vmatprep.subr.bf16.mxu0 0
      %3572 = vmatpush2.bf16.msra.mxu0 0
      %3573 = vmatprep.subr.bf16.mxu0 0
      %3574 = vmatpush2.bf16.msra.mxu0 0
      %3575 = vmatprep.subr.bf16.mxu0 0
      %3576 = vmatpush2.bf16.msra.mxu0 0
      %3577 = vmatprep.subr.bf16.mxu0 0
      %3578 = vmatpush2.bf16.msra.mxu0 0
      %3579 = vmatprep.subr.bf16.mxu0 0
      %3580 = vmatpush2.bf16.msra.mxu0 0
      %3581 = vmatprep.subr.bf16.mxu0 0
      %3582 = vmatpush2.bf16.msra.mxu0 0
      %3583 = vmatprep.subr.bf16.mxu0 0
      %3584 = vmatpush2.bf16.msra.mxu0 0
      %3585 = vmatprep.mubr.bf16.mxu0 0
      %3586 = vmatmul.mubr.bf16.gmra.mxu0 %v2794
      %v3587 = vpop.f32.mrf.mxu0
      %v3588 = vadd.f32 %v3427, %v3587
      %v3589 = vpop.f32.mrf.mxu0
      %v3590 = vpop.f32.mrf.mxu0
      %v3591 = vadd.f32 %v3430, %v3590
      %v3592 = vpop.f32.mrf.mxu0
      %3593 = vmatprep.mubr.bf16.mxu0 0
      %3594 = vmatmul.mubr.bf16.gmra.mxu0 %v2821
      %v3595 = vpop.f32.mrf.mxu0
      %v3596 = vadd.f32 %v3435, %v3595
      %v3597 = vpop.f32.mrf.mxu0
      %v3598 = vpop.f32.mrf.mxu0
      %v3599 = vadd.f32 %v3438, %v3598
      %v3600 = vpop.f32.mrf.mxu0
      %3601 = vmatprep.mubr.bf16.mxu0 0
      %3602 = vmatmul.mubr.bf16.gmra.mxu0 %v2848
      %v3603 = vpop.f32.mrf.mxu0
      %v3604 = vadd.f32 %v3443, %v3603
      %v3605 = vpop.f32.mrf.mxu0
      %v3606 = vpop.f32.mrf.mxu0
      %v3607 = vadd.f32 %v3446, %v3606
      %v3608 = vpop.f32.mrf.mxu0
      %3609 = vmatprep.mubr.bf16.mxu0 0
      %3610 = vmatmul.mubr.bf16.gmra.mxu0 %v2875
      %v3611 = vpop.f32.mrf.mxu0
      %v3612 = vadd.f32 %v3451, %v3611
      %v3613 = vpop.f32.mrf.mxu0
      %v3614 = vpop.f32.mrf.mxu0
      %v3615 = vadd.f32 %v3454, %v3614
      %v3616 = vpop.f32.mrf.mxu0
      %3617 = vmatprep.mubr.bf16.mxu0 0
      %3618 = vmatmul.mubr.bf16.gmra.mxu0 %v2902
      %v3619 = vpop.f32.mrf.mxu0
      %v3620 = vadd.f32 %v3459, %v3619
      %v3621 = vpop.f32.mrf.mxu0
      %v3622 = vpop.f32.mrf.mxu0
      %v3623 = vadd.f32 %v3462, %v3622
      %v3624 = vpop.f32.mrf.mxu0
      %3625 = vmatprep.mubr.bf16.mxu0 0
      %3626 = vmatmul.mubr.bf16.gmra.mxu0 %v2929
      %v3627 = vpop.f32.mrf.mxu0
      %v3628 = vadd.f32 %v3467, %v3627
      %v3629 = vpop.f32.mrf.mxu0
      %v3630 = vpop.f32.mrf.mxu0
      %v3631 = vadd.f32 %v3470, %v3630
      %v3632 = vpop.f32.mrf.mxu0
      %3633 = vmatprep.mubr.bf16.mxu0 0
      %3634 = vmatmul.mubr.bf16.gmra.mxu0 %v2956
      %v3635 = vpop.f32.mrf.mxu0
      %v3636 = vadd.f32 %v3475, %v3635
      %v3637 = vpop.f32.mrf.mxu0
      %v3638 = vpop.f32.mrf.mxu0
      %v3639 = vadd.f32 %v3478, %v3638
      %v3640 = vpop.f32.mrf.mxu0
      %3641 = vmatprep.mubr.bf16.mxu0 0
      %3642 = vmatmul.mubr.bf16.gmra.mxu0 %v2983
      %v3643 = vpop.f32.mrf.mxu0
      %v3644 = vadd.f32 %v3483, %v3643
      %v3645 = vpop.f32.mrf.mxu0
      %v3646 = vpop.f32.mrf.mxu0
      %v3647 = vadd.f32 %v3486, %v3646
      %v3648 = vpop.f32.mrf.mxu0
      %3649 = vmatprep.mubr.bf16.mxu0 0
      %3650 = vmatmul.mubr.bf16.gmra.mxu0 %v3010
      %v3651 = vpop.f32.mrf.mxu0
      %v3652 = vadd.f32 %v3491, %v3651
      %v3653 = vpop.f32.mrf.mxu0
      %v3654 = vpop.f32.mrf.mxu0
      %v3655 = vadd.f32 %v3494, %v3654
      %v3656 = vpop.f32.mrf.mxu0
      %3657 = vmatprep.mubr.bf16.mxu0 0
      %3658 = vmatmul.mubr.bf16.gmra.mxu0 %v3037
      %v3659 = vpop.f32.mrf.mxu0
      %v3660 = vadd.f32 %v3499, %v3659
      %v3661 = vpop.f32.mrf.mxu0
      %v3662 = vpop.f32.mrf.mxu0
      %v3663 = vadd.f32 %v3502, %v3662
      %v3664 = vpop.f32.mrf.mxu0
      %3665 = vmatprep.mubr.bf16.mxu0 0
      %3666 = vmatmul.mubr.bf16.gmra.mxu0 %v3064
      %v3667 = vpop.f32.mrf.mxu0
      %v3668 = vadd.f32 %v3507, %v3667
      %v3669 = vpop.f32.mrf.mxu0
      %v3670 = vpop.f32.mrf.mxu0
      %v3671 = vadd.f32 %v3510, %v3670
      %v3672 = vpop.f32.mrf.mxu0
      %3673 = vmatprep.mubr.bf16.mxu0 0
      %3674 = vmatmul.mubr.bf16.gmra.mxu0 %v3091
      %v3675 = vpop.f32.mrf.mxu0
      %v3676 = vadd.f32 %v3515, %v3675
      %v3677 = vpop.f32.mrf.mxu0
      %v3678 = vpop.f32.mrf.mxu0
      %v3679 = vadd.f32 %v3518, %v3678
      %v3680 = vpop.f32.mrf.mxu0
      %3681 = vmatprep.mubr.bf16.mxu0 0
      %3682 = vmatmul.mubr.bf16.gmra.mxu0 %v3118
      %v3683 = vpop.f32.mrf.mxu0
      %v3684 = vadd.f32 %v3523, %v3683
      %v3685 = vpop.f32.mrf.mxu0
      %v3686 = vpop.f32.mrf.mxu0
      %v3687 = vadd.f32 %v3526, %v3686
      %v3688 = vpop.f32.mrf.mxu0
      %3689 = vmatprep.mubr.bf16.mxu0 0
      %3690 = vmatmul.mubr.bf16.gmra.mxu0 %v3145
      %v3691 = vpop.f32.mrf.mxu0
      %v3692 = vadd.f32 %v3531, %v3691
      %v3693 = vpop.f32.mrf.mxu0
      %v3694 = vpop.f32.mrf.mxu0
      %v3695 = vadd.f32 %v3534, %v3694
      %v3696 = vpop.f32.mrf.mxu0
      %3697 = vmatprep.mubr.bf16.mxu0 0
      %3698 = vmatmul.mubr.bf16.gmra.mxu0 %v3172
      %v3699 = vpop.f32.mrf.mxu0
      %v3700 = vadd.f32 %v3539, %v3699
      %v3701 = vpop.f32.mrf.mxu0
      %v3702 = vpop.f32.mrf.mxu0
      %v3703 = vadd.f32 %v3542, %v3702
      %v3704 = vpop.f32.mrf.mxu0
      %3705 = vmatprep.mubr.bf16.mxu0 0
      %3706 = vmatmul.mubr.bf16.gmra.mxu0 %v3199
      %v3707 = vpop.f32.mrf.mxu0
      %v3708 = vadd.f32 %v3547, %v3707
      %v3709 = vpop.f32.mrf.mxu0
      %v3710 = vpop.f32.mrf.mxu0
      %v3711 = vadd.f32 %v3550, %v3710
      %v3712 = vpop.f32.mrf.mxu0
      %3713 = vdwg.mxu0
      %v3714 = vld [vmem:[#allocation2 + $0x8] sm:$0xf]
      %v3715 = vld [vmem:[#allocation2 + $0xc] sm:$0xf]
      %v3716 = vld [vmem:[#allocation2 + $0x10] sm:$0xf]
      %v3717 = vld [vmem:[#allocation2 + $0x14] sm:$0xf]
      %v3718 = vld [vmem:[#allocation2 + $0x18] sm:$0xf]
      %v3719 = vld [vmem:[#allocation2 + $0x1c] sm:$0xf]
      %v3720 = vld [vmem:[#allocation2 + $0x20] sm:$0xf]
      %v3721 = vld [vmem:[#allocation2 + $0x24] sm:$0xf]
      %v3722 = vld [vmem:[#allocation2 + $0x28] sm:$0xf]
      %v3723 = vld [vmem:[#allocation2 + $0x2c] sm:$0xf]
      %v3724 = vld [vmem:[#allocation2 + $0x30] sm:$0xf]
      %v3725 = vld [vmem:[#allocation2 + $0x34] sm:$0xf]
      %v3726 = vld [vmem:[#allocation2 + $0x38] sm:$0xf]
      %v3727 = vld [vmem:[#allocation2 + $0x3c] sm:$0xf]
      %v3728 = vld [vmem:[#allocation2 + $0x40] sm:$0xf]
      %v3729 = vld [vmem:[#allocation2 + $0x44] sm:$0xf]
      %v3730 = vld [vmem:[#allocation2 + $0x48] sm:$0xf]
      %v3731 = vld [vmem:[#allocation2 + $0x4c] sm:$0xf]
      %v3732 = vld [vmem:[#allocation2 + $0x50] sm:$0xf]
      %v3733 = vld [vmem:[#allocation2 + $0x54] sm:$0xf]
      %v3734 = vld [vmem:[#allocation2 + $0x58] sm:$0xf]
      %v3735 = vld [vmem:[#allocation2 + $0x5c] sm:$0xf]
      %v3736 = vld [vmem:[#allocation2 + $0x60] sm:$0xf]
      %v3737 = vld [vmem:[#allocation2 + $0x64] sm:$0xf]
      %v3738 = vld [vmem:[#allocation2 + $0x68] sm:$0xf]
      %v3739 = vld [vmem:[#allocation2 + $0x6c] sm:$0xf]
      %v3740 = vld [vmem:[#allocation2 + $0x70] sm:$0xf]
      %v3741 = vld [vmem:[#allocation2 + $0x74] sm:$0xf]
      %v3742 = vld [vmem:[#allocation2 + $0x78] sm:$0xf]
      %v3743 = vld [vmem:[#allocation2 + $0x7c] sm:$0xf]
      %v3744 = vld [vmem:[#allocation2 + $0x80] sm:$0xf]
      %v3745 = vld [vmem:[#allocation2 + $0x84] sm:$0xf]
      %v3746 = vld [vmem:[#allocation2 + $0x88] sm:$0x1]
      %v3747 = vld [vmem:[#allocation2 + $0x88] sm:$0xf]
      %v3748 = vld [vmem:[#allocation2 + $0x8c] sm:$0xf]
      %v3749 = vld [vmem:[#allocation2 + $0x90] sm:$0x1]
      %v3750 = vld [vmem:[#allocation2 + $0x90] sm:$0xf]
      %v3751 = vld [vmem:[#allocation2 + $0x94] sm:$0xf]
      %v3752 = vld [vmem:[#allocation2 + $0x98] sm:$0x1]
      %v3786 = vunpack.c.l.b16 %v3714
      %v3787 = vunpack.c.l.b16 %v3715
      %v3788 = vunpack.c.l.b16 %v3716
      %v3789 = vunpack.c.l.b16 %v3717
      %v3790 = vunpack.c.l.b16 %v3718
      %v3791 = vunpack.c.l.b16 %v3719
      %v3792 = vunpack.c.l.b16 %v3720
      %v3793 = vunpack.c.l.b16 %v3721
      %v3794 = vunpack.c.l.b16 %v3722
      %v3795 = vunpack.c.l.b16 %v3723
      %v3796 = vunpack.c.l.b16 %v3724
      %v3797 = vunpack.c.l.b16 %v3725
      %v3798 = vunpack.c.l.b16 %v3726
      %v3799 = vunpack.c.l.b16 %v3727
      %v3800 = vunpack.c.l.b16 %v3728
      %v3801 = vunpack.c.l.b16 %v3729
      %v3802 = vunpack.c.l.b16 %v3730
      %v3803 = vunpack.c.l.b16 %v3731
      %v3804 = vunpack.c.l.b16 %v3732
      %v3805 = vunpack.c.l.b16 %v3733
      %v3806 = vunpack.c.l.b16 %v3734
      %v3807 = vunpack.c.l.b16 %v3735
      %v3808 = vunpack.c.l.b16 %v3736
      %v3809 = vunpack.c.l.b16 %v3737
      %v3810 = vunpack.c.l.b16 %v3738
      %v3811 = vunpack.c.l.b16 %v3739
      %v3812 = vunpack.c.l.b16 %v3740
      %v3813 = vunpack.c.l.b16 %v3741
      %v3814 = vunpack.c.l.b16 %v3742
      %v3815 = vunpack.c.l.b16 %v3743
      %v3816 = vunpack.c.l.b16 %v3744
      %v3817 = vunpack.c.l.b16 %v3745
      %v3818 = vunpack.c.l.b16 %v3746
      %v3819 = vpack.c.b16 %v3787, %v3786
      %v3820 = vpack.c.b16 %v3789, %v3788
      %v3821 = vpack.c.b16 %v3791, %v3790
      %v3822 = vpack.c.b16 %v3793, %v3792
      %v3823 = vpack.c.b16 %v3795, %v3794
      %v3824 = vpack.c.b16 %v3797, %v3796
      %v3825 = vpack.c.b16 %v3799, %v3798
      %v3826 = vpack.c.b16 %v3801, %v3800
      %v3827 = vpack.c.b16 %v3803, %v3802
      %v3828 = vpack.c.b16 %v3805, %v3804
      %v3829 = vpack.c.b16 %v3807, %v3806
      %v3830 = vpack.c.b16 %v3809, %v3808
      %v3831 = vpack.c.b16 %v3811, %v3810
      %v3832 = vpack.c.b16 %v3813, %v3812
      %v3833 = vpack.c.b16 %v3815, %v3814
      %v3834 = vpack.c.b16 %v3817, %v3816
      %v3835 = vpack.c.b16 %v3818, %v3818
      %v3856 = vunpack.c.l.b16 %v3747
      %v3857 = vunpack.c.l.b16 %v3748
      %v3858 = vunpack.c.l.b16 %v3749
      %v3859 = vpack.c.b16 %v3857, %v3856
      %v3860 = vpack.c.b16 %v3858, %v3858
      %v3866 = vunpack.c.l.b16 %v3750
      %v3867 = vunpack.c.l.b16 %v3751
      %v3868 = vunpack.c.l.b16 %v3752
      %v3869 = vpack.c.b16 %v3867, %v3866
      %v3870 = vpack.c.b16 %v3868, %v3868
      %v3873 = vsel %vm1561, 1, 0
      %v3874 = vsel %vm1562, 1, 0
      %v3875 = vsel %vm1563, 1, 0
      %v3876 = vsel %vm1564, 1, 0
      %v3877 = vsel %vm1565, 1, 0
      %v3878 = vsel %vm1566, 1, 0
      %v3879 = vsel %vm1567, 1, 0
      %v3880 = vsel %vm1568, 1, 0
      %v3881 = vsel %vm1569, 1, 0
      %v3882 = vsel %vm1570, 1, 0
      %v3883 = vsel %vm1571, 1, 0
      %v3884 = vsel %vm1572, 1, 0
      %v3885 = vsel %vm1573, 1, 0
      %v3886 = vsel %vm1574, 1, 0
      %v3887 = vsel %vm1575, 1, 0
      %v3888 = vsel %vm1576, 1, 0
      %v3889 = vsel %vm1577, 1, 0
      %v3890 = vsel %vm1578, 1, 0
      %v3891 = vsel %vm1579, 1, 0
      %v3892 = vsel %vm1580, 1, 0
      %v3893 = vsel %vm1581, 1, 0
      %v3894 = vsel %vm1582, 1, 0
      %v3895 = vsel %vm1583, 1, 0
      %v3896 = vsel %vm1584, 1, 0
      %v3897 = vsel %vm1585, 1, 0
      %v3898 = vsel %vm1586, 1, 0
      %v3899 = vsel %vm1587, 1, 0
      %v3900 = vsel %vm1588, 1, 0
      %v3901 = vsel %vm1589, 1, 0
      %v3902 = vsel %vm1590, 1, 0
      %v3903 = vsel %vm1591, 1, 0
      %v3904 = vsel %vm1592, 1, 0
      %vm3905 = vcmp.eq.s32.totalorder %v3873, 1
      %vm3906 = vcmp.eq.s32.totalorder %v3874, 1
      %vm3907 = vcmp.eq.s32.totalorder %v3875, 1
      %vm3908 = vcmp.eq.s32.totalorder %v3876, 1
      %vm3909 = vcmp.eq.s32.totalorder %v3877, 1
      %vm3910 = vcmp.eq.s32.totalorder %v3878, 1
      %vm3911 = vcmp.eq.s32.totalorder %v3879, 1
      %vm3912 = vcmp.eq.s32.totalorder %v3880, 1
      %vm3913 = vcmp.eq.s32.totalorder %v3881, 1
      %vm3914 = vcmp.eq.s32.totalorder %v3882, 1
      %vm3915 = vcmp.eq.s32.totalorder %v3883, 1
      %vm3916 = vcmp.eq.s32.totalorder %v3884, 1
      %vm3917 = vcmp.eq.s32.totalorder %v3885, 1
      %vm3918 = vcmp.eq.s32.totalorder %v3886, 1
      %vm3919 = vcmp.eq.s32.totalorder %v3887, 1
      %vm3920 = vcmp.eq.s32.totalorder %v3888, 1
      %vm3921 = vcmp.eq.s32.totalorder %v3889, 1
      %vm3922 = vcmp.eq.s32.totalorder %v3890, 1
      %vm3923 = vcmp.eq.s32.totalorder %v3891, 1
      %vm3924 = vcmp.eq.s32.totalorder %v3892, 1
      %vm3925 = vcmp.eq.s32.totalorder %v3893, 1
      %vm3926 = vcmp.eq.s32.totalorder %v3894, 1
      %vm3927 = vcmp.eq.s32.totalorder %v3895, 1
      %vm3928 = vcmp.eq.s32.totalorder %v3896, 1
      %vm3929 = vcmp.eq.s32.totalorder %v3897, 1
      %vm3930 = vcmp.eq.s32.totalorder %v3898, 1
      %vm3931 = vcmp.eq.s32.totalorder %v3899, 1
      %vm3932 = vcmp.eq.s32.totalorder %v3900, 1
      %vm3933 = vcmp.eq.s32.totalorder %v3901, 1
      %vm3934 = vcmp.eq.s32.totalorder %v3902, 1
      %vm3935 = vcmp.eq.s32.totalorder %v3903, 1
      %vm3936 = vcmp.eq.s32.totalorder %v3904, 1
      %vm3937 = vmpackc.low %vm3905, %vm3905
      %vm3938 = vmpackc.low %vm3906, %vm3906
      %vm3939 = vmpackc.low %vm3907, %vm3907
      %vm3940 = vmpackc.low %vm3908, %vm3908
      %vm3941 = vmpackc.low %vm3909, %vm3909
      %vm3942 = vmpackc.low %vm3910, %vm3910
      %vm3943 = vmpackc.low %vm3911, %vm3911
      %vm3944 = vmpackc.low %vm3912, %vm3912
      %vm3945 = vmpackc.low %vm3913, %vm3913
      %vm3946 = vmpackc.low %vm3914, %vm3914
      %vm3947 = vmpackc.low %vm3915, %vm3915
      %vm3948 = vmpackc.low %vm3916, %vm3916
      %vm3949 = vmpackc.low %vm3917, %vm3917
      %vm3950 = vmpackc.low %vm3918, %vm3918
      %vm3951 = vmpackc.low %vm3919, %vm3919
      %vm3952 = vmpackc.low %vm3920, %vm3920
      %vm3953 = vmpackc.low %vm3921, %vm3921
      %vm3954 = vmpackc.low %vm3922, %vm3922
      %vm3955 = vmpackc.low %vm3923, %vm3923
      %vm3956 = vmpackc.low %vm3924, %vm3924
      %vm3957 = vmpackc.low %vm3925, %vm3925
      %vm3958 = vmpackc.low %vm3926, %vm3926
      %vm3959 = vmpackc.low %vm3927, %vm3927
      %vm3960 = vmpackc.low %vm3928, %vm3928
      %vm3961 = vmpackc.low %vm3929, %vm3929
      %vm3962 = vmpackc.low %vm3930, %vm3930
      %vm3963 = vmpackc.low %vm3931, %vm3931
      %vm3964 = vmpackc.low %vm3932, %vm3932
      %vm3965 = vmpackc.low %vm3933, %vm3933
      %vm3966 = vmpackc.low %vm3934, %vm3934
      %vm3967 = vmpackc.low %vm3935, %vm3935
      %vm3968 = vmpackc.low %vm3936, %vm3936
      %v3969 = vsel %vm3937, 65537, 0
      %v3970 = vsel %vm3938, 65537, 0
      %v3971 = vsel %vm3939, 65537, 0
      %v3972 = vsel %vm3940, 65537, 0
      %v3973 = vsel %vm3941, 65537, 0
      %v3974 = vsel %vm3942, 65537, 0
      %v3975 = vsel %vm3943, 65537, 0
      %v3976 = vsel %vm3944, 65537, 0
      %v3977 = vsel %vm3945, 65537, 0
      %v3978 = vsel %vm3946, 65537, 0
      %v3979 = vsel %vm3947, 65537, 0
      %v3980 = vsel %vm3948, 65537, 0
      %v3981 = vsel %vm3949, 65537, 0
      %v3982 = vsel %vm3950, 65537, 0
      %v3983 = vsel %vm3951, 65537, 0
      %v3984 = vsel %vm3952, 65537, 0
      %v3985 = vsel %vm3953, 65537, 0
      %v3986 = vsel %vm3954, 65537, 0
      %v3987 = vsel %vm3955, 65537, 0
      %v3988 = vsel %vm3956, 65537, 0
      %v3989 = vsel %vm3957, 65537, 0
      %v3990 = vsel %vm3958, 65537, 0
      %v3991 = vsel %vm3959, 65537, 0
      %v3992 = vsel %vm3960, 65537, 0
      %v3993 = vsel %vm3961, 65537, 0
      %v3994 = vsel %vm3962, 65537, 0
      %v3995 = vsel %vm3963, 65537, 0
      %v3996 = vsel %vm3964, 65537, 0
      %v3997 = vsel %vm3965, 65537, 0
      %v3998 = vsel %vm3966, 65537, 0
      %v3999 = vsel %vm3967, 65537, 0
      %v4000 = vsel %vm3968, 65537, 0
      %v4001 = vunpack.c.l.b16 %v3969
      %v4002 = vunpack.c.l.b16 %v3970
      %v4003 = vunpack.c.l.b16 %v3971
      %v4004 = vunpack.c.l.b16 %v3972
      %v4005 = vunpack.c.l.b16 %v3973
      %v4006 = vunpack.c.l.b16 %v3974
      %v4007 = vunpack.c.l.b16 %v3975
      %v4008 = vunpack.c.l.b16 %v3976
      %v4009 = vunpack.c.l.b16 %v3977
      %v4010 = vunpack.c.l.b16 %v3978
      %v4011 = vunpack.c.l.b16 %v3979
      %v4012 = vunpack.c.l.b16 %v3980
      %v4013 = vunpack.c.l.b16 %v3981
      %v4014 = vunpack.c.l.b16 %v3982
      %v4015 = vunpack.c.l.b16 %v3983
      %v4016 = vunpack.c.l.b16 %v3984
      %v4017 = vunpack.c.l.b16 %v3985
      %v4018 = vunpack.c.l.b16 %v3986
      %v4019 = vunpack.c.l.b16 %v3987
      %v4020 = vunpack.c.l.b16 %v3988
      %v4021 = vunpack.c.l.b16 %v3989
      %v4022 = vunpack.c.l.b16 %v3990
      %v4023 = vunpack.c.l.b16 %v3991
      %v4024 = vunpack.c.l.b16 %v3992
      %v4025 = vunpack.c.l.b16 %v3993
      %v4026 = vunpack.c.l.b16 %v3994
      %v4027 = vunpack.c.l.b16 %v3995
      %v4028 = vunpack.c.l.b16 %v3996
      %v4029 = vunpack.c.l.b16 %v3997
      %v4030 = vunpack.c.l.b16 %v3998
      %v4031 = vunpack.c.l.b16 %v3999
      %v4032 = vunpack.c.l.b16 %v4000
      %v4033 = vpack.c.b16 %v4002, %v4001
      %v4034 = vpack.c.b16 %v4004, %v4003
      %v4035 = vpack.c.b16 %v4006, %v4005
      %v4036 = vpack.c.b16 %v4008, %v4007
      %v4037 = vpack.c.b16 %v4010, %v4009
      %v4038 = vpack.c.b16 %v4012, %v4011
      %v4039 = vpack.c.b16 %v4014, %v4013
      %v4040 = vpack.c.b16 %v4016, %v4015
      %v4041 = vpack.c.b16 %v4018, %v4017
      %v4042 = vpack.c.b16 %v4020, %v4019
      %v4043 = vpack.c.b16 %v4022, %v4021
      %v4044 = vpack.c.b16 %v4024, %v4023
      %v4045 = vpack.c.b16 %v4026, %v4025
      %v4046 = vpack.c.b16 %v4028, %v4027
      %v4047 = vpack.c.b16 %v4030, %v4029
      %v4048 = vpack.c.b16 %v4032, %v4031
      %vm4049 = vsmask.f32 256
      %v4051 = vshrl.u32 %v4033, 16
      %v4053 = vrot.slane %v4051, 7
      %v4054 = vshll.u32 %v4033, 16
      %v4056 = vor.u32 %v4053, %v4054
      %v4058 = vshrl.u32 %v4034, 16
      %v4060 = vrot.slane %v4058, 7
      %v4061 = vshll.u32 %v4034, 16
      %v4063 = vor.u32 %v4060, %v4061
      %v4064 = vsel %vm4049, %v4053, %v4063
      %v4066 = vshrl.u32 %v4035, 16
      %v4068 = vrot.slane %v4066, 7
      %v4069 = vshll.u32 %v4035, 16
      %v4071 = vor.u32 %v4068, %v4069
      %v4072 = vsel %vm4049, %v4060, %v4071
      %v4074 = vshrl.u32 %v4036, 16
      %v4076 = vrot.slane %v4074, 7
      %v4077 = vshll.u32 %v4036, 16
      %v4079 = vor.u32 %v4076, %v4077
      %v4080 = vsel %vm4049, %v4068, %v4079
      %v4082 = vshrl.u32 %v4037, 16
      %v4084 = vrot.slane %v4082, 7
      %v4085 = vshll.u32 %v4037, 16
      %v4087 = vor.u32 %v4084, %v4085
      %v4088 = vsel %vm4049, %v4076, %v4087
      %v4090 = vshrl.u32 %v4038, 16
      %v4092 = vrot.slane %v4090, 7
      %v4093 = vshll.u32 %v4038, 16
      %v4095 = vor.u32 %v4092, %v4093
      %v4096 = vsel %vm4049, %v4084, %v4095
      %v4098 = vshrl.u32 %v4039, 16
      %v4100 = vrot.slane %v4098, 7
      %v4101 = vshll.u32 %v4039, 16
      %v4103 = vor.u32 %v4100, %v4101
      %v4104 = vsel %vm4049, %v4092, %v4103
      %v4106 = vshrl.u32 %v4040, 16
      %v4108 = vrot.slane %v4106, 7
      %v4109 = vshll.u32 %v4040, 16
      %v4111 = vor.u32 %v4108, %v4109
      %v4112 = vsel %vm4049, %v4100, %v4111
      %v4114 = vshrl.u32 %v4041, 16
      %v4116 = vrot.slane %v4114, 7
      %v4117 = vshll.u32 %v4041, 16
      %v4119 = vor.u32 %v4116, %v4117
      %v4120 = vsel %vm4049, %v4108, %v4119
      %v4122 = vshrl.u32 %v4042, 16
      %v4124 = vrot.slane %v4122, 7
      %v4125 = vshll.u32 %v4042, 16
      %v4127 = vor.u32 %v4124, %v4125
      %v4128 = vsel %vm4049, %v4116, %v4127
      %v4130 = vshrl.u32 %v4043, 16
      %v4132 = vrot.slane %v4130, 7
      %v4133 = vshll.u32 %v4043, 16
      %v4135 = vor.u32 %v4132, %v4133
      %v4136 = vsel %vm4049, %v4124, %v4135
      %v4138 = vshrl.u32 %v4044, 16
      %v4140 = vrot.slane %v4138, 7
      %v4141 = vshll.u32 %v4044, 16
      %v4143 = vor.u32 %v4140, %v4141
      %v4144 = vsel %vm4049, %v4132, %v4143
      %v4146 = vshrl.u32 %v4045, 16
      %v4148 = vrot.slane %v4146, 7
      %v4149 = vshll.u32 %v4045, 16
      %v4151 = vor.u32 %v4148, %v4149
      %v4152 = vsel %vm4049, %v4140, %v4151
      %v4154 = vshrl.u32 %v4046, 16
      %v4156 = vrot.slane %v4154, 7
      %v4157 = vshll.u32 %v4046, 16
      %v4159 = vor.u32 %v4156, %v4157
      %v4160 = vsel %vm4049, %v4148, %v4159
      %v4162 = vshrl.u32 %v4047, 16
      %v4164 = vrot.slane %v4162, 7
      %v4165 = vshll.u32 %v4047, 16
      %v4167 = vor.u32 %v4164, %v4165
      %v4168 = vsel %vm4049, %v4156, %v4167
      %v4170 = vshrl.u32 %v4048, 16
      %v4172 = vrot.slane %v4170, 7
      %v4173 = vshll.u32 %v4048, 16
      %v4175 = vor.u32 %v4172, %v4173
      %v4176 = vsel %vm4049, %v4164, %v4175
      %vm4177 = vcmp.ne.s16.totalorder %v4056, 0
      %vm4178 = vcmp.ne.s16.totalorder %v4064, 0
      %vm4179 = vcmp.ne.s16.totalorder %v4072, 0
      %vm4180 = vcmp.ne.s16.totalorder %v4080, 0
      %vm4181 = vcmp.ne.s16.totalorder %v4088, 0
      %vm4182 = vcmp.ne.s16.totalorder %v4096, 0
      %vm4183 = vcmp.ne.s16.totalorder %v4104, 0
      %vm4184 = vcmp.ne.s16.totalorder %v4112, 0
      %vm4185 = vcmp.ne.s16.totalorder %v4120, 0
      %vm4186 = vcmp.ne.s16.totalorder %v4128, 0
      %vm4187 = vcmp.ne.s16.totalorder %v4136, 0
      %vm4188 = vcmp.ne.s16.totalorder %v4144, 0
      %vm4189 = vcmp.ne.s16.totalorder %v4152, 0
      %vm4190 = vcmp.ne.s16.totalorder %v4160, 0
      %vm4191 = vcmp.ne.s16.totalorder %v4168, 0
      %vm4192 = vcmp.ne.s16.totalorder %v4176, 0
      %vm4193 = vcmp.ne.s16.totalorder %v4172, 0
      %v4194 = vsel %vm4177, %v3819, 0
      %v4195 = vsel %vm4177, %v3820, 0
      %v4196 = vsel %vm4177, %v3821, 0
      %v4197 = vsel %vm4178, %v3820, 0
      %v4198 = vsel %vm4178, %v3821, 0
      %v4199 = vsel %vm4178, %v3822, 0
      %v4200 = vsel %vm4179, %v3821, 0
      %v4201 = vsel %vm4179, %v3822, 0
      %v4202 = vsel %vm4179, %v3823, 0
      %v4203 = vsel %vm4180, %v3822, 0
      %v4204 = vsel %vm4180, %v3823, 0
      %v4205 = vsel %vm4180, %v3824, 0
      %v4206 = vsel %vm4181, %v3823, 0
      %v4207 = vsel %vm4181, %v3824, 0
      %v4208 = vsel %vm4181, %v3825, 0
      %v4209 = vsel %vm4182, %v3824, 0
      %v4210 = vsel %vm4182, %v3825, 0
      %v4211 = vsel %vm4182, %v3826, 0
      %v4212 = vsel %vm4183, %v3825, 0
      %v4213 = vsel %vm4183, %v3826, 0
      %v4214 = vsel %vm4183, %v3827, 0
      %v4215 = vsel %vm4184, %v3826, 0
      %v4216 = vsel %vm4184, %v3827, 0
      %v4217 = vsel %vm4184, %v3828, 0
      %v4218 = vsel %vm4185, %v3827, 0
      %v4219 = vsel %vm4185, %v3828, 0
      %v4220 = vsel %vm4185, %v3829, 0
      %v4221 = vsel %vm4186, %v3828, 0
      %v4222 = vsel %vm4186, %v3829, 0
      %v4223 = vsel %vm4186, %v3830, 0
      %v4224 = vsel %vm4187, %v3829, 0
      %v4225 = vsel %vm4187, %v3830, 0
      %v4226 = vsel %vm4187, %v3831, 0
      %v4227 = vsel %vm4188, %v3830, 0
      %v4228 = vsel %vm4188, %v3831, 0
      %v4229 = vsel %vm4188, %v3832, 0
      %v4230 = vsel %vm4189, %v3831, 0
      %v4231 = vsel %vm4189, %v3832, 0
      %v4232 = vsel %vm4189, %v3833, 0
      %v4233 = vsel %vm4190, %v3832, 0
      %v4234 = vsel %vm4190, %v3833, 0
      %v4235 = vsel %vm4190, %v3834, 0
      %v4236 = vsel %vm4191, %v3833, 0
      %v4237 = vsel %vm4191, %v3834, 0
      %v4238 = vsel %vm4191, %v3859, 0
      %v4239 = vsel %vm4192, %v3834, 0
      %v4240 = vsel %vm4192, %v3859, 0
      %v4241 = vsel %vm4192, %v3869, 0
      %v4242 = vsel %vm4193, %v3835, 0
      %v4243 = vsel %vm4193, %v3860, 0
      %v4244 = vsel %vm4193, %v3870, 0
      %s4245 = scalar_lea.vmem %s7, 384
      %v4246 = vld [vmem:[%s4245] sm:$0xf]
      %v4247 = vld [vmem:[%s4245 + $0x4] sm:$0xf]
      %v4248 = vld [vmem:[%s4245 + $0x8] sm:$0xf]
      %v4249 = vld [vmem:[%s4245 + $0xc] sm:$0xf]
      %v4250 = vld [vmem:[%s4245 + $0x10] sm:$0xf]
      %v4251 = vld [vmem:[%s4245 + $0x14] sm:$0xf]
      %v4252 = vld [vmem:[%s4245 + $0x18] sm:$0xf]
      %v4253 = vld [vmem:[%s4245 + $0x1c] sm:$0xf]
      %v4254 = vld [vmem:[%s4245 + $0x20] sm:$0xf]
      %v4255 = vld [vmem:[%s4245 + $0x24] sm:$0xf]
      %v4256 = vld [vmem:[%s4245 + $0x28] sm:$0xf]
      %v4257 = vld [vmem:[%s4245 + $0x2c] sm:$0xf]
      %v4258 = vld [vmem:[%s4245 + $0x30] sm:$0xf]
      %v4259 = vld [vmem:[%s4245 + $0x34] sm:$0xf]
      %v4260 = vld [vmem:[%s4245 + $0x38] sm:$0xf]
      %v4261 = vld [vmem:[%s4245 + $0x3c] sm:$0xf]
      %v4262 = vld [vmem:[%s4245 + $0x40] sm:$0xf]
      %v4263 = vld [vmem:[%s4245 + $0x44] sm:$0xf]
      %v4264 = vld [vmem:[%s4245 + $0x48] sm:$0xf]
      %v4265 = vld [vmem:[%s4245 + $0x4c] sm:$0xf]
      %v4266 = vld [vmem:[%s4245 + $0x50] sm:$0xf]
      %v4267 = vld [vmem:[%s4245 + $0x54] sm:$0xf]
      %v4268 = vld [vmem:[%s4245 + $0x58] sm:$0xf]
      %v4269 = vld [vmem:[%s4245 + $0x5c] sm:$0xf]
      %v4270 = vld [vmem:[%s4245 + $0x60] sm:$0xf]
      %v4271 = vld [vmem:[%s4245 + $0x64] sm:$0xf]
      %v4272 = vld [vmem:[%s4245 + $0x68] sm:$0xf]
      %v4273 = vld [vmem:[%s4245 + $0x6c] sm:$0xf]
      %v4274 = vld [vmem:[%s4245 + $0x70] sm:$0xf]
      %v4275 = vld [vmem:[%s4245 + $0x74] sm:$0xf]
      %v4276 = vld [vmem:[%s4245 + $0x78] sm:$0xf]
      %v4277 = vld [vmem:[%s4245 + $0x7c] sm:$0xf]
      %v4278 = vld [vmem:[%s4245 + $0x80] sm:$0xf]
      %v4279 = vld [vmem:[%s4245 + $0x84] sm:$0xf]
      %v4280 = vld [vmem:[%s4245 + $0x88] sm:$0xf]
      %v4281 = vld [vmem:[%s4245 + $0x8c] sm:$0xf]
      %v4282 = vld [vmem:[%s4245 + $0x90] sm:$0xf]
      %v4283 = vld [vmem:[%s4245 + $0x94] sm:$0xf]
      %v4284 = vld [vmem:[%s4245 + $0x98] sm:$0xf]
      %v4285 = vld [vmem:[%s4245 + $0x9c] sm:$0xf]
      %v4286 = vld [vmem:[%s4245 + $0xa0] sm:$0xf]
      %v4287 = vld [vmem:[%s4245 + $0xa4] sm:$0xf]
      %v4288 = vld [vmem:[%s4245 + $0xa8] sm:$0xf]
      %v4289 = vld [vmem:[%s4245 + $0xac] sm:$0xf]
      %v4290 = vld [vmem:[%s4245 + $0xb0] sm:$0xf]
      %v4291 = vld [vmem:[%s4245 + $0xb4] sm:$0xf]
      %v4292 = vld [vmem:[%s4245 + $0xb8] sm:$0xf]
      %v4293 = vld [vmem:[%s4245 + $0xbc] sm:$0xf]
      %vm4294 = vsmask.f32 7424
      %v4296 = vshrl.u32 %v4194, 16
      %v4298 = vshll.u32 %v4194, 16
      %v4300 = vrot.slane %v4298, 1
      %v4301 = vor.u32 %v4296, %v4300
      %v4303 = vshll.u32 %v4197, 16
      %v4305 = vrot.slane %v4303, 1
      %v4306 = vsel %vm4294, %v4301, %v4305
      %v4308 = vshrl.u32 %v4195, 16
      %v4310 = vshll.u32 %v4195, 16
      %v4312 = vrot.slane %v4310, 1
      %v4313 = vor.u32 %v4308, %v4312
      %v4315 = vshll.u32 %v4198, 16
      %v4317 = vrot.slane %v4315, 1
      %v4318 = vsel %vm4294, %v4313, %v4317
      %v4320 = vshrl.u32 %v4196, 16
      %v4322 = vshll.u32 %v4196, 16
      %v4324 = vrot.slane %v4322, 1
      %v4325 = vor.u32 %v4320, %v4324
      %v4327 = vshll.u32 %v4199, 16
      %v4329 = vrot.slane %v4327, 1
      %v4330 = vsel %vm4294, %v4325, %v4329
      %v4331 = vshrl.u32 %v4197, 16
      %v4333 = vor.u32 %v4331, %v4305
      %v4335 = vshll.u32 %v4200, 16
      %v4337 = vrot.slane %v4335, 1
      %v4338 = vsel %vm4294, %v4333, %v4337
      %v4339 = vshrl.u32 %v4198, 16
      %v4341 = vor.u32 %v4339, %v4317
      %v4343 = vshll.u32 %v4201, 16
      %v4345 = vrot.slane %v4343, 1
      %v4346 = vsel %vm4294, %v4341, %v4345
      %v4347 = vshrl.u32 %v4199, 16
      %v4349 = vor.u32 %v4347, %v4329
      %v4351 = vshll.u32 %v4202, 16
      %v4353 = vrot.slane %v4351, 1
      %v4354 = vsel %vm4294, %v4349, %v4353
      %v4355 = vshrl.u32 %v4200, 16
      %v4357 = vor.u32 %v4355, %v4337
      %v4359 = vshll.u32 %v4203, 16
      %v4361 = vrot.slane %v4359, 1
      %v4362 = vsel %vm4294, %v4357, %v4361
      %v4363 = vshrl.u32 %v4201, 16
      %v4365 = vor.u32 %v4363, %v4345
      %v4367 = vshll.u32 %v4204, 16
      %v4369 = vrot.slane %v4367, 1
      %v4370 = vsel %vm4294, %v4365, %v4369
      %v4371 = vshrl.u32 %v4202, 16
      %v4373 = vor.u32 %v4371, %v4353
      %v4375 = vshll.u32 %v4205, 16
      %v4377 = vrot.slane %v4375, 1
      %v4378 = vsel %vm4294, %v4373, %v4377
      %v4379 = vshrl.u32 %v4203, 16
      %v4381 = vor.u32 %v4379, %v4361
      %v4383 = vshll.u32 %v4206, 16
      %v4385 = vrot.slane %v4383, 1
      %v4386 = vsel %vm4294, %v4381, %v4385
      %v4387 = vshrl.u32 %v4204, 16
      %v4389 = vor.u32 %v4387, %v4369
      %v4391 = vshll.u32 %v4207, 16
      %v4393 = vrot.slane %v4391, 1
      %v4394 = vsel %vm4294, %v4389, %v4393
      %v4395 = vshrl.u32 %v4205, 16
      %v4397 = vor.u32 %v4395, %v4377
      %v4399 = vshll.u32 %v4208, 16
      %v4401 = vrot.slane %v4399, 1
      %v4402 = vsel %vm4294, %v4397, %v4401
      %v4403 = vshrl.u32 %v4206, 16
      %v4405 = vor.u32 %v4403, %v4385
      %v4407 = vshll.u32 %v4209, 16
      %v4409 = vrot.slane %v4407, 1
      %v4410 = vsel %vm4294, %v4405, %v4409
      %v4411 = vshrl.u32 %v4207, 16
      %v4413 = vor.u32 %v4411, %v4393
      %v4415 = vshll.u32 %v4210, 16
      %v4417 = vrot.slane %v4415, 1
      %v4418 = vsel %vm4294, %v4413, %v4417
      %v4419 = vshrl.u32 %v4208, 16
      %v4421 = vor.u32 %v4419, %v4401
      %v4423 = vshll.u32 %v4211, 16
      %v4425 = vrot.slane %v4423, 1
      %v4426 = vsel %vm4294, %v4421, %v4425
      %v4427 = vshrl.u32 %v4209, 16
      %v4429 = vor.u32 %v4427, %v4409
      %v4431 = vshll.u32 %v4212, 16
      %v4433 = vrot.slane %v4431, 1
      %v4434 = vsel %vm4294, %v4429, %v4433
      %v4435 = vshrl.u32 %v4210, 16
      %v4437 = vor.u32 %v4435, %v4417
      %v4439 = vshll.u32 %v4213, 16
      %v4441 = vrot.slane %v4439, 1
      %v4442 = vsel %vm4294, %v4437, %v4441
      %v4443 = vshrl.u32 %v4211, 16
      %v4445 = vor.u32 %v4443, %v4425
      %v4447 = vshll.u32 %v4214, 16
      %v4449 = vrot.slane %v4447, 1
      %v4450 = vsel %vm4294, %v4445, %v4449
      %v4451 = vshrl.u32 %v4212, 16
      %v4453 = vor.u32 %v4451, %v4433
      %v4455 = vshll.u32 %v4215, 16
      %v4457 = vrot.slane %v4455, 1
      %v4458 = vsel %vm4294, %v4453, %v4457
      %v4459 = vshrl.u32 %v4213, 16
      %v4461 = vor.u32 %v4459, %v4441
      %v4463 = vshll.u32 %v4216, 16
      %v4465 = vrot.slane %v4463, 1
      %v4466 = vsel %vm4294, %v4461, %v4465
      %v4467 = vshrl.u32 %v4214, 16
      %v4469 = vor.u32 %v4467, %v4449
      %v4471 = vshll.u32 %v4217, 16
      %v4473 = vrot.slane %v4471, 1
      %v4474 = vsel %vm4294, %v4469, %v4473
      %v4475 = vshrl.u32 %v4215, 16
      %v4477 = vor.u32 %v4475, %v4457
      %v4479 = vshll.u32 %v4218, 16
      %v4481 = vrot.slane %v4479, 1
      %v4482 = vsel %vm4294, %v4477, %v4481
      %v4483 = vshrl.u32 %v4216, 16
      %v4485 = vor.u32 %v4483, %v4465
      %v4487 = vshll.u32 %v4219, 16
      %v4489 = vrot.slane %v4487, 1
      %v4490 = vsel %vm4294, %v4485, %v4489
      %v4491 = vshrl.u32 %v4217, 16
      %v4493 = vor.u32 %v4491, %v4473
      %v4495 = vshll.u32 %v4220, 16
      %v4497 = vrot.slane %v4495, 1
      %v4498 = vsel %vm4294, %v4493, %v4497
      %v4499 = vshrl.u32 %v4218, 16
      %v4501 = vor.u32 %v4499, %v4481
      %v4503 = vshll.u32 %v4221, 16
      %v4505 = vrot.slane %v4503, 1
      %v4506 = vsel %vm4294, %v4501, %v4505
      %v4507 = vshrl.u32 %v4219, 16
      %v4509 = vor.u32 %v4507, %v4489
      %v4511 = vshll.u32 %v4222, 16
      %v4513 = vrot.slane %v4511, 1
      %v4514 = vsel %vm4294, %v4509, %v4513
      %v4515 = vshrl.u32 %v4220, 16
      %v4517 = vor.u32 %v4515, %v4497
      %v4519 = vshll.u32 %v4223, 16
      %v4521 = vrot.slane %v4519, 1
      %v4522 = vsel %vm4294, %v4517, %v4521
      %v4523 = vshrl.u32 %v4221, 16
      %v4525 = vor.u32 %v4523, %v4505
      %v4527 = vshll.u32 %v4224, 16
      %v4529 = vrot.slane %v4527, 1
      %v4530 = vsel %vm4294, %v4525, %v4529
      %v4531 = vshrl.u32 %v4222, 16
      %v4533 = vor.u32 %v4531, %v4513
      %v4535 = vshll.u32 %v4225, 16
      %v4537 = vrot.slane %v4535, 1
      %v4538 = vsel %vm4294, %v4533, %v4537
      %v4539 = vshrl.u32 %v4223, 16
      %v4541 = vor.u32 %v4539, %v4521
      %v4543 = vshll.u32 %v4226, 16
      %v4545 = vrot.slane %v4543, 1
      %v4546 = vsel %vm4294, %v4541, %v4545
      %v4547 = vshrl.u32 %v4224, 16
      %v4549 = vor.u32 %v4547, %v4529
      %v4551 = vshll.u32 %v4227, 16
      %v4553 = vrot.slane %v4551, 1
      %v4554 = vsel %vm4294, %v4549, %v4553
      %v4555 = vshrl.u32 %v4225, 16
      %v4557 = vor.u32 %v4555, %v4537
      %v4559 = vshll.u32 %v4228, 16
      %v4561 = vrot.slane %v4559, 1
      %v4562 = vsel %vm4294, %v4557, %v4561
      %v4563 = vshrl.u32 %v4226, 16
      %v4565 = vor.u32 %v4563, %v4545
      %v4567 = vshll.u32 %v4229, 16
      %v4569 = vrot.slane %v4567, 1
      %v4570 = vsel %vm4294, %v4565, %v4569
      %v4571 = vshrl.u32 %v4227, 16
      %v4573 = vor.u32 %v4571, %v4553
      %v4575 = vshll.u32 %v4230, 16
      %v4577 = vrot.slane %v4575, 1
      %v4578 = vsel %vm4294, %v4573, %v4577
      %v4579 = vshrl.u32 %v4228, 16
      %v4581 = vor.u32 %v4579, %v4561
      %v4583 = vshll.u32 %v4231, 16
      %v4585 = vrot.slane %v4583, 1
      %v4586 = vsel %vm4294, %v4581, %v4585
      %v4587 = vshrl.u32 %v4229, 16
      %v4589 = vor.u32 %v4587, %v4569
      %v4591 = vshll.u32 %v4232, 16
      %v4593 = vrot.slane %v4591, 1
      %v4594 = vsel %vm4294, %v4589, %v4593
      %v4595 = vshrl.u32 %v4230, 16
      %v4597 = vor.u32 %v4595, %v4577
      %v4599 = vshll.u32 %v4233, 16
      %v4601 = vrot.slane %v4599, 1
      %v4602 = vsel %vm4294, %v4597, %v4601
      %v4603 = vshrl.u32 %v4231, 16
      %v4605 = vor.u32 %v4603, %v4585
      %v4607 = vshll.u32 %v4234, 16
      %v4609 = vrot.slane %v4607, 1
      %v4610 = vsel %vm4294, %v4605, %v4609
      %v4611 = vshrl.u32 %v4232, 16
      %v4613 = vor.u32 %v4611, %v4593
      %v4615 = vshll.u32 %v4235, 16
      %v4617 = vrot.slane %v4615, 1
      %v4618 = vsel %vm4294, %v4613, %v4617
      %v4619 = vshrl.u32 %v4233, 16
      %v4621 = vor.u32 %v4619, %v4601
      %v4623 = vshll.u32 %v4236, 16
      %v4625 = vrot.slane %v4623, 1
      %v4626 = vsel %vm4294, %v4621, %v4625
      %v4627 = vshrl.u32 %v4234, 16
      %v4629 = vor.u32 %v4627, %v4609
      %v4631 = vshll.u32 %v4237, 16
      %v4633 = vrot.slane %v4631, 1
      %v4634 = vsel %vm4294, %v4629, %v4633
      %v4635 = vshrl.u32 %v4235, 16
      %v4637 = vor.u32 %v4635, %v4617
      %v4639 = vshll.u32 %v4238, 16
      %v4641 = vrot.slane %v4639, 1
      %v4642 = vsel %vm4294, %v4637, %v4641
      %v4643 = vshrl.u32 %v4236, 16
      %v4645 = vor.u32 %v4643, %v4625
      %v4647 = vshll.u32 %v4239, 16
      %v4649 = vrot.slane %v4647, 1
      %v4650 = vsel %vm4294, %v4645, %v4649
      %v4651 = vshrl.u32 %v4237, 16
      %v4653 = vor.u32 %v4651, %v4633
      %v4655 = vshll.u32 %v4240, 16
      %v4657 = vrot.slane %v4655, 1
      %v4658 = vsel %vm4294, %v4653, %v4657
      %v4659 = vshrl.u32 %v4238, 16
      %v4661 = vor.u32 %v4659, %v4641
      %v4663 = vshll.u32 %v4241, 16
      %v4665 = vrot.slane %v4663, 1
      %v4666 = vsel %vm4294, %v4661, %v4665
      %v4667 = vshrl.u32 %v4239, 16
      %v4669 = vor.u32 %v4667, %v4649
      %v4671 = vshll.u32 %v4242, 16
      %v4673 = vrot.slane %v4671, 1
      %v4674 = vsel %vm4294, %v4669, %v4673
      %v4675 = vshrl.u32 %v4240, 16
      %v4677 = vor.u32 %v4675, %v4657
      %v4679 = vshll.u32 %v4243, 16
      %v4681 = vrot.slane %v4679, 1
      %v4682 = vsel %vm4294, %v4677, %v4681
      %v4683 = vshrl.u32 %v4241, 16
      %v4685 = vor.u32 %v4683, %v4665
      %v4687 = vshll.u32 %v4244, 16
      %v4689 = vrot.slane %v4687, 1
      %v4690 = vsel %vm4294, %v4685, %v4689
      %v4787 = vunpack.c.l.b16 %v4246
      %v4788 = vunpack.c.l.b16 %v4247
      %v4789 = vunpack.c.l.b16 %v4248
      %v4790 = vunpack.c.l.b16 %v4249
      %v4791 = vunpack.c.l.b16 %v4250
      %v4792 = vunpack.c.l.b16 %v4251
      %v4793 = vunpack.c.l.b16 %v4252
      %v4794 = vunpack.c.l.b16 %v4253
      %v4795 = vunpack.c.l.b16 %v4254
      %v4796 = vunpack.c.l.b16 %v4255
      %v4797 = vunpack.c.l.b16 %v4256
      %v4798 = vunpack.c.l.b16 %v4257
      %v4799 = vunpack.c.l.b16 %v4258
      %v4800 = vunpack.c.l.b16 %v4259
      %v4801 = vunpack.c.l.b16 %v4260
      %v4802 = vunpack.c.l.b16 %v4261
      %v4803 = vunpack.c.l.b16 %v4262
      %v4804 = vunpack.c.l.b16 %v4263
      %v4805 = vunpack.c.l.b16 %v4264
      %v4806 = vunpack.c.l.b16 %v4265
      %v4807 = vunpack.c.l.b16 %v4266
      %v4808 = vunpack.c.l.b16 %v4267
      %v4809 = vunpack.c.l.b16 %v4268
      %v4810 = vunpack.c.l.b16 %v4269
      %v4811 = vunpack.c.l.b16 %v4270
      %v4812 = vunpack.c.l.b16 %v4271
      %v4813 = vunpack.c.l.b16 %v4272
      %v4814 = vunpack.c.l.b16 %v4273
      %v4815 = vunpack.c.l.b16 %v4274
      %v4816 = vunpack.c.l.b16 %v4275
      %v4817 = vunpack.c.l.b16 %v4276
      %v4818 = vunpack.c.l.b16 %v4277
      %v4819 = vunpack.c.l.b16 %v4278
      %v4820 = vunpack.c.l.b16 %v4279
      %v4821 = vunpack.c.l.b16 %v4280
      %v4822 = vunpack.c.l.b16 %v4281
      %v4823 = vunpack.c.l.b16 %v4282
      %v4824 = vunpack.c.l.b16 %v4283
      %v4825 = vunpack.c.l.b16 %v4284
      %v4826 = vunpack.c.l.b16 %v4285
      %v4827 = vunpack.c.l.b16 %v4286
      %v4828 = vunpack.c.l.b16 %v4287
      %v4829 = vunpack.c.l.b16 %v4288
      %v4830 = vunpack.c.l.b16 %v4289
      %v4831 = vunpack.c.l.b16 %v4290
      %v4832 = vunpack.c.l.b16 %v4291
      %v4833 = vunpack.c.l.b16 %v4292
      %v4834 = vunpack.c.l.b16 %v4293
      %v4835 = vpack.c.b16 %v4788, %v4787
      %v4836 = vpack.c.b16 %v4790, %v4789
      %v4837 = vpack.c.b16 %v4792, %v4791
      %v4838 = vpack.c.b16 %v4794, %v4793
      %v4839 = vpack.c.b16 %v4796, %v4795
      %v4840 = vpack.c.b16 %v4798, %v4797
      %v4841 = vpack.c.b16 %v4800, %v4799
      %v4842 = vpack.c.b16 %v4802, %v4801
      %v4843 = vpack.c.b16 %v4804, %v4803
      %v4844 = vpack.c.b16 %v4806, %v4805
      %v4845 = vpack.c.b16 %v4808, %v4807
      %v4846 = vpack.c.b16 %v4810, %v4809
      %v4847 = vpack.c.b16 %v4812, %v4811
      %v4848 = vpack.c.b16 %v4814, %v4813
      %v4849 = vpack.c.b16 %v4816, %v4815
      %v4850 = vpack.c.b16 %v4818, %v4817
      %v4851 = vpack.c.b16 %v4820, %v4819
      %v4852 = vpack.c.b16 %v4822, %v4821
      %v4853 = vpack.c.b16 %v4824, %v4823
      %v4854 = vpack.c.b16 %v4826, %v4825
      %v4855 = vpack.c.b16 %v4828, %v4827
      %v4856 = vpack.c.b16 %v4830, %v4829
      %v4857 = vpack.c.b16 %v4832, %v4831
      %v4858 = vpack.c.b16 %v4834, %v4833
      %4883 = vmatprep.subr.bf16.mxu0 0
      %4884 = vmatpush1.bf16.msra.mxu0 %v4842
      %4885 = vmatprep.subr.bf16.mxu0 0
      %4886 = vmatpush1.bf16.msra.mxu0 %v4841
      %4887 = vmatprep.subr.bf16.mxu0 0
      %4888 = vmatpush1.bf16.msra.mxu0 %v4840
      %4889 = vmatprep.subr.bf16.mxu0 0
      %4890 = vmatpush1.bf16.msra.mxu0 %v4839
      %4891 = vmatprep.subr.bf16.mxu0 0
      %4892 = vmatpush1.bf16.msra.mxu0 %v4838
      %4893 = vmatprep.subr.bf16.mxu0 0
      %4894 = vmatpush1.bf16.msra.mxu0 %v4837
      %4895 = vmatprep.subr.bf16.mxu0 0
      %4896 = vmatpush1.bf16.msra.mxu0 %v4836
      %4897 = vmatprep.subr.bf16.mxu0 0
      %4898 = vmatpush1.bf16.msra.mxu0 %v4835
      %4899 = vmatprep.subr.bf16.mxu0 0
      %4900 = vmatpush2.bf16.msra.mxu0 %v4850
      %4901 = vmatprep.subr.bf16.mxu0 0
      %4902 = vmatpush2.bf16.msra.mxu0 %v4849
      %4903 = vmatprep.subr.bf16.mxu0 0
      %4904 = vmatpush2.bf16.msra.mxu0 %v4848
      %4905 = vmatprep.subr.bf16.mxu0 0
      %4906 = vmatpush2.bf16.msra.mxu0 %v4847
      %4907 = vmatprep.subr.bf16.mxu0 0
      %4908 = vmatpush2.bf16.msra.mxu0 %v4846
      %4909 = vmatprep.subr.bf16.mxu0 0
      %4910 = vmatpush2.bf16.msra.mxu0 %v4845
      %4911 = vmatprep.subr.bf16.mxu0 0
      %4912 = vmatpush2.bf16.msra.mxu0 %v4844
      %4913 = vmatprep.subr.bf16.mxu0 0
      %4914 = vmatpush2.bf16.msra.mxu0 %v4843
      %4915 = vmatprep.mubr.bf16.mxu0 %v4318
      %4916 = vmatmul.mubr.bf16.gmra.mxu0 %v4306
      %v4917 = vpop.f32.mrf.mxu0
      %v4918 = vadd.f32 0.0, %v4917
      %v4919 = vpop.f32.mrf.mxu0
      %v4920 = vpop.f32.mrf.mxu0
      %v4921 = vadd.f32 0.0, %v4920
      %v4922 = vpop.f32.mrf.mxu0
      %4923 = vmatprep.mubr.bf16.mxu0 %v4346
      %4924 = vmatmul.mubr.bf16.gmra.mxu0 %v4338
      %v4925 = vpop.f32.mrf.mxu0
      %v4926 = vadd.f32 0.0, %v4925
      %v4927 = vpop.f32.mrf.mxu0
      %v4928 = vpop.f32.mrf.mxu0
      %v4929 = vadd.f32 0.0, %v4928
      %v4930 = vpop.f32.mrf.mxu0
      %4931 = vmatprep.mubr.bf16.mxu0 %v4370
      %4932 = vmatmul.mubr.bf16.gmra.mxu0 %v4362
      %v4933 = vpop.f32.mrf.mxu0
      %v4934 = vadd.f32 0.0, %v4933
      %v4935 = vpop.f32.mrf.mxu0
      %v4936 = vpop.f32.mrf.mxu0
      %v4937 = vadd.f32 0.0, %v4936
      %v4938 = vpop.f32.mrf.mxu0
      %4939 = vmatprep.mubr.bf16.mxu0 %v4394
      %4940 = vmatmul.mubr.bf16.gmra.mxu0 %v4386
      %v4941 = vpop.f32.mrf.mxu0
      %v4942 = vadd.f32 0.0, %v4941
      %v4943 = vpop.f32.mrf.mxu0
      %v4944 = vpop.f32.mrf.mxu0
      %v4945 = vadd.f32 0.0, %v4944
      %v4946 = vpop.f32.mrf.mxu0
      %4947 = vmatprep.mubr.bf16.mxu0 %v4418
      %4948 = vmatmul.mubr.bf16.gmra.mxu0 %v4410
      %v4949 = vpop.f32.mrf.mxu0
      %v4950 = vadd.f32 0.0, %v4949
      %v4951 = vpop.f32.mrf.mxu0
      %v4952 = vpop.f32.mrf.mxu0
      %v4953 = vadd.f32 0.0, %v4952
      %v4954 = vpop.f32.mrf.mxu0
      %4955 = vmatprep.mubr.bf16.mxu0 %v4442
      %4956 = vmatmul.mubr.bf16.gmra.mxu0 %v4434
      %v4957 = vpop.f32.mrf.mxu0
      %v4958 = vadd.f32 0.0, %v4957
      %v4959 = vpop.f32.mrf.mxu0
      %v4960 = vpop.f32.mrf.mxu0
      %v4961 = vadd.f32 0.0, %v4960
      %v4962 = vpop.f32.mrf.mxu0
      %4963 = vmatprep.mubr.bf16.mxu0 %v4466
      %4964 = vmatmul.mubr.bf16.gmra.mxu0 %v4458
      %v4965 = vpop.f32.mrf.mxu0
      %v4966 = vadd.f32 0.0, %v4965
      %v4967 = vpop.f32.mrf.mxu0
      %v4968 = vpop.f32.mrf.mxu0
      %v4969 = vadd.f32 0.0, %v4968
      %v4970 = vpop.f32.mrf.mxu0
      %4971 = vmatprep.mubr.bf16.mxu0 %v4490
      %4972 = vmatmul.mubr.bf16.gmra.mxu0 %v4482
      %v4973 = vpop.f32.mrf.mxu0
      %v4974 = vadd.f32 0.0, %v4973
      %v4975 = vpop.f32.mrf.mxu0
      %v4976 = vpop.f32.mrf.mxu0
      %v4977 = vadd.f32 0.0, %v4976
      %v4978 = vpop.f32.mrf.mxu0
      %4979 = vmatprep.mubr.bf16.mxu0 %v4514
      %4980 = vmatmul.mubr.bf16.gmra.mxu0 %v4506
      %v4981 = vpop.f32.mrf.mxu0
      %v4982 = vadd.f32 0.0, %v4981
      %v4983 = vpop.f32.mrf.mxu0
      %v4984 = vpop.f32.mrf.mxu0
      %v4985 = vadd.f32 0.0, %v4984
      %v4986 = vpop.f32.mrf.mxu0
      %4987 = vmatprep.mubr.bf16.mxu0 %v4538
      %4988 = vmatmul.mubr.bf16.gmra.mxu0 %v4530
      %v4989 = vpop.f32.mrf.mxu0
      %v4990 = vadd.f32 0.0, %v4989
      %v4991 = vpop.f32.mrf.mxu0
      %v4992 = vpop.f32.mrf.mxu0
      %v4993 = vadd.f32 0.0, %v4992
      %v4994 = vpop.f32.mrf.mxu0
      %4995 = vmatprep.mubr.bf16.mxu0 %v4562
      %4996 = vmatmul.mubr.bf16.gmra.mxu0 %v4554
      %v4997 = vpop.f32.mrf.mxu0
      %v4998 = vadd.f32 0.0, %v4997
      %v4999 = vpop.f32.mrf.mxu0
      %v5000 = vpop.f32.mrf.mxu0
      %v5001 = vadd.f32 0.0, %v5000
      %v5002 = vpop.f32.mrf.mxu0
      %5003 = vmatprep.mubr.bf16.mxu0 %v4586
      %5004 = vmatmul.mubr.bf16.gmra.mxu0 %v4578
      %v5005 = vpop.f32.mrf.mxu0
      %v5006 = vadd.f32 0.0, %v5005
      %v5007 = vpop.f32.mrf.mxu0
      %v5008 = vpop.f32.mrf.mxu0
      %v5009 = vadd.f32 0.0, %v5008
      %v5010 = vpop.f32.mrf.mxu0
      %5011 = vmatprep.mubr.bf16.mxu0 %v4610
      %5012 = vmatmul.mubr.bf16.gmra.mxu0 %v4602
      %v5013 = vpop.f32.mrf.mxu0
      %v5014 = vadd.f32 0.0, %v5013
      %v5015 = vpop.f32.mrf.mxu0
      %v5016 = vpop.f32.mrf.mxu0
      %v5017 = vadd.f32 0.0, %v5016
      %v5018 = vpop.f32.mrf.mxu0
      %5019 = vmatprep.mubr.bf16.mxu0 %v4634
      %5020 = vmatmul.mubr.bf16.gmra.mxu0 %v4626
      %v5021 = vpop.f32.mrf.mxu0
      %v5022 = vadd.f32 0.0, %v5021
      %v5023 = vpop.f32.mrf.mxu0
      %v5024 = vpop.f32.mrf.mxu0
      %v5025 = vadd.f32 0.0, %v5024
      %v5026 = vpop.f32.mrf.mxu0
      %5027 = vmatprep.mubr.bf16.mxu0 %v4658
      %5028 = vmatmul.mubr.bf16.gmra.mxu0 %v4650
      %v5029 = vpop.f32.mrf.mxu0
      %v5030 = vadd.f32 0.0, %v5029
      %v5031 = vpop.f32.mrf.mxu0
      %v5032 = vpop.f32.mrf.mxu0
      %v5033 = vadd.f32 0.0, %v5032
      %v5034 = vpop.f32.mrf.mxu0
      %5035 = vmatprep.mubr.bf16.mxu0 %v4682
      %5036 = vmatmul.mubr.bf16.gmra.mxu0 %v4674
      %v5037 = vpop.f32.mrf.mxu0
      %v5038 = vadd.f32 0.0, %v5037
      %v5039 = vpop.f32.mrf.mxu0
      %v5040 = vpop.f32.mrf.mxu0
      %v5041 = vadd.f32 0.0, %v5040
      %v5042 = vpop.f32.mrf.mxu0
      %5043 = vdwg.mxu0
      %5044 = vmatprep.subr.bf16.mxu0 0
      %5045 = vmatpush1.bf16.msra.mxu0 %v4858
      %5046 = vmatprep.subr.bf16.mxu0 0
      %5047 = vmatpush1.bf16.msra.mxu0 %v4857
      %5048 = vmatprep.subr.bf16.mxu0 0
      %5049 = vmatpush1.bf16.msra.mxu0 %v4856
      %5050 = vmatprep.subr.bf16.mxu0 0
      %5051 = vmatpush1.bf16.msra.mxu0 %v4855
      %5052 = vmatprep.subr.bf16.mxu0 0
      %5053 = vmatpush1.bf16.msra.mxu0 %v4854
      %5054 = vmatprep.subr.bf16.mxu0 0
      %5055 = vmatpush1.bf16.msra.mxu0 %v4853
      %5056 = vmatprep.subr.bf16.mxu0 0
      %5057 = vmatpush1.bf16.msra.mxu0 %v4852
      %5058 = vmatprep.subr.bf16.mxu0 0
      %5059 = vmatpush1.bf16.msra.mxu0 %v4851
      %5060 = vmatprep.subr.bf16.mxu0 0
      %5061 = vmatpush2.bf16.msra.mxu0 0
      %5062 = vmatprep.subr.bf16.mxu0 0
      %5063 = vmatpush2.bf16.msra.mxu0 0
      %5064 = vmatprep.subr.bf16.mxu0 0
      %5065 = vmatpush2.bf16.msra.mxu0 0
      %5066 = vmatprep.subr.bf16.mxu0 0
      %5067 = vmatpush2.bf16.msra.mxu0 0
      %5068 = vmatprep.subr.bf16.mxu0 0
      %5069 = vmatpush2.bf16.msra.mxu0 0
      %5070 = vmatprep.subr.bf16.mxu0 0
      %5071 = vmatpush2.bf16.msra.mxu0 0
      %5072 = vmatprep.subr.bf16.mxu0 0
      %5073 = vmatpush2.bf16.msra.mxu0 0
      %5074 = vmatprep.subr.bf16.mxu0 0
      %5075 = vmatpush2.bf16.msra.mxu0 0
      %5076 = vmatprep.mubr.bf16.mxu0 0
      %5077 = vmatmul.mubr.bf16.gmra.mxu0 %v4330
      %v5078 = vpop.f32.mrf.mxu0
      %v5079 = vadd.f32 %v4918, %v5078
      %v5080 = vpop.f32.mrf.mxu0
      %v5081 = vpop.f32.mrf.mxu0
      %v5082 = vadd.f32 %v4921, %v5081
      %v5083 = vpop.f32.mrf.mxu0
      %5084 = vmatprep.mubr.bf16.mxu0 0
      %5085 = vmatmul.mubr.bf16.gmra.mxu0 %v4354
      %v5086 = vpop.f32.mrf.mxu0
      %v5087 = vadd.f32 %v4926, %v5086
      %v5088 = vpop.f32.mrf.mxu0
      %v5089 = vpop.f32.mrf.mxu0
      %v5090 = vadd.f32 %v4929, %v5089
      %v5091 = vpop.f32.mrf.mxu0
      %5092 = vmatprep.mubr.bf16.mxu0 0
      %5093 = vmatmul.mubr.bf16.gmra.mxu0 %v4378
      %v5094 = vpop.f32.mrf.mxu0
      %v5095 = vadd.f32 %v4934, %v5094
      %v5096 = vpop.f32.mrf.mxu0
      %v5097 = vpop.f32.mrf.mxu0
      %v5098 = vadd.f32 %v4937, %v5097
      %v5099 = vpop.f32.mrf.mxu0
      %5100 = vmatprep.mubr.bf16.mxu0 0
      %5101 = vmatmul.mubr.bf16.gmra.mxu0 %v4402
      %v5102 = vpop.f32.mrf.mxu0
      %v5103 = vadd.f32 %v4942, %v5102
      %v5104 = vpop.f32.mrf.mxu0
      %v5105 = vpop.f32.mrf.mxu0
      %v5106 = vadd.f32 %v4945, %v5105
      %v5107 = vpop.f32.mrf.mxu0
      %5108 = vmatprep.mubr.bf16.mxu0 0
      %5109 = vmatmul.mubr.bf16.gmra.mxu0 %v4426
      %v5110 = vpop.f32.mrf.mxu0
      %v5111 = vadd.f32 %v4950, %v5110
      %v5112 = vpop.f32.mrf.mxu0
      %v5113 = vpop.f32.mrf.mxu0
      %v5114 = vadd.f32 %v4953, %v5113
      %v5115 = vpop.f32.mrf.mxu0
      %5116 = vmatprep.mubr.bf16.mxu0 0
      %5117 = vmatmul.mubr.bf16.gmra.mxu0 %v4450
      %v5118 = vpop.f32.mrf.mxu0
      %v5119 = vadd.f32 %v4958, %v5118
      %v5120 = vpop.f32.mrf.mxu0
      %v5121 = vpop.f32.mrf.mxu0
      %v5122 = vadd.f32 %v4961, %v5121
      %v5123 = vpop.f32.mrf.mxu0
      %5124 = vmatprep.mubr.bf16.mxu0 0
      %5125 = vmatmul.mubr.bf16.gmra.mxu0 %v4474
      %v5126 = vpop.f32.mrf.mxu0
      %v5127 = vadd.f32 %v4966, %v5126
      %v5128 = vpop.f32.mrf.mxu0
      %v5129 = vpop.f32.mrf.mxu0
      %v5130 = vadd.f32 %v4969, %v5129
      %v5131 = vpop.f32.mrf.mxu0
      %5132 = vmatprep.mubr.bf16.mxu0 0
      %5133 = vmatmul.mubr.bf16.gmra.mxu0 %v4498
      %v5134 = vpop.f32.mrf.mxu0
      %v5135 = vadd.f32 %v4974, %v5134
      %v5136 = vpop.f32.mrf.mxu0
      %v5137 = vpop.f32.mrf.mxu0
      %v5138 = vadd.f32 %v4977, %v5137
      %v5139 = vpop.f32.mrf.mxu0
      %5140 = vmatprep.mubr.bf16.mxu0 0
      %5141 = vmatmul.mubr.bf16.gmra.mxu0 %v4522
      %v5142 = vpop.f32.mrf.mxu0
      %v5143 = vadd.f32 %v4982, %v5142
      %v5144 = vpop.f32.mrf.mxu0
      %v5145 = vpop.f32.mrf.mxu0
      %v5146 = vadd.f32 %v4985, %v5145
      %v5147 = vpop.f32.mrf.mxu0
      %5148 = vmatprep.mubr.bf16.mxu0 0
      %5149 = vmatmul.mubr.bf16.gmra.mxu0 %v4546
      %v5150 = vpop.f32.mrf.mxu0
      %v5151 = vadd.f32 %v4990, %v5150
      %v5152 = vpop.f32.mrf.mxu0
      %v5153 = vpop.f32.mrf.mxu0
      %v5154 = vadd.f32 %v4993, %v5153
      %v5155 = vpop.f32.mrf.mxu0
      %5156 = vmatprep.mubr.bf16.mxu0 0
      %5157 = vmatmul.mubr.bf16.gmra.mxu0 %v4570
      %v5158 = vpop.f32.mrf.mxu0
      %v5159 = vadd.f32 %v4998, %v5158
      %v5160 = vpop.f32.mrf.mxu0
      %v5161 = vpop.f32.mrf.mxu0
      %v5162 = vadd.f32 %v5001, %v5161
      %v5163 = vpop.f32.mrf.mxu0
      %5164 = vmatprep.mubr.bf16.mxu0 0
      %5165 = vmatmul.mubr.bf16.gmra.mxu0 %v4594
      %v5166 = vpop.f32.mrf.mxu0
      %v5167 = vadd.f32 %v5006, %v5166
      %v5168 = vpop.f32.mrf.mxu0
      %v5169 = vpop.f32.mrf.mxu0
      %v5170 = vadd.f32 %v5009, %v5169
      %v5171 = vpop.f32.mrf.mxu0
      %5172 = vmatprep.mubr.bf16.mxu0 0
      %5173 = vmatmul.mubr.bf16.gmra.mxu0 %v4618
      %v5174 = vpop.f32.mrf.mxu0
      %v5175 = vadd.f32 %v5014, %v5174
      %v5176 = vpop.f32.mrf.mxu0
      %v5177 = vpop.f32.mrf.mxu0
      %v5178 = vadd.f32 %v5017, %v5177
      %v5179 = vpop.f32.mrf.mxu0
      %5180 = vmatprep.mubr.bf16.mxu0 0
      %5181 = vmatmul.mubr.bf16.gmra.mxu0 %v4642
      %v5182 = vpop.f32.mrf.mxu0
      %v5183 = vadd.f32 %v5022, %v5182
      %v5184 = vpop.f32.mrf.mxu0
      %v5185 = vpop.f32.mrf.mxu0
      %v5186 = vadd.f32 %v5025, %v5185
      %v5187 = vpop.f32.mrf.mxu0
      %5188 = vmatprep.mubr.bf16.mxu0 0
      %5189 = vmatmul.mubr.bf16.gmra.mxu0 %v4666
      %v5190 = vpop.f32.mrf.mxu0
      %v5191 = vadd.f32 %v5030, %v5190
      %v5192 = vpop.f32.mrf.mxu0
      %v5193 = vpop.f32.mrf.mxu0
      %v5194 = vadd.f32 %v5033, %v5193
      %v5195 = vpop.f32.mrf.mxu0
      %5196 = vmatprep.mubr.bf16.mxu0 0
      %5197 = vmatmul.mubr.bf16.gmra.mxu0 %v4690
      %v5198 = vpop.f32.mrf.mxu0
      %v5199 = vadd.f32 %v5038, %v5198
      %v5200 = vpop.f32.mrf.mxu0
      %v5201 = vpop.f32.mrf.mxu0
      %v5202 = vadd.f32 %v5041, %v5201
      %v5203 = vpop.f32.mrf.mxu0
      %5204 = vdwg.mxu0
      %v5205 = vadd.f32 %v3588, %v5079
      %v5206 = vadd.f32 %v3591, %v5082
      %v5207 = vadd.f32 %v3596, %v5087
      %v5208 = vadd.f32 %v3599, %v5090
      %v5209 = vadd.f32 %v3604, %v5095
      %v5210 = vadd.f32 %v3607, %v5098
      %v5211 = vadd.f32 %v3612, %v5103
      %v5212 = vadd.f32 %v3615, %v5106
      %v5213 = vadd.f32 %v3620, %v5111
      %v5214 = vadd.f32 %v3623, %v5114
      %v5215 = vadd.f32 %v3628, %v5119
      %v5216 = vadd.f32 %v3631, %v5122
      %v5217 = vadd.f32 %v3636, %v5127
      %v5218 = vadd.f32 %v3639, %v5130
      %v5219 = vadd.f32 %v3644, %v5135
      %v5220 = vadd.f32 %v3647, %v5138
      %v5221 = vadd.f32 %v3652, %v5143
      %v5222 = vadd.f32 %v3655, %v5146
      %v5223 = vadd.f32 %v3660, %v5151
      %v5224 = vadd.f32 %v3663, %v5154
      %v5225 = vadd.f32 %v3668, %v5159
      %v5226 = vadd.f32 %v3671, %v5162
      %v5227 = vadd.f32 %v3676, %v5167
      %v5228 = vadd.f32 %v3679, %v5170
      %v5229 = vadd.f32 %v3684, %v5175
      %v5230 = vadd.f32 %v3687, %v5178
      %v5231 = vadd.f32 %v3692, %v5183
      %v5232 = vadd.f32 %v3695, %v5186
      %v5233 = vadd.f32 %v3700, %v5191
      %v5234 = vadd.f32 %v3703, %v5194
      %v5235 = vadd.f32 %v3708, %v5199
      %v5236 = vadd.f32 %v3711, %v5202
      %v5237 = vld [vmem:[%s8] sm:$0x1]
      %v5239 = vlaneseq
      %v5240 = vshrl.u32 %v5239, 7
      %v5241 = vsub.s32 0, %v5240
      %v5242 = vrot.slane %v5237, %v5241
      %v5244 = vadd.f32 %v5205, %v5242
      %v5245 = vadd.f32 %v5206, %v5242
      %v5246 = vadd.f32 %v5207, %v5242
      %v5247 = vadd.f32 %v5208, %v5242
      %v5248 = vadd.f32 %v5209, %v5242
      %v5249 = vadd.f32 %v5210, %v5242
      %v5250 = vadd.f32 %v5211, %v5242
      %v5251 = vadd.f32 %v5212, %v5242
      %v5252 = vadd.f32 %v5213, %v5242
      %v5253 = vadd.f32 %v5214, %v5242
      %v5254 = vadd.f32 %v5215, %v5242
      %v5255 = vadd.f32 %v5216, %v5242
      %v5256 = vadd.f32 %v5217, %v5242
      %v5257 = vadd.f32 %v5218, %v5242
      %v5258 = vadd.f32 %v5219, %v5242
      %v5259 = vadd.f32 %v5220, %v5242
      %v5260 = vadd.f32 %v5221, %v5242
      %v5261 = vadd.f32 %v5222, %v5242
      %v5262 = vadd.f32 %v5223, %v5242
      %v5263 = vadd.f32 %v5224, %v5242
      %v5264 = vadd.f32 %v5225, %v5242
      %v5265 = vadd.f32 %v5226, %v5242
      %v5266 = vadd.f32 %v5227, %v5242
      %v5267 = vadd.f32 %v5228, %v5242
      %v5268 = vadd.f32 %v5229, %v5242
      %v5269 = vadd.f32 %v5230, %v5242
      %v5270 = vadd.f32 %v5231, %v5242
      %v5271 = vadd.f32 %v5232, %v5242
      %v5272 = vadd.f32 %v5233, %v5242
      %v5273 = vadd.f32 %v5234, %v5242
      %v5274 = vadd.f32 %v5235, %v5242
      %v5275 = vadd.f32 %v5236, %v5242
      %v5276 = vld [vmem:[%s9] sm:$0x1]
      %v5278 = vlaneseq
      %v5279 = vshrl.u32 %v5278, 7
      %v5280 = vsub.s32 0, %v5279
      %v5281 = vrot.slane %v5276, %v5280
      %v5283 = vmul.f32 %v5244, %v5281
      %v5284 = vmul.f32 %v5245, %v5281
      %v5285 = vmul.f32 %v5246, %v5281
      %v5286 = vmul.f32 %v5247, %v5281
      %v5287 = vmul.f32 %v5248, %v5281
      %v5288 = vmul.f32 %v5249, %v5281
      %v5289 = vmul.f32 %v5250, %v5281
      %v5290 = vmul.f32 %v5251, %v5281
      %v5291 = vmul.f32 %v5252, %v5281
      %v5292 = vmul.f32 %v5253, %v5281
      %v5293 = vmul.f32 %v5254, %v5281
      %v5294 = vmul.f32 %v5255, %v5281
      %v5295 = vmul.f32 %v5256, %v5281
      %v5296 = vmul.f32 %v5257, %v5281
      %v5297 = vmul.f32 %v5258, %v5281
      %v5298 = vmul.f32 %v5259, %v5281
      %v5299 = vmul.f32 %v5260, %v5281
      %v5300 = vmul.f32 %v5261, %v5281
      %v5301 = vmul.f32 %v5262, %v5281
      %v5302 = vmul.f32 %v5263, %v5281
      %v5303 = vmul.f32 %v5264, %v5281
      %v5304 = vmul.f32 %v5265, %v5281
      %v5305 = vmul.f32 %v5266, %v5281
      %v5306 = vmul.f32 %v5267, %v5281
      %v5307 = vmul.f32 %v5268, %v5281
      %v5308 = vmul.f32 %v5269, %v5281
      %v5309 = vmul.f32 %v5270, %v5281
      %v5310 = vmul.f32 %v5271, %v5281
      %v5311 = vmul.f32 %v5272, %v5281
      %v5312 = vmul.f32 %v5273, %v5281
      %v5313 = vmul.f32 %v5274, %v5281
      %v5314 = vmul.f32 %v5275, %v5281
      %v5315 = vld [vmem:[%s10] sm:$0x1]
      %v5317 = vlaneseq
      %v5318 = vshrl.u32 %v5317, 7
      %v5319 = vsub.s32 0, %v5318
      %v5320 = vrot.slane %v5315, %v5319
      %v5322 = vadd.f32 %v5283, %v5320
      %v5323 = vadd.f32 %v5284, %v5320
      %v5324 = vadd.f32 %v5285, %v5320
      %v5325 = vadd.f32 %v5286, %v5320
      %v5326 = vadd.f32 %v5287, %v5320
      %v5327 = vadd.f32 %v5288, %v5320
      %v5328 = vadd.f32 %v5289, %v5320
      %v5329 = vadd.f32 %v5290, %v5320
      %v5330 = vadd.f32 %v5291, %v5320
      %v5331 = vadd.f32 %v5292, %v5320
      %v5332 = vadd.f32 %v5293, %v5320
      %v5333 = vadd.f32 %v5294, %v5320
      %v5334 = vadd.f32 %v5295, %v5320
      %v5335 = vadd.f32 %v5296, %v5320
      %v5336 = vadd.f32 %v5297, %v5320
      %v5337 = vadd.f32 %v5298, %v5320
      %v5338 = vadd.f32 %v5299, %v5320
      %v5339 = vadd.f32 %v5300, %v5320
      %v5340 = vadd.f32 %v5301, %v5320
      %v5341 = vadd.f32 %v5302, %v5320
      %v5342 = vadd.f32 %v5303, %v5320
      %v5343 = vadd.f32 %v5304, %v5320
      %v5344 = vadd.f32 %v5305, %v5320
      %v5345 = vadd.f32 %v5306, %v5320
      %v5346 = vadd.f32 %v5307, %v5320
      %v5347 = vadd.f32 %v5308, %v5320
      %v5348 = vadd.f32 %v5309, %v5320
      %v5349 = vadd.f32 %v5310, %v5320
      %v5350 = vadd.f32 %v5311, %v5320
      %v5351 = vadd.f32 %v5312, %v5320
      %v5352 = vadd.f32 %v5313, %v5320
      %v5353 = vadd.f32 %v5314, %v5320
      %v5354 = vmax.f32 %v5322, 0.0
      %v5355 = vmax.f32 %v5323, 0.0
      %v5356 = vmax.f32 %v5324, 0.0
      %v5357 = vmax.f32 %v5325, 0.0
      %v5358 = vmax.f32 %v5326, 0.0
      %v5359 = vmax.f32 %v5327, 0.0
      %v5360 = vmax.f32 %v5328, 0.0
      %v5361 = vmax.f32 %v5329, 0.0
      %v5362 = vmax.f32 %v5330, 0.0
      %v5363 = vmax.f32 %v5331, 0.0
      %v5364 = vmax.f32 %v5332, 0.0
      %v5365 = vmax.f32 %v5333, 0.0
      %v5366 = vmax.f32 %v5334, 0.0
      %v5367 = vmax.f32 %v5335, 0.0
      %v5368 = vmax.f32 %v5336, 0.0
      %v5369 = vmax.f32 %v5337, 0.0
      %v5370 = vmax.f32 %v5338, 0.0
      %v5371 = vmax.f32 %v5339, 0.0
      %v5372 = vmax.f32 %v5340, 0.0
      %v5373 = vmax.f32 %v5341, 0.0
      %v5374 = vmax.f32 %v5342, 0.0
      %v5375 = vmax.f32 %v5343, 0.0
      %v5376 = vmax.f32 %v5344, 0.0
      %v5377 = vmax.f32 %v5345, 0.0
      %v5378 = vmax.f32 %v5346, 0.0
      %v5379 = vmax.f32 %v5347, 0.0
      %v5380 = vmax.f32 %v5348, 0.0
      %v5381 = vmax.f32 %v5349, 0.0
      %v5382 = vmax.f32 %v5350, 0.0
      %v5383 = vmax.f32 %v5351, 0.0
      %v5384 = vmax.f32 %v5352, 0.0
      %v5385 = vmax.f32 %v5353, 0.0
      %v5386 = vpack.c.bf16 %v5355, %v5354
      %v5387 = vpack.c.bf16 %v5357, %v5356
      %v5388 = vpack.c.bf16 %v5359, %v5358
      %v5389 = vpack.c.bf16 %v5361, %v5360
      %v5390 = vpack.c.bf16 %v5363, %v5362
      %v5391 = vpack.c.bf16 %v5365, %v5364
      %v5392 = vpack.c.bf16 %v5367, %v5366
      %v5393 = vpack.c.bf16 %v5369, %v5368
      %v5394 = vpack.c.bf16 %v5371, %v5370
      %v5395 = vpack.c.bf16 %v5373, %v5372
      %v5396 = vpack.c.bf16 %v5375, %v5374
      %v5397 = vpack.c.bf16 %v5377, %v5376
      %v5398 = vpack.c.bf16 %v5379, %v5378
      %v5399 = vpack.c.bf16 %v5381, %v5380
      %v5400 = vpack.c.bf16 %v5383, %v5382
      %v5401 = vpack.c.bf16 %v5385, %v5384
      %v5402 = vld [vmem:[%s11] sm:$0xf]
      %v5403 = vld [vmem:[%s11 + $0x4] sm:$0xf]
      %v5404 = vld [vmem:[%s11 + $0x8] sm:$0xf]
      %v5405 = vld [vmem:[%s11 + $0xc] sm:$0xf]
      %v5406 = vld [vmem:[%s11 + $0x10] sm:$0xf]
      %v5407 = vld [vmem:[%s11 + $0x14] sm:$0xf]
      %v5408 = vld [vmem:[%s11 + $0x18] sm:$0xf]
      %v5409 = vld [vmem:[%s11 + $0x1c] sm:$0xf]
      %v5410 = vld [vmem:[%s11 + $0x20] sm:$0xf]
      %v5411 = vld [vmem:[%s11 + $0x24] sm:$0xf]
      %v5412 = vld [vmem:[%s11 + $0x28] sm:$0xf]
      %v5413 = vld [vmem:[%s11 + $0x2c] sm:$0xf]
      %v5414 = vld [vmem:[%s11 + $0x30] sm:$0xf]
      %v5415 = vld [vmem:[%s11 + $0x34] sm:$0xf]
      %v5416 = vld [vmem:[%s11 + $0x38] sm:$0xf]
      %v5417 = vld [vmem:[%s11 + $0x3c] sm:$0xf]
      %v5418 = vld [vmem:[%s12] sm:$0x1]
      %v5420 = vlaneseq
      %v5421 = vshrl.u32 %v5420, 7
      %v5422 = vsub.s32 0, %v5421
      %v5423 = vrot.slane %v5418, %v5422
      %v5441 = vunpack.c.l.b16 %v5402
      %v5442 = vunpack.c.l.b16 %v5403
      %v5443 = vunpack.c.l.b16 %v5404
      %v5444 = vunpack.c.l.b16 %v5405
      %v5445 = vunpack.c.l.b16 %v5406
      %v5446 = vunpack.c.l.b16 %v5407
      %v5447 = vunpack.c.l.b16 %v5408
      %v5448 = vunpack.c.l.b16 %v5409
      %v5449 = vunpack.c.l.b16 %v5410
      %v5450 = vunpack.c.l.b16 %v5411
      %v5451 = vunpack.c.l.b16 %v5412
      %v5452 = vunpack.c.l.b16 %v5413
      %v5453 = vunpack.c.l.b16 %v5414
      %v5454 = vunpack.c.l.b16 %v5415
      %v5455 = vunpack.c.l.b16 %v5416
      %v5456 = vunpack.c.l.b16 %v5417
      %v5457 = vpack.c.b16 %v5442, %v5441
      %v5458 = vpack.c.b16 %v5444, %v5443
      %v5459 = vpack.c.b16 %v5446, %v5445
      %v5460 = vpack.c.b16 %v5448, %v5447
      %v5461 = vpack.c.b16 %v5450, %v5449
      %v5462 = vpack.c.b16 %v5452, %v5451
      %v5463 = vpack.c.b16 %v5454, %v5453
      %v5464 = vpack.c.b16 %v5456, %v5455
      %5473 = vmatprep.subr.bf16.mxu0 0
      %5474 = vmatpush1.bf16.msra.mxu0 %v5464
      %5475 = vmatprep.subr.bf16.mxu0 0
      %5476 = vmatpush1.bf16.msra.mxu0 %v5463
      %5477 = vmatprep.subr.bf16.mxu0 0
      %5478 = vmatpush1.bf16.msra.mxu0 %v5462
      %5479 = vmatprep.subr.bf16.mxu0 0
      %5480 = vmatpush1.bf16.msra.mxu0 %v5461
      %5481 = vmatprep.subr.bf16.mxu0 0
      %5482 = vmatpush1.bf16.msra.mxu0 %v5460
      %5483 = vmatprep.subr.bf16.mxu0 0
      %5484 = vmatpush1.bf16.msra.mxu0 %v5459
      %5485 = vmatprep.subr.bf16.mxu0 0
      %5486 = vmatpush1.bf16.msra.mxu0 %v5458
      %5487 = vmatprep.subr.bf16.mxu0 0
      %5488 = vmatpush1.bf16.msra.mxu0 %v5457
      %5489 = vmatprep.subr.bf16.mxu0 0
      %5490 = vmatpush2.bf16.msra.mxu0 0
      %5491 = vmatprep.subr.bf16.mxu0 0
      %5492 = vmatpush2.bf16.msra.mxu0 0
      %5493 = vmatprep.subr.bf16.mxu0 0
      %5494 = vmatpush2.bf16.msra.mxu0 0
      %5495 = vmatprep.subr.bf16.mxu0 0
      %5496 = vmatpush2.bf16.msra.mxu0 0
      %5497 = vmatprep.subr.bf16.mxu0 0
      %5498 = vmatpush2.bf16.msra.mxu0 0
      %5499 = vmatprep.subr.bf16.mxu0 0
      %5500 = vmatpush2.bf16.msra.mxu0 0
      %5501 = vmatprep.subr.bf16.mxu0 0
      %5502 = vmatpush2.bf16.msra.mxu0 0
      %5503 = vmatprep.subr.bf16.mxu0 0
      %5504 = vmatpush2.bf16.msra.mxu0 0
      %5505 = vmatprep.mubr.bf16.mxu0 0
      %5506 = vmatmul.mubr.bf16.gmra.mxu0 %v5386
      %v5507 = vpop.f32.mrf.mxu0
      %v5508 = vadd.f32 %v5423, %v5507
      %v5509 = vpop.f32.mrf.mxu0
      %v5510 = vpop.f32.mrf.mxu0
      %v5511 = vadd.f32 %v5423, %v5510
      %v5512 = vpop.f32.mrf.mxu0
      %5513 = vmatprep.mubr.bf16.mxu0 0
      %5514 = vmatmul.mubr.bf16.gmra.mxu0 %v5387
      %v5515 = vpop.f32.mrf.mxu0
      %v5516 = vadd.f32 %v5423, %v5515
      %v5517 = vpop.f32.mrf.mxu0
      %v5518 = vpop.f32.mrf.mxu0
      %v5519 = vadd.f32 %v5423, %v5518
      %v5520 = vpop.f32.mrf.mxu0
      %5521 = vmatprep.mubr.bf16.mxu0 0
      %5522 = vmatmul.mubr.bf16.gmra.mxu0 %v5388
      %v5523 = vpop.f32.mrf.mxu0
      %v5524 = vadd.f32 %v5423, %v5523
      %v5525 = vpop.f32.mrf.mxu0
      %v5526 = vpop.f32.mrf.mxu0
      %v5527 = vadd.f32 %v5423, %v5526
      %v5528 = vpop.f32.mrf.mxu0
      %5529 = vmatprep.mubr.bf16.mxu0 0
      %5530 = vmatmul.mubr.bf16.gmra.mxu0 %v5389
      %v5531 = vpop.f32.mrf.mxu0
      %v5532 = vadd.f32 %v5423, %v5531
      %v5533 = vpop.f32.mrf.mxu0
      %v5534 = vpop.f32.mrf.mxu0
      %v5535 = vadd.f32 %v5423, %v5534
      %v5536 = vpop.f32.mrf.mxu0
      %5537 = vmatprep.mubr.bf16.mxu0 0
      %5538 = vmatmul.mubr.bf16.gmra.mxu0 %v5390
      %v5539 = vpop.f32.mrf.mxu0
      %v5540 = vadd.f32 %v5423, %v5539
      %v5541 = vpop.f32.mrf.mxu0
      %v5542 = vpop.f32.mrf.mxu0
      %v5543 = vadd.f32 %v5423, %v5542
      %v5544 = vpop.f32.mrf.mxu0
      %5545 = vmatprep.mubr.bf16.mxu0 0
      %5546 = vmatmul.mubr.bf16.gmra.mxu0 %v5391
      %v5547 = vpop.f32.mrf.mxu0
      %v5548 = vadd.f32 %v5423, %v5547
      %v5549 = vpop.f32.mrf.mxu0
      %v5550 = vpop.f32.mrf.mxu0
      %v5551 = vadd.f32 %v5423, %v5550
      %v5552 = vpop.f32.mrf.mxu0
      %5553 = vmatprep.mubr.bf16.mxu0 0
      %5554 = vmatmul.mubr.bf16.gmra.mxu0 %v5392
      %v5555 = vpop.f32.mrf.mxu0
      %v5556 = vadd.f32 %v5423, %v5555
      %v5557 = vpop.f32.mrf.mxu0
      %v5558 = vpop.f32.mrf.mxu0
      %v5559 = vadd.f32 %v5423, %v5558
      %v5560 = vpop.f32.mrf.mxu0
      %5561 = vmatprep.mubr.bf16.mxu0 0
      %5562 = vmatmul.mubr.bf16.gmra.mxu0 %v5393
      %v5563 = vpop.f32.mrf.mxu0
      %v5564 = vadd.f32 %v5423, %v5563
      %v5565 = vpop.f32.mrf.mxu0
      %v5566 = vpop.f32.mrf.mxu0
      %v5567 = vadd.f32 %v5423, %v5566
      %v5568 = vpop.f32.mrf.mxu0
      %5569 = vmatprep.mubr.bf16.mxu0 0
      %5570 = vmatmul.mubr.bf16.gmra.mxu0 %v5394
      %v5571 = vpop.f32.mrf.mxu0
      %v5572 = vadd.f32 %v5423, %v5571
      %v5573 = vpop.f32.mrf.mxu0
      %v5574 = vpop.f32.mrf.mxu0
      %v5575 = vadd.f32 %v5423, %v5574
      %v5576 = vpop.f32.mrf.mxu0
      %5577 = vmatprep.mubr.bf16.mxu0 0
      %5578 = vmatmul.mubr.bf16.gmra.mxu0 %v5395
      %v5579 = vpop.f32.mrf.mxu0
      %v5580 = vadd.f32 %v5423, %v5579
      %v5581 = vpop.f32.mrf.mxu0
      %v5582 = vpop.f32.mrf.mxu0
      %v5583 = vadd.f32 %v5423, %v5582
      %v5584 = vpop.f32.mrf.mxu0
      %5585 = vmatprep.mubr.bf16.mxu0 0
      %5586 = vmatmul.mubr.bf16.gmra.mxu0 %v5396
      %v5587 = vpop.f32.mrf.mxu0
      %v5588 = vadd.f32 %v5423, %v5587
      %v5589 = vpop.f32.mrf.mxu0
      %v5590 = vpop.f32.mrf.mxu0
      %v5591 = vadd.f32 %v5423, %v5590
      %v5592 = vpop.f32.mrf.mxu0
      %5593 = vmatprep.mubr.bf16.mxu0 0
      %5594 = vmatmul.mubr.bf16.gmra.mxu0 %v5397
      %v5595 = vpop.f32.mrf.mxu0
      %v5596 = vadd.f32 %v5423, %v5595
      %v5597 = vpop.f32.mrf.mxu0
      %v5598 = vpop.f32.mrf.mxu0
      %v5599 = vadd.f32 %v5423, %v5598
      %v5600 = vpop.f32.mrf.mxu0
      %5601 = vmatprep.mubr.bf16.mxu0 0
      %5602 = vmatmul.mubr.bf16.gmra.mxu0 %v5398
      %v5603 = vpop.f32.mrf.mxu0
      %v5604 = vadd.f32 %v5423, %v5603
      %v5605 = vpop.f32.mrf.mxu0
      %v5606 = vpop.f32.mrf.mxu0
      %v5607 = vadd.f32 %v5423, %v5606
      %v5608 = vpop.f32.mrf.mxu0
      %5609 = vmatprep.mubr.bf16.mxu0 0
      %5610 = vmatmul.mubr.bf16.gmra.mxu0 %v5399
      %v5611 = vpop.f32.mrf.mxu0
      %v5612 = vadd.f32 %v5423, %v5611
      %v5613 = vpop.f32.mrf.mxu0
      %v5614 = vpop.f32.mrf.mxu0
      %v5615 = vadd.f32 %v5423, %v5614
      %v5616 = vpop.f32.mrf.mxu0
      %5617 = vmatprep.mubr.bf16.mxu0 0
      %5618 = vmatmul.mubr.bf16.gmra.mxu0 %v5400
      %v5619 = vpop.f32.mrf.mxu0
      %v5620 = vadd.f32 %v5423, %v5619
      %v5621 = vpop.f32.mrf.mxu0
      %v5622 = vpop.f32.mrf.mxu0
      %v5623 = vadd.f32 %v5423, %v5622
      %v5624 = vpop.f32.mrf.mxu0
      %5625 = vmatprep.mubr.bf16.mxu0 0
      %5626 = vmatmul.mubr.bf16.gmra.mxu0 %v5401
      %v5627 = vpop.f32.mrf.mxu0
      %v5628 = vadd.f32 %v5423, %v5627
      %v5629 = vpop.f32.mrf.mxu0
      %v5630 = vpop.f32.mrf.mxu0
      %v5631 = vadd.f32 %v5423, %v5630
      %v5632 = vpop.f32.mrf.mxu0
      %5633 = vdwg.mxu0
      %v5634 = vadd.f32 %v5508, %v444
      %v5635 = vadd.f32 %v5511, %v445
      %v5636 = vadd.f32 %v5516, %v446
      %v5637 = vadd.f32 %v5519, %v447
      %v5638 = vadd.f32 %v5524, %v448
      %v5639 = vadd.f32 %v5527, %v449
      %v5640 = vadd.f32 %v5532, %v450
      %v5641 = vadd.f32 %v5535, %v451
      %v5642 = vadd.f32 %v5540, %v452
      %v5643 = vadd.f32 %v5543, %v453
      %v5644 = vadd.f32 %v5548, %v454
      %v5645 = vadd.f32 %v5551, %v455
      %v5646 = vadd.f32 %v5556, %v456
      %v5647 = vadd.f32 %v5559, %v457
      %v5648 = vadd.f32 %v5564, %v458
      %v5649 = vadd.f32 %v5567, %v459
      %v5650 = vadd.f32 %v5572, %v460
      %v5651 = vadd.f32 %v5575, %v461
      %v5652 = vadd.f32 %v5580, %v462
      %v5653 = vadd.f32 %v5583, %v463
      %v5654 = vadd.f32 %v5588, %v464
      %v5655 = vadd.f32 %v5591, %v465
      %v5656 = vadd.f32 %v5596, %v466
      %v5657 = vadd.f32 %v5599, %v467
      %v5658 = vadd.f32 %v5604, %v468
      %v5659 = vadd.f32 %v5607, %v469
      %v5660 = vadd.f32 %v5612, %v470
      %v5661 = vadd.f32 %v5615, %v471
      %v5662 = vadd.f32 %v5620, %v472
      %v5663 = vadd.f32 %v5623, %v473
      %v5664 = vadd.f32 %v5628, %v474
      %v5665 = vadd.f32 %v5631, %v475
      %5666 = vst [vmem:[%s440] sm:$0xff] %v5634
      %5667 = vst [vmem:[%s440 + $0x8] sm:$0xff] %v5635
      %5668 = vst [vmem:[%s440 + $0x10] sm:$0xff] %v5636
      %5669 = vst [vmem:[%s440 + $0x18] sm:$0xff] %v5637
      %5670 = vst [vmem:[%s440 + $0x20] sm:$0xff] %v5638
      %5671 = vst [vmem:[%s440 + $0x28] sm:$0xff] %v5639
      %5672 = vst [vmem:[%s440 + $0x30] sm:$0xff] %v5640
      %5673 = vst [vmem:[%s440 + $0x38] sm:$0xff] %v5641
      %5674 = vst [vmem:[%s440 + $0x40] sm:$0xff] %v5642
      %5675 = vst [vmem:[%s440 + $0x48] sm:$0xff] %v5643
      %5676 = vst [vmem:[%s440 + $0x50] sm:$0xff] %v5644
      %5677 = vst [vmem:[%s440 + $0x58] sm:$0xff] %v5645
      %5678 = vst [vmem:[%s440 + $0x60] sm:$0xff] %v5646
      %5679 = vst [vmem:[%s440 + $0x68] sm:$0xff] %v5647
      %5680 = vst [vmem:[%s440 + $0x70] sm:$0xff] %v5648
      %5681 = vst [vmem:[%s440 + $0x78] sm:$0xff] %v5649
      %5682 = vst [vmem:[%s440 + $0x80] sm:$0xff] %v5650
      %5683 = vst [vmem:[%s440 + $0x88] sm:$0xff] %v5651
      %5684 = vst [vmem:[%s440 + $0x90] sm:$0xff] %v5652
      %5685 = vst [vmem:[%s440 + $0x98] sm:$0xff] %v5653
      %5686 = vst [vmem:[%s440 + $0xa0] sm:$0xff] %v5654
      %5687 = vst [vmem:[%s440 + $0xa8] sm:$0xff] %v5655
      %5688 = vst [vmem:[%s440 + $0xb0] sm:$0xff] %v5656
      %5689 = vst [vmem:[%s440 + $0xb8] sm:$0xff] %v5657
      %5690 = vst [vmem:[%s440 + $0xc0] sm:$0xff] %v5658
      %5691 = vst [vmem:[%s440 + $0xc8] sm:$0xff] %v5659
      %5692 = vst [vmem:[%s440 + $0xd0] sm:$0xff] %v5660
      %5693 = vst [vmem:[%s440 + $0xd8] sm:$0xff] %v5661
      %5694 = vst [vmem:[%s440 + $0xe0] sm:$0xff] %v5662
      %5695 = vst [vmem:[%s440 + $0xe8] sm:$0xff] %v5663
      %5696 = vst [vmem:[%s440 + $0xf0] sm:$0xff] %v5664
      %5697 = vst [vmem:[%s440 + $0xf8] sm:$0xff] %v5665
      %p5698 = scmp.lt.s32.totalorder %s24, 1
      %s5699 = scalar_select %p5698, %s24, 1
      %s5700 = smul.addr %s5699, 32
      %s5701 = smul.addr %s5700, 8
      %s5702 = scalar_lea.vmem %s13, %s5701
      // Predicated region
      $region73: #{bottleneck_forward.1} parent=71 // pred_check
        %p5703 = pneg %p320
      $region74: #{bottleneck_forward.1} parent=71 // pred_check_branch
        %5705 = sbr.rel (%p5703) target = $region76
      $region75: #{bottleneck_forward.1} parent=71 // pred_region
        _
      $region76: #{bottleneck_forward.1} parent=71 // pred_fallthru
        _
    $region72: #{bottleneck_forward.1} parent=5 // pred_fallthru
      _
    %p5706 = scmp.le.s32.totalorder 2, %s19
    // Predicated region
    $region77: #{bottleneck_forward.1} parent=5 // pred_check
      %p5707 = pneg %p5706
    $region78: #{bottleneck_forward.1} parent=5 // pred_check_branch
      %5709 = sbr.rel (%p5707) target = $region80
    $region79: #{bottleneck_forward.1} parent=5 // pred_region
      %s5710 = ssub.s32 %s19, 2
      // Predicated region
      $region81: #{bottleneck_forward.1} parent=79 // pred_check
        %p5711 = pneg %p326
      $region82: #{bottleneck_forward.1} parent=79 // pred_check_branch
        %5713 = sbr.rel (%p5711) target = $region84
      $region83: #{bottleneck_forward.1} parent=79 // pred_region
        %p5714 = scmp.lt.s32.totalorder %s25, 1
        %s5715 = scalar_select %p5714, %s25, 1
        %s5716 = smul.addr %s5715, 32
        %s5717 = smul.addr %s5716, 8
        %s5718 = scalar_lea.vmem %s13, %s5717
      $region84: #{bottleneck_forward.1} parent=79 // pred_fallthru
        _
    $region80: #{bottleneck_forward.1} parent=5 // pred_fallthru
      _
  $region6: #{bottleneck_forward.1} parent=0 // loop_footer
    %s23 = sadd.s32 1, %s19
  $region7: #{bottleneck_forward.1} parent=0 // loop_footer_branch
    %18 = sbr.rel target = $region3
  $region8: #{bottleneck_forward.1} parent=0 // loop_exit
    _

</llo_original>
